<compile_context>
chip_gen: v7x
topology: tpu7x:2x2x1
jax: 0.10.0
libtpu: 0.0.40
codegen_flags: <defaults>
</compile_context>

<pallas_src>
import functools

import jax
import jax.numpy as jnp
from jax.experimental import pallas as pl
from jax.experimental.pallas import tpu as pltpu


def _spp_kernel(col_ref, x_ref, o_ref, *, W):
    """One (batch, channel-tile) block.

    col_ref : (1, H*W) int32 — column index (flat % W) of every spatial slot.
    x_ref   : (1, ct, H*W)   — NCHW input block with H, W flattened on lanes.
    o_ref   : (1, 4, ct, H*W) — [pool13, pool9, pool5, identity].
    """
    x = x_ref[0]                       # (ct, HW)
    col = col_ref[...]                 # (1, HW)
    neg = jnp.asarray(-jnp.inf, dtype=x.dtype)

    def shift(a, s):
        # out[:, f] = a[:, f + s] if 0 <= f + s < L else -inf.
        L = a.shape[-1]
        if s == 0:
            return a
        if abs(s) >= L:
            return jnp.full_like(a, neg)
        fill = jnp.full(a.shape[:-1] + (abs(s),), neg, a.dtype)
        if s > 0:
            return jnp.concatenate([a[:, s:], fill], axis=-1)
        return jnp.concatenate([fill, a[:, :s]], axis=-1)

    def hmax(a, dists):
        # Max over row offsets {0, +-d}: flat shifts by d*W.  The -inf fill at
        # the flat-array ends is exactly the out-of-image condition.
        out = a
        for d in dists:
            out = jnp.maximum(out, shift(a, d * W))
            out = jnp.maximum(out, shift(a, -d * W))
        return out

    def wmax(a, dists):
        # Max over column offsets {0, +-d}: flat shifts by d, masked so a read
        # never crosses a row boundary in the flattened layout.
        out = a
        for d in dists:
            ok_r = col <= (W - 1 - d)          # source col + d stays in row
            ok_l = col >= d                    # source col - d stays in row
            out = jnp.maximum(out, jnp.where(ok_r, shift(a, d), neg))
            out = jnp.maximum(out, jnp.where(ok_l, shift(a, -d), neg))
        return out

    # Separable 5x5 pool, then 9x9 = +-2-shifted max of p5, 13x13 = +-2 of p9.
    p5 = wmax(hmax(x, (1, 2)), (1, 2))
    p9 = wmax(hmax(p5, (2,)), (2,))
    p13 = wmax(hmax(p9, (2,)), (2,))

    o_ref[0, 0] = p13
    o_ref[0, 1] = p9
    o_ref[0, 2] = p5
    o_ref[0, 3] = x


def _channel_tile(C):
    for ct in (128, 256, 64, 32, 16, 8):
        if C % ct == 0:
            return ct
    return C


def spp_nchw(x):
    """SPP forward: (N, C, H, W) -> (N, 4*C, H, W) = cat([p13, p9, p5, x], 1)."""
    N, C, H, W = x.shape
    HW = H * W
    ct = _channel_tile(C)
    col = (jnp.arange(HW, dtype=jnp.int32) % W).reshape(1, HW)
    xf = x.reshape(N, C, HW)                       # dim merge: no data movement

    out = pl.pallas_call(
        functools.partial(_spp_kernel, W=W),
        out_shape=jax.ShapeDtypeStruct((N, 4, C, HW), x.dtype),
        grid_spec=pltpu.PrefetchScalarGridSpec(
            num_scalar_prefetch=0,
            grid=(N, C // ct),
            in_specs=[
                pl.BlockSpec((1, HW), lambda b, c: (0, 0)),
                pl.BlockSpec((1, ct, HW), lambda b, c: (b, c, 0)),
            ],
            out_specs=pl.BlockSpec((1, 4, ct, HW), lambda b, c: (b, 0, c, 0)),
        ),
        compiler_params=pltpu.CompilerParams(
            dimension_semantics=("parallel", "parallel")),
    )(col, xf)

    return out.reshape(N, 4 * C, H, W)             # dim split/merge: free


def _reference(x):
    def pool(v, k):
        p = k // 2
        return jax.lax.reduce_window(
            v, -jnp.inf, jax.lax.max,
            window_dimensions=(1, 1, k, k),
            window_strides=(1, 1, 1, 1),
            padding=((0, 0), (0, 0), (p, p), (p, p)))
    return jnp.concatenate([pool(x, 13), pool(x, 9), pool(x, 5), x], axis=1)


if __name__ == "__main__":
    key = jax.random.PRNGKey(0)
    run = jax.jit(spp_nchw)

    # Lane-aligned demo shape + a real YOLO-style 13x13 map (W % 8 != 0).
    for (N, C, H, W) in ((2, 256, 16, 16), (1, 64, 13, 13)):
        key, sub = jax.random.split(key)
        x = jax.random.normal(sub, (N, C, H, W), jnp.float32)

        out = run(x)
        jax.block_until_ready(out)

        assert out.shape == (N, 4 * C, H, W), out.shape
        ref = _reference(x)
        # Max pooling is rounding-free -> require exact equality.
        assert bool(jnp.all(jnp.isfinite(out)))
        assert bool(jnp.all(out == ref)), float(jnp.max(jnp.abs(out - ref)))

    print("KERNEL_OK")
</pallas_src>

<mosaic_0001>
module attributes {stable_mosaic.version = 11 : i64} {
  func.func @_spp_kernel(%arg0: i32, %arg1: i32, %arg2: memref<1x256xi32, #tpu.memory_space<vmem>>, %arg3: memref<1x128x256xf32, #tpu.memory_space<vmem>>, %arg4: memref<1x4x128x256xf32, #tpu.memory_space<vmem>>) attributes {dimension_semantics = [#tpu.dimension_semantics<parallel>, #tpu.dimension_semantics<parallel>], iteration_bounds = array<i64: 2, 2>, scalar_prefetch = 0 : i64, scratch_operands = 0 : i64, tpu.core_type = #tpu.core_type<tc>, window_params = [{pipeline_mode = #tpu.pipeline_mode<synchronous>, transform_indices = @transform_0, window_bounds = array<i64: 1, 256>}, {transform_indices = @transform_1, window_bounds = array<i64: 1, 128, 256>}, {transform_indices = @transform_2, window_bounds = array<i64: 1, 4, 128, 256>}]} {
    %c0 = arith.constant 0 : index
    %c0_0 = arith.constant 0 : index
    %c0_1 = arith.constant 0 : index
    %0 = vector.load %arg3[%c0, %c0_0, %c0_1] : memref<1x128x256xf32, #tpu.memory_space<vmem>>, vector<1x128x256xf32>
    %1 = vector.shape_cast %0 : vector<1x128x256xf32> to vector<128x256xf32>
    %c0_2 = arith.constant 0 : index
    %c0_3 = arith.constant 0 : index
    %2 = vector.load %arg2[%c0_2, %c0_3] : memref<1x256xi32, #tpu.memory_space<vmem>>, vector<1x256xi32>
    %cst = arith.constant 0xFF800000 : f32
    %3 = vector.broadcast %cst : f32 to vector<128x16xf32>
    %4 = vector.extract_strided_slice %1 {offsets = [0, 16], sizes = [128, 240], strides = [1, 1]} : vector<128x256xf32> to vector<128x240xf32>
    %5 = tpu.concatenate %4, %3 in 1 : vector<128x240xf32>, vector<128x16xf32> -> vector<128x256xf32>
    %6 = arith.maximumf %1, %5 : vector<128x256xf32>
    %cst_4 = arith.constant 0xFF800000 : f32
    %7 = vector.broadcast %cst_4 : f32 to vector<128x16xf32>
    %8 = vector.extract_strided_slice %1 {offsets = [0, 0], sizes = [128, 240], strides = [1, 1]} : vector<128x256xf32> to vector<128x240xf32>
    %9 = tpu.concatenate %7, %8 in 1 : vector<128x16xf32>, vector<128x240xf32> -> vector<128x256xf32>
    %10 = arith.maximumf %6, %9 : vector<128x256xf32>
    %cst_5 = arith.constant 0xFF800000 : f32
    %11 = vector.broadcast %cst_5 : f32 to vector<128x32xf32>
    %12 = vector.extract_strided_slice %1 {offsets = [0, 32], sizes = [128, 224], strides = [1, 1]} : vector<128x256xf32> to vector<128x224xf32>
    %13 = tpu.concatenate %12, %11 in 1 : vector<128x224xf32>, vector<128x32xf32> -> vector<128x256xf32>
    %14 = arith.maximumf %10, %13 : vector<128x256xf32>
    %cst_6 = arith.constant 0xFF800000 : f32
    %15 = vector.broadcast %cst_6 : f32 to vector<128x32xf32>
    %16 = vector.extract_strided_slice %1 {offsets = [0, 0], sizes = [128, 224], strides = [1, 1]} : vector<128x256xf32> to vector<128x224xf32>
    %17 = tpu.concatenate %15, %16 in 1 : vector<128x32xf32>, vector<128x224xf32> -> vector<128x256xf32>
    %18 = arith.maximumf %14, %17 : vector<128x256xf32>
    %c14_i32 = arith.constant 14 : i32
    %19 = vector.broadcast %c14_i32 : i32 to vector<1x256xi32>
    %20 = arith.cmpi sle, %2, %19 : vector<1x256xi32>
    %c1_i32 = arith.constant 1 : i32
    %21 = vector.broadcast %c1_i32 : i32 to vector<1x256xi32>
    %22 = arith.cmpi sge, %2, %21 : vector<1x256xi32>
    %cst_7 = arith.constant 0xFF800000 : f32
    %23 = vector.broadcast %cst_7 : f32 to vector<128x1xf32>
    %24 = vector.extract_strided_slice %18 {offsets = [0, 1], sizes = [128, 255], strides = [1, 1]} : vector<128x256xf32> to vector<128x255xf32>
    %25 = tpu.concatenate %24, %23 in 1 : vector<128x255xf32>, vector<128x1xf32> -> vector<128x256xf32>
    %cst_8 = arith.constant 0xFF800000 : f32
    %26 = vector.shape_cast %20 : vector<1x256xi1> to vector<1x256xi1>
    %27 = vector.broadcast %26 : vector<1x256xi1> to vector<128x256xi1>
    %28 = vector.broadcast %cst_8 : f32 to vector<128x256xf32>
    %29 = arith.select %27, %25, %28 : vector<128x256xi1>, vector<128x256xf32>
    %30 = arith.maximumf %18, %29 : vector<128x256xf32>
    %cst_9 = arith.constant 0xFF800000 : f32
    %31 = vector.broadcast %cst_9 : f32 to vector<128x1xf32>
    %32 = vector.extract_strided_slice %18 {offsets = [0, 0], sizes = [128, 255], strides = [1, 1]} : vector<128x256xf32> to vector<128x255xf32>
    %33 = tpu.concatenate %31, %32 in 1 : vector<128x1xf32>, vector<128x255xf32> -> vector<128x256xf32>
    %cst_10 = arith.constant 0xFF800000 : f32
    %34 = vector.shape_cast %22 : vector<1x256xi1> to vector<1x256xi1>
    %35 = vector.broadcast %34 : vector<1x256xi1> to vector<128x256xi1>
    %36 = vector.broadcast %cst_10 : f32 to vector<128x256xf32>
    %37 = arith.select %35, %33, %36 : vector<128x256xi1>, vector<128x256xf32>
    %38 = arith.maximumf %30, %37 : vector<128x256xf32>
    %c13_i32 = arith.constant 13 : i32
    %39 = vector.broadcast %c13_i32 : i32 to vector<1x256xi32>
    %40 = arith.cmpi sle, %2, %39 : vector<1x256xi32>
    %c2_i32 = arith.constant 2 : i32
    %41 = vector.broadcast %c2_i32 : i32 to vector<1x256xi32>
    %42 = arith.cmpi sge, %2, %41 : vector<1x256xi32>
    %cst_11 = arith.constant 0xFF800000 : f32
    %43 = vector.broadcast %cst_11 : f32 to vector<128x2xf32>
    %44 = vector.extract_strided_slice %18 {offsets = [0, 2], sizes = [128, 254], strides = [1, 1]} : vector<128x256xf32> to vector<128x254xf32>
    %45 = tpu.concatenate %44, %43 in 1 : vector<128x254xf32>, vector<128x2xf32> -> vector<128x256xf32>
    %cst_12 = arith.constant 0xFF800000 : f32
    %46 = vector.shape_cast %40 : vector<1x256xi1> to vector<1x256xi1>
    %47 = vector.broadcast %46 : vector<1x256xi1> to vector<128x256xi1>
    %48 = vector.broadcast %cst_12 : f32 to vector<128x256xf32>
    %49 = arith.select %47, %45, %48 : vector<128x256xi1>, vector<128x256xf32>
    %50 = arith.maximumf %38, %49 : vector<128x256xf32>
    %cst_13 = arith.constant 0xFF800000 : f32
    %51 = vector.broadcast %cst_13 : f32 to vector<128x2xf32>
    %52 = vector.extract_strided_slice %18 {offsets = [0, 0], sizes = [128, 254], strides = [1, 1]} : vector<128x256xf32> to vector<128x254xf32>
    %53 = tpu.concatenate %51, %52 in 1 : vector<128x2xf32>, vector<128x254xf32> -> vector<128x256xf32>
    %cst_14 = arith.constant 0xFF800000 : f32
    %54 = vector.shape_cast %42 : vector<1x256xi1> to vector<1x256xi1>
    %55 = vector.broadcast %54 : vector<1x256xi1> to vector<128x256xi1>
    %56 = vector.broadcast %cst_14 : f32 to vector<128x256xf32>
    %57 = arith.select %55, %53, %56 : vector<128x256xi1>, vector<128x256xf32>
    %58 = arith.maximumf %50, %57 : vector<128x256xf32>
    %cst_15 = arith.constant 0xFF800000 : f32
    %59 = vector.broadcast %cst_15 : f32 to vector<128x32xf32>
    %60 = vector.extract_strided_slice %58 {offsets = [0, 32], sizes = [128, 224], strides = [1, 1]} : vector<128x256xf32> to vector<128x224xf32>
    %61 = tpu.concatenate %60, %59 in 1 : vector<128x224xf32>, vector<128x32xf32> -> vector<128x256xf32>
    %62 = arith.maximumf %58, %61 : vector<128x256xf32>
    %cst_16 = arith.constant 0xFF800000 : f32
    %63 = vector.broadcast %cst_16 : f32 to vector<128x32xf32>
    %64 = vector.extract_strided_slice %58 {offsets = [0, 0], sizes = [128, 224], strides = [1, 1]} : vector<128x256xf32> to vector<128x224xf32>
    %65 = tpu.concatenate %63, %64 in 1 : vector<128x32xf32>, vector<128x224xf32> -> vector<128x256xf32>
    %66 = arith.maximumf %62, %65 : vector<128x256xf32>
    %c13_i32_17 = arith.constant 13 : i32
    %67 = vector.broadcast %c13_i32_17 : i32 to vector<1x256xi32>
    %68 = arith.cmpi sle, %2, %67 : vector<1x256xi32>
    %c2_i32_18 = arith.constant 2 : i32
    %69 = vector.broadcast %c2_i32_18 : i32 to vector<1x256xi32>
    %70 = arith.cmpi sge, %2, %69 : vector<1x256xi32>
    %cst_19 = arith.constant 0xFF800000 : f32
    %71 = vector.broadcast %cst_19 : f32 to vector<128x2xf32>
    %72 = vector.extract_strided_slice %66 {offsets = [0, 2], sizes = [128, 254], strides = [1, 1]} : vector<128x256xf32> to vector<128x254xf32>
    %73 = tpu.concatenate %72, %71 in 1 : vector<128x254xf32>, vector<128x2xf32> -> vector<128x256xf32>
    %cst_20 = arith.constant 0xFF800000 : f32
    %74 = vector.shape_cast %68 : vector<1x256xi1> to vector<1x256xi1>
    %75 = vector.broadcast %74 : vector<1x256xi1> to vector<128x256xi1>
    %76 = vector.broadcast %cst_20 : f32 to vector<128x256xf32>
    %77 = arith.select %75, %73, %76 : vector<128x256xi1>, vector<128x256xf32>
    %78 = arith.maximumf %66, %77 : vector<128x256xf32>
    %cst_21 = arith.constant 0xFF800000 : f32
    %79 = vector.broadcast %cst_21 : f32 to vector<128x2xf32>
    %80 = vector.extract_strided_slice %66 {offsets = [0, 0], sizes = [128, 254], strides = [1, 1]} : vector<128x256xf32> to vector<128x254xf32>
    %81 = tpu.concatenate %79, %80 in 1 : vector<128x2xf32>, vector<128x254xf32> -> vector<128x256xf32>
    %cst_22 = arith.constant 0xFF800000 : f32
    %82 = vector.shape_cast %70 : vector<1x256xi1> to vector<1x256xi1>
    %83 = vector.broadcast %82 : vector<1x256xi1> to vector<128x256xi1>
    %84 = vector.broadcast %cst_22 : f32 to vector<128x256xf32>
    %85 = arith.select %83, %81, %84 : vector<128x256xi1>, vector<128x256xf32>
    %86 = arith.maximumf %78, %85 : vector<128x256xf32>
    %cst_23 = arith.constant 0xFF800000 : f32
    %87 = vector.broadcast %cst_23 : f32 to vector<128x32xf32>
    %88 = vector.extract_strided_slice %86 {offsets = [0, 32], sizes = [128, 224], strides = [1, 1]} : vector<128x256xf32> to vector<128x224xf32>
    %89 = tpu.concatenate %88, %87 in 1 : vector<128x224xf32>, vector<128x32xf32> -> vector<128x256xf32>
    %90 = arith.maximumf %86, %89 : vector<128x256xf32>
    %cst_24 = arith.constant 0xFF800000 : f32
    %91 = vector.broadcast %cst_24 : f32 to vector<128x32xf32>
    %92 = vector.extract_strided_slice %86 {offsets = [0, 0], sizes = [128, 224], strides = [1, 1]} : vector<128x256xf32> to vector<128x224xf32>
    %93 = tpu.concatenate %91, %92 in 1 : vector<128x32xf32>, vector<128x224xf32> -> vector<128x256xf32>
    %94 = arith.maximumf %90, %93 : vector<128x256xf32>
    %c13_i32_25 = arith.constant 13 : i32
    %95 = vector.broadcast %c13_i32_25 : i32 to vector<1x256xi32>
    %96 = arith.cmpi sle, %2, %95 : vector<1x256xi32>
    %c2_i32_26 = arith.constant 2 : i32
    %97 = vector.broadcast %c2_i32_26 : i32 to vector<1x256xi32>
    %98 = arith.cmpi sge, %2, %97 : vector<1x256xi32>
    %cst_27 = arith.constant 0xFF800000 : f32
    %99 = vector.broadcast %cst_27 : f32 to vector<128x2xf32>
    %100 = vector.extract_strided_slice %94 {offsets = [0, 2], sizes = [128, 254], strides = [1, 1]} : vector<128x256xf32> to vector<128x254xf32>
    %101 = tpu.concatenate %100, %99 in 1 : vector<128x254xf32>, vector<128x2xf32> -> vector<128x256xf32>
    %cst_28 = arith.constant 0xFF800000 : f32
    %102 = vector.shape_cast %96 : vector<1x256xi1> to vector<1x256xi1>
    %103 = vector.broadcast %102 : vector<1x256xi1> to vector<128x256xi1>
    %104 = vector.broadcast %cst_28 : f32 to vector<128x256xf32>
    %105 = arith.select %103, %101, %104 : vector<128x256xi1>, vector<128x256xf32>
    %106 = arith.maximumf %94, %105 : vector<128x256xf32>
    %cst_29 = arith.constant 0xFF800000 : f32
    %107 = vector.broadcast %cst_29 : f32 to vector<128x2xf32>
    %108 = vector.extract_strided_slice %94 {offsets = [0, 0], sizes = [128, 254], strides = [1, 1]} : vector<128x256xf32> to vector<128x254xf32>
    %109 = tpu.concatenate %107, %108 in 1 : vector<128x2xf32>, vector<128x254xf32> -> vector<128x256xf32>
    %cst_30 = arith.constant 0xFF800000 : f32
    %110 = vector.shape_cast %98 : vector<1x256xi1> to vector<1x256xi1>
    %111 = vector.broadcast %110 : vector<1x256xi1> to vector<128x256xi1>
    %112 = vector.broadcast %cst_30 : f32 to vector<128x256xf32>
    %113 = arith.select %111, %109, %112 : vector<128x256xi1>, vector<128x256xf32>
    %114 = arith.maximumf %106, %113 : vector<128x256xf32>
    %c0_31 = arith.constant 0 : index
    %c0_32 = arith.constant 0 : index
    %c0_33 = arith.constant 0 : index
    %c0_34 = arith.constant 0 : index
    %115 = vector.load %arg4[%c0_31, %c0_32, %c0_33, %c0_34] : memref<1x4x128x256xf32, #tpu.memory_space<vmem>>, vector<1x1x128x256xf32>
    %116 = vector.shape_cast %115 : vector<1x1x128x256xf32> to vector<128x256xf32>
    %117 = vector.shape_cast %114 : vector<128x256xf32> to vector<1x1x128x256xf32>
    tpu.vector_store %arg4[%c0_31, %c0_32, %c0_33, %c0_34], %117 {strides = array<i32>} : memref<1x4x128x256xf32, #tpu.memory_space<vmem>>, vector<1x1x128x256xf32>,
    %c0_35 = arith.constant 0 : index
    %c1 = arith.constant 1 : index
    %c0_36 = arith.constant 0 : index
    %c0_37 = arith.constant 0 : index
    %118 = vector.load %arg4[%c0_35, %c1, %c0_36, %c0_37] : memref<1x4x128x256xf32, #tpu.memory_space<vmem>>, vector<1x1x128x256xf32>
    %119 = vector.shape_cast %118 : vector<1x1x128x256xf32> to vector<128x256xf32>
    %120 = vector.shape_cast %86 : vector<128x256xf32> to vector<1x1x128x256xf32>
    tpu.vector_store %arg4[%c0_35, %c1, %c0_36, %c0_37], %120 {strides = array<i32>} : memref<1x4x128x256xf32, #tpu.memory_space<vmem>>, vector<1x1x128x256xf32>,
    %c0_38 = arith.constant 0 : index
    %c2 = arith.constant 2 : index
    %c0_39 = arith.constant 0 : index
    %c0_40 = arith.constant 0 : index
    %121 = vector.load %arg4[%c0_38, %c2, %c0_39, %c0_40] : memref<1x4x128x256xf32, #tpu.memory_space<vmem>>, vector<1x1x128x256xf32>
    %122 = vector.shape_cast %121 : vector<1x1x128x256xf32> to vector<128x256xf32>
    %123 = vector.shape_cast %58 : vector<128x256xf32> to vector<1x1x128x256xf32>
    tpu.vector_store %arg4[%c0_38, %c2, %c0_39, %c0_40], %123 {strides = array<i32>} : memref<1x4x128x256xf32, #tpu.memory_space<vmem>>, vector<1x1x128x256xf32>,
    %c0_41 = arith.constant 0 : index
    %c3 = arith.constant 3 : index
    %c0_42 = arith.constant 0 : index
    %c0_43 = arith.constant 0 : index
    %124 = vector.load %arg4[%c0_41, %c3, %c0_42, %c0_43] : memref<1x4x128x256xf32, #tpu.memory_space<vmem>>, vector<1x1x128x256xf32>
    %125 = vector.shape_cast %124 : vector<1x1x128x256xf32> to vector<128x256xf32>
    %126 = vector.shape_cast %1 : vector<128x256xf32> to vector<1x1x128x256xf32>
    tpu.vector_store %arg4[%c0_41, %c3, %c0_42, %c0_43], %126 {strides = array<i32>} : memref<1x4x128x256xf32, #tpu.memory_space<vmem>>, vector<1x1x128x256xf32>,
    return
  }
  func.func @transform_0(%arg0: i32, %arg1: i32) -> (i32, i32) {
    %c0_i32 = arith.constant 0 : i32
    %c0_i32_0 = arith.constant 0 : i32
    %c0_i32_1 = arith.constant 0 : i32
    return %c0_i32, %c0_i32_0 : i32, i32
  }
  func.func @transform_1(%arg0: i32, %arg1: i32) -> (i32, i32, i32) {
    %c0_i32 = arith.constant 0 : i32
    %c0_i32_0 = arith.constant 0 : i32
    return %arg0, %arg1, %c0_i32 : i32, i32, i32
  }
  func.func @transform_2(%arg0: i32, %arg1: i32) -> (i32, i32, i32, i32) {
    %c0_i32 = arith.constant 0 : i32
    %c0_i32_0 = arith.constant 0 : i32
    %c0_i32_1 = arith.constant 0 : i32
    return %arg0, %c0_i32, %arg1, %c0_i32_0 : i32, i32, i32, i32
  }
}

</mosaic_0001>

<llo_original>
// kernel: spp_nchw.1
$region0: #{spp_nchw.1}
  #allocation0 [shape = 'u32[]', space=smem, size = 0x4, offset = 0x4, fixed_abs, tag = 'smem constant byte address 0x4 - core index']
  #allocation1 [shape = 'u32[144,128]{1,0:T(1,128)}', space=vmem, size = 0x12000, scoped, tag = 'internal scratch']
  %s0 = inlined_call_operand.vmem [shape: s32[1,256], index: 0, kind: input, shape index: {}]
  %s1 = inlined_call_operand.vmem [shape: f32[2,256,256], index: 1, kind: input, shape index: {}]
  %s2 = inlined_call_operand.vmem [shape: f32[2,4,256,256], index: 2, kind: output, shape index: {}]
  %s3 = sld [smem:[#allocation0]]
  $region60: #{spp_nchw.1} parent=0
    _
  %s5 = ssub.s32 1, %s3
  %s6 = scalar_select 0, %s5, %s3
  $region1: #{spp_nchw.1} parent=0
    #allocation2 [shape = 'u8[1048576]{0}', space=vmem, size = 0x100000, scoped, tag = 'output window, operand 0']
    loop: start=0, step=1, limit=6
    $region2: #{spp_nchw.1} parent=1 // loop_pre_header
      _
    $region3: #{spp_nchw.1} parent=1 // loop_header
      %s8 = sphi 0, %s12
      %p9 = scmp.ge.s32.totalorder %s8, 6
      %s15 = sphi 0, %s27
      %s16 = sphi 0, %s23
      %s17 = sphi 0, %s15
      %s18 = sphi 0, %s16
      %s19 = sphi 0, %s17
      %s20 = sphi 0, %s18
      %s28 = sphi 0, %s28
      %s30 = sphi 0, %s28
      %s31 = sphi 0, %s30
      %s45 = sphi 0, %s31
      %s53 = sphi 0, %s55
      %s56 = sphi 0, %s53
      %s57 = sphi 0, %s56
      %s73 = sphi 0, %s57
      %s81 = sphi 0, %s83
      %s84 = sphi 0, %s81
      %s85 = sphi 0, %s84
      %s101 = sphi 0, %s85
    $region4: #{spp_nchw.1} parent=1 // loop_header_branch
      %11 = sbr.rel (%p9) target = $region8
    $region5: #{spp_nchw.1} parent=1 // loop_body
      %s13 = ssub.s32 %s8, 1
      %s14 = ssub.s32 %s8, 2
      %s21 = sadd.s32 1, %s16
      %p22 = scmp.ge.s32.totalorder %s21, 2
      %s23 = scalar_select %p22, 0, %s21
      %s24 = sadd.s32 1, %s15
      %s25 = scalar_select %p22, %s24, %s15
      %p26 = scmp.ge.s32.totalorder %s25, 2
      %s27 = scalar_select %p26, 0, %s25
      %s29 = sadd.s32 %s28, 1
      %p32 = scmp.eq.s32.totalorder %s8, 3
      %p33 = scmp.ne.s32.totalorder %s28, %s30
      %p34 = scmp.eq.s32.totalorder %s8, 0
      %p35 = por %p33, %p34
      %p36 = scmp.ne.s32.totalorder %s28, %s30
      %p37 = scmp.eq.s32.totalorder %s13, 3
      %p38 = por %p36, %p37
      %p39 = scmp.ne.s32.totalorder %s30, %s31
      %p40 = scmp.eq.s32.totalorder %s13, 0
      %p41 = por %p39, %p40
      %p42 = scmp.ne.s32.totalorder %s30, %s31
      %p43 = scmp.eq.s32.totalorder %s14, 3
      %p44 = por %p42, %p43
      %p46 = scmp.ne.s32.totalorder %s31, %s45
      %p47 = scmp.eq.s32.totalorder %s14, 0
      %p48 = por %p46, %p47
      %s49 = ssub.s32 %s15, %s27
      %s50 = ssub.s32 %s16, %s23
      %s51 = sor.u32 %s49, %s50
      %p52 = scmp.eq.s32.totalorder %s51, 0
      %s54 = sadd.s32 %s53, 1
      %s55 = scalar_select %p52, %s53, %s54
      %p58 = pneg %p52
      %p59 = scmp.eq.s32.totalorder %s8, 3
      %p60 = por %p58, %p59
      %p61 = scmp.ne.s32.totalorder %s53, %s56
      %p62 = scmp.eq.s32.totalorder %s8, 0
      %p63 = por %p61, %p62
      %p64 = scmp.ne.s32.totalorder %s53, %s56
      %p65 = scmp.eq.s32.totalorder %s13, 3
      %p66 = por %p64, %p65
      %p67 = scmp.ne.s32.totalorder %s56, %s57
      %p68 = scmp.eq.s32.totalorder %s13, 0
      %p69 = por %p67, %p68
      %p70 = scmp.ne.s32.totalorder %s56, %s57
      %p71 = scmp.eq.s32.totalorder %s14, 3
      %p72 = por %p70, %p71
      %p74 = scmp.ne.s32.totalorder %s57, %s73
      %p75 = scmp.eq.s32.totalorder %s14, 0
      %p76 = por %p74, %p75
      %s77 = ssub.s32 %s15, %s27
      %s78 = ssub.s32 %s16, %s23
      %s79 = sor.u32 %s77, %s78
      %p80 = scmp.eq.s32.totalorder %s79, 0
      %s82 = sadd.s32 %s81, 1
      %s83 = scalar_select %p80, %s81, %s82
      %p86 = pneg %p80
      %p87 = scmp.eq.s32.totalorder %s8, 3
      %p88 = por %p86, %p87
      %p89 = scmp.ne.s32.totalorder %s81, %s84
      %p90 = scmp.eq.s32.totalorder %s8, 0
      %p91 = por %p89, %p90
      %p92 = scmp.ne.s32.totalorder %s81, %s84
      %p93 = scmp.eq.s32.totalorder %s13, 3
      %p94 = por %p92, %p93
      %p95 = scmp.ne.s32.totalorder %s84, %s85
      %p96 = scmp.eq.s32.totalorder %s13, 0
      %p97 = por %p95, %p96
      %p98 = scmp.ne.s32.totalorder %s84, %s85
      %p99 = scmp.eq.s32.totalorder %s14, 3
      %p100 = por %p98, %p99
      %p102 = scmp.ne.s32.totalorder %s85, %s101
      %p103 = scmp.eq.s32.totalorder %s14, 0
      %p104 = por %p102, %p103
      %p105 = scmp.le.s32.totalorder 1, %s8
      %p106 = scmp.lt.s32.totalorder %s8, 5
      %p107 = pnand %p105, %p106
      %p108 = pneg %p107
      // Predicated region
      $region9: #{spp_nchw.1} parent=5 // pred_check
        _
      $region10: #{spp_nchw.1} parent=5 // pred_check_branch
        %110 = sbr.rel (%p107) target = $region12
      $region11: #{spp_nchw.1} parent=5 // pred_region
        %s111 = ssub.s32 %s8, 1
        // Predicated region
        $region13: #{spp_nchw.1} parent=11 // pred_check
          %p112 = pneg %p41
        $region14: #{spp_nchw.1} parent=11 // pred_check_branch
          %114 = sbr.rel (%p112) target = $region16
        $region15: #{spp_nchw.1} parent=11 // pred_region
          _
        $region16: #{spp_nchw.1} parent=11 // pred_fallthru
          _
      $region12: #{spp_nchw.1} parent=5 // pred_fallthru
        _
      %p115 = scmp.lt.s32.totalorder %s8, 4
      // Predicated region
      $region17: #{spp_nchw.1} parent=5 // pred_check
        %p116 = pneg %p115
      $region18: #{spp_nchw.1} parent=5 // pred_check_branch
        %118 = sbr.rel (%p116) target = $region20
      $region19: #{spp_nchw.1} parent=5 // pred_region
        // Predicated region
        $region21: #{spp_nchw.1} parent=19 // pred_check
          %p119 = pneg %p63
        $region22: #{spp_nchw.1} parent=19 // pred_check_branch
          %121 = sbr.rel (%p119) target = $region24
        $region23: #{spp_nchw.1} parent=19 // pred_region
          %s122 = smul.u32 16, %s16
          %p123 = scmp.lt.s32.totalorder %s15, 1
          %s124 = scalar_select %p123, %s15, 1
          %p125 = scmp.lt.s32.totalorder %s122, 31
          %s126 = scalar_select %p125, %s122, 31
          %s127 = smul.addr %s126, 2
          %s128 = smul.addr %s124, 64
          %s129 = sadd.s32 %s127, %s128
          %s130 = smul.addr %s129, 8
          %s131 = scalar_lea.vmem %s1, %s130
          %s132 = smul.u32 16, %s16
        $region24: #{spp_nchw.1} parent=19 // pred_fallthru
          _
      $region20: #{spp_nchw.1} parent=5 // pred_fallthru
        _
      %p133 = scmp.le.s32.totalorder 1, %s8
      %p134 = scmp.lt.s32.totalorder %s8, 5
      %p135 = pnand %p133, %p134
      %p136 = pneg %p135
      // Predicated region
      $region25: #{spp_nchw.1} parent=5 // pred_check
        _
      $region26: #{spp_nchw.1} parent=5 // pred_check_branch
        %138 = sbr.rel (%p135) target = $region28
      $region27: #{spp_nchw.1} parent=5 // pred_region
        %s139 = ssub.s32 %s8, 1
        %p140 = pneg %p41
        %p141 = pneg %p38
        %s142 = smul.u32 16, %s18
        %p143 = scmp.lt.s32.totalorder %s17, 1
        %s144 = scalar_select %p143, %s17, 1
        %p145 = scmp.lt.s32.totalorder %s142, 31
        %s146 = scalar_select %p145, %s142, 31
        %s147 = smul.addr %s146, 2
        %s148 = smul.addr %s144, 64
        %s149 = sadd.s32 %s147, %s148
        %s150 = smul.addr %s149, 8
        %s151 = scalar_lea.vmem %s1, %s150
        %p152 = pneg %p69
        %p153 = pneg %p66
        %p154 = pneg %p97
        %p155 = pneg %p94
        %s156 = sand.u32 %s84, 1
        %s157 = sand.u32 %s84, 1
        %s158 = smul.addr %s157, 1024
        %s159 = scalar_lea.vmem [#allocation2], %s158
        %s160 = smul.u32 16, %s18
        %p161 = scmp.lt.s32.totalorder %s17, 1
        %s162 = scalar_select %p161, %s17, 1
        %p163 = scmp.lt.s32.totalorder %s160, 31
        %s164 = scalar_select %p163, %s160, 31
        %s165 = smul.addr %s164, 2
        %s166 = smul.addr %s162, 64
        %s167 = sadd.s32 %s165, %s166
        %s168 = smul.addr %s167, 8
        %s169 = scalar_lea.vmem %s1, %s168
        %s170 = smul.u32 16, %s18
        %s171 = smul.u32 16, %s18
        %v172 = vld [vmem:[%s169] sm:$0xff]
        %v173 = vld [vmem:[%s169 + $0x8] sm:$0xff]
        %v174 = vld [vmem:[%s169 + $0x10] sm:$0xff]
        %v175 = vld [vmem:[%s169 + $0x18] sm:$0xff]
        %v176 = vld [vmem:[%s169 + $0x20] sm:$0xff]
        %v177 = vld [vmem:[%s169 + $0x28] sm:$0xff]
        %v178 = vld [vmem:[%s169 + $0x30] sm:$0xff]
        %v179 = vld [vmem:[%s169 + $0x38] sm:$0xff]
        %v180 = vld [vmem:[%s169 + $0x40] sm:$0xff]
        %v181 = vld [vmem:[%s169 + $0x48] sm:$0xff]
        %v182 = vld [vmem:[%s169 + $0x50] sm:$0xff]
        %v183 = vld [vmem:[%s169 + $0x58] sm:$0xff]
        %v184 = vld [vmem:[%s169 + $0x60] sm:$0xff]
        %v185 = vld [vmem:[%s169 + $0x68] sm:$0xff]
        %v186 = vld [vmem:[%s169 + $0x70] sm:$0xff]
        %v187 = vld [vmem:[%s169 + $0x78] sm:$0xff]
        %v188 = vld [vmem:[%s169 + $0x80] sm:$0xff]
        %v189 = vld [vmem:[%s169 + $0x88] sm:$0xff]
        %v190 = vld [vmem:[%s169 + $0x90] sm:$0xff]
        %v191 = vld [vmem:[%s169 + $0x98] sm:$0xff]
        %v192 = vld [vmem:[%s169 + $0xa0] sm:$0xff]
        %v193 = vld [vmem:[%s169 + $0xa8] sm:$0xff]
        %v194 = vld [vmem:[%s169 + $0xb0] sm:$0xff]
        %v195 = vld [vmem:[%s169 + $0xb8] sm:$0xff]
        %v196 = vld [vmem:[%s169 + $0xc0] sm:$0xff]
        %v197 = vld [vmem:[%s169 + $0xc8] sm:$0xff]
        %v198 = vld [vmem:[%s169 + $0xd0] sm:$0xff]
        %v199 = vld [vmem:[%s169 + $0xd8] sm:$0xff]
        %v200 = vld [vmem:[%s169 + $0xe0] sm:$0xff]
        %v201 = vld [vmem:[%s169 + $0xe8] sm:$0xff]
        %v202 = vld [vmem:[%s169 + $0xf0] sm:$0xff]
        %v203 = vld [vmem:[%s169 + $0xf8] sm:$0xff]
        %v204 = vld [vmem:[%s0] sm:$0x3]
        %237 = vrot.lane.b32.xlu0 %v172, 112
        %v238 = vpop.permute.xlu0 %237
        %239 = vrot.lane.b32.xlu0 %v173, 112
        %v240 = vpop.permute.xlu0 %239
        %241 = vrot.lane.b32.xlu0 %v174, 112
        %v242 = vpop.permute.xlu0 %241
        %243 = vrot.lane.b32.xlu0 %v175, 112
        %v244 = vpop.permute.xlu0 %243
        %245 = vrot.lane.b32.xlu0 %v176, 112
        %v246 = vpop.permute.xlu0 %245
        %247 = vrot.lane.b32.xlu0 %v177, 112
        %v248 = vpop.permute.xlu0 %247
        %249 = vrot.lane.b32.xlu0 %v178, 112
        %v250 = vpop.permute.xlu0 %249
        %251 = vrot.lane.b32.xlu0 %v179, 112
        %v252 = vpop.permute.xlu0 %251
        %253 = vrot.lane.b32.xlu0 %v180, 112
        %v254 = vpop.permute.xlu0 %253
        %255 = vrot.lane.b32.xlu0 %v181, 112
        %v256 = vpop.permute.xlu0 %255
        %257 = vrot.lane.b32.xlu0 %v182, 112
        %v258 = vpop.permute.xlu0 %257
        %259 = vrot.lane.b32.xlu0 %v183, 112
        %v260 = vpop.permute.xlu0 %259
        %261 = vrot.lane.b32.xlu0 %v184, 112
        %v262 = vpop.permute.xlu0 %261
        %263 = vrot.lane.b32.xlu0 %v185, 112
        %v264 = vpop.permute.xlu0 %263
        %265 = vrot.lane.b32.xlu0 %v186, 112
        %v266 = vpop.permute.xlu0 %265
        %267 = vrot.lane.b32.xlu0 %v187, 112
        %v268 = vpop.permute.xlu0 %267
        %269 = vrot.lane.b32.xlu0 %v188, 112
        %v270 = vpop.permute.xlu0 %269
        %271 = vrot.lane.b32.xlu0 %v189, 112
        %v272 = vpop.permute.xlu0 %271
        %273 = vrot.lane.b32.xlu0 %v190, 112
        %v274 = vpop.permute.xlu0 %273
        %275 = vrot.lane.b32.xlu0 %v191, 112
        %v276 = vpop.permute.xlu0 %275
        %277 = vrot.lane.b32.xlu0 %v192, 112
        %v278 = vpop.permute.xlu0 %277
        %279 = vrot.lane.b32.xlu0 %v193, 112
        %v280 = vpop.permute.xlu0 %279
        %281 = vrot.lane.b32.xlu0 %v194, 112
        %v282 = vpop.permute.xlu0 %281
        %283 = vrot.lane.b32.xlu0 %v195, 112
        %v284 = vpop.permute.xlu0 %283
        %285 = vrot.lane.b32.xlu0 %v196, 112
        %v286 = vpop.permute.xlu0 %285
        %287 = vrot.lane.b32.xlu0 %v197, 112
        %v288 = vpop.permute.xlu0 %287
        %289 = vrot.lane.b32.xlu0 %v198, 112
        %v290 = vpop.permute.xlu0 %289
        %291 = vrot.lane.b32.xlu0 %v199, 112
        %v292 = vpop.permute.xlu0 %291
        %293 = vrot.lane.b32.xlu0 %v200, 112
        %v294 = vpop.permute.xlu0 %293
        %295 = vrot.lane.b32.xlu0 %v201, 112
        %v296 = vpop.permute.xlu0 %295
        %297 = vrot.lane.b32.xlu0 %v202, 112
        %v298 = vpop.permute.xlu0 %297
        %299 = vrot.lane.b32.xlu0 %v203, 112
        %v300 = vpop.permute.xlu0 %299
        %vm301 = vcmask 916480
        %v302 = vsel %vm301, %v238, %v240
        %v303 = vsel %vm301, %v242, %v244
        %v304 = vsel %vm301, %v246, %v248
        %v305 = vsel %vm301, %v250, %v252
        %v306 = vsel %vm301, %v254, %v256
        %v307 = vsel %vm301, %v258, %v260
        %v308 = vsel %vm301, %v262, %v264
        %v309 = vsel %vm301, %v266, %v268
        %v310 = vsel %vm301, %v270, %v272
        %v311 = vsel %vm301, %v274, %v276
        %v312 = vsel %vm301, %v278, %v280
        %v313 = vsel %vm301, %v282, %v284
        %v314 = vsel %vm301, %v286, %v288
        %v315 = vsel %vm301, %v290, %v292
        %v316 = vsel %vm301, %v294, %v296
        %v317 = vsel %vm301, %v298, %v300
        %v350 = vsel %vm301, %v240, -inf
        %v351 = vsel %vm301, %v244, -inf
        %v352 = vsel %vm301, %v248, -inf
        %v353 = vsel %vm301, %v252, -inf
        %v354 = vsel %vm301, %v256, -inf
        %v355 = vsel %vm301, %v260, -inf
        %v356 = vsel %vm301, %v264, -inf
        %v357 = vsel %vm301, %v268, -inf
        %v358 = vsel %vm301, %v272, -inf
        %v359 = vsel %vm301, %v276, -inf
        %v360 = vsel %vm301, %v280, -inf
        %v361 = vsel %vm301, %v284, -inf
        %v362 = vsel %vm301, %v288, -inf
        %v363 = vsel %vm301, %v292, -inf
        %v364 = vsel %vm301, %v296, -inf
        %v365 = vsel %vm301, %v300, -inf
        %v366 = vmax.f32 %v172, %v302
        %v367 = vmax.f32 %v173, %v350
        %v368 = vmax.f32 %v174, %v303
        %v369 = vmax.f32 %v175, %v351
        %v370 = vmax.f32 %v176, %v304
        %v371 = vmax.f32 %v177, %v352
        %v372 = vmax.f32 %v178, %v305
        %v373 = vmax.f32 %v179, %v353
        %v374 = vmax.f32 %v180, %v306
        %v375 = vmax.f32 %v181, %v354
        %v376 = vmax.f32 %v182, %v307
        %v377 = vmax.f32 %v183, %v355
        %v378 = vmax.f32 %v184, %v308
        %v379 = vmax.f32 %v185, %v356
        %v380 = vmax.f32 %v186, %v309
        %v381 = vmax.f32 %v187, %v357
        %v382 = vmax.f32 %v188, %v310
        %v383 = vmax.f32 %v189, %v358
        %v384 = vmax.f32 %v190, %v311
        %v385 = vmax.f32 %v191, %v359
        %v386 = vmax.f32 %v192, %v312
        %v387 = vmax.f32 %v193, %v360
        %v388 = vmax.f32 %v194, %v313
        %v389 = vmax.f32 %v195, %v361
        %v390 = vmax.f32 %v196, %v314
        %v391 = vmax.f32 %v197, %v362
        %v392 = vmax.f32 %v198, %v315
        %v393 = vmax.f32 %v199, %v363
        %v394 = vmax.f32 %v200, %v316
        %v395 = vmax.f32 %v201, %v364
        %v396 = vmax.f32 %v202, %v317
        %v397 = vmax.f32 %v203, %v365
        %398 = vrot.lane.b32.xlu0 %v172, 16
        %v399 = vpop.permute.xlu0 %398
        %400 = vrot.lane.b32.xlu0 %v173, 16
        %v401 = vpop.permute.xlu0 %400
        %402 = vrot.lane.b32.xlu0 %v174, 16
        %v403 = vpop.permute.xlu0 %402
        %404 = vrot.lane.b32.xlu0 %v175, 16
        %v405 = vpop.permute.xlu0 %404
        %406 = vrot.lane.b32.xlu0 %v176, 16
        %v407 = vpop.permute.xlu0 %406
        %408 = vrot.lane.b32.xlu0 %v177, 16
        %v409 = vpop.permute.xlu0 %408
        %410 = vrot.lane.b32.xlu0 %v178, 16
        %v411 = vpop.permute.xlu0 %410
        %412 = vrot.lane.b32.xlu0 %v179, 16
        %v413 = vpop.permute.xlu0 %412
        %414 = vrot.lane.b32.xlu0 %v180, 16
        %v415 = vpop.permute.xlu0 %414
        %416 = vrot.lane.b32.xlu0 %v181, 16
        %v417 = vpop.permute.xlu0 %416
        %418 = vrot.lane.b32.xlu0 %v182, 16
        %v419 = vpop.permute.xlu0 %418
        %420 = vrot.lane.b32.xlu0 %v183, 16
        %v421 = vpop.permute.xlu0 %420
        %422 = vrot.lane.b32.xlu0 %v184, 16
        %v423 = vpop.permute.xlu0 %422
        %424 = vrot.lane.b32.xlu0 %v185, 16
        %v425 = vpop.permute.xlu0 %424
        %426 = vrot.lane.b32.xlu0 %v186, 16
        %v427 = vpop.permute.xlu0 %426
        %428 = vrot.lane.b32.xlu0 %v187, 16
        %v429 = vpop.permute.xlu0 %428
        %430 = vrot.lane.b32.xlu0 %v188, 16
        %v431 = vpop.permute.xlu0 %430
        %432 = vrot.lane.b32.xlu0 %v189, 16
        %v433 = vpop.permute.xlu0 %432
        %434 = vrot.lane.b32.xlu0 %v190, 16
        %v435 = vpop.permute.xlu0 %434
        %436 = vrot.lane.b32.xlu0 %v191, 16
        %v437 = vpop.permute.xlu0 %436
        %438 = vrot.lane.b32.xlu0 %v192, 16
        %v439 = vpop.permute.xlu0 %438
        %440 = vrot.lane.b32.xlu0 %v193, 16
        %v441 = vpop.permute.xlu0 %440
        %442 = vrot.lane.b32.xlu0 %v194, 16
        %v443 = vpop.permute.xlu0 %442
        %444 = vrot.lane.b32.xlu0 %v195, 16
        %v445 = vpop.permute.xlu0 %444
        %446 = vrot.lane.b32.xlu0 %v196, 16
        %v447 = vpop.permute.xlu0 %446
        %448 = vrot.lane.b32.xlu0 %v197, 16
        %v449 = vpop.permute.xlu0 %448
        %450 = vrot.lane.b32.xlu0 %v198, 16
        %v451 = vpop.permute.xlu0 %450
        %452 = vrot.lane.b32.xlu0 %v199, 16
        %v453 = vpop.permute.xlu0 %452
        %454 = vrot.lane.b32.xlu0 %v200, 16
        %v455 = vpop.permute.xlu0 %454
        %456 = vrot.lane.b32.xlu0 %v201, 16
        %v457 = vpop.permute.xlu0 %456
        %458 = vrot.lane.b32.xlu0 %v202, 16
        %v459 = vpop.permute.xlu0 %458
        %460 = vrot.lane.b32.xlu0 %v203, 16
        %v461 = vpop.permute.xlu0 %460
        %vm462 = vcmask 130048
        %v463 = vsel %vm462, %v399, %v401
        %v464 = vsel %vm462, %v403, %v405
        %v465 = vsel %vm462, %v407, %v409
        %v466 = vsel %vm462, %v411, %v413
        %v467 = vsel %vm462, %v415, %v417
        %v468 = vsel %vm462, %v419, %v421
        %v469 = vsel %vm462, %v423, %v425
        %v470 = vsel %vm462, %v427, %v429
        %v471 = vsel %vm462, %v431, %v433
        %v472 = vsel %vm462, %v435, %v437
        %v473 = vsel %vm462, %v439, %v441
        %v474 = vsel %vm462, %v443, %v445
        %v475 = vsel %vm462, %v447, %v449
        %v476 = vsel %vm462, %v451, %v453
        %v477 = vsel %vm462, %v455, %v457
        %v478 = vsel %vm462, %v459, %v461
        %v511 = vsel %vm462, -inf, %v399
        %v512 = vsel %vm462, -inf, %v403
        %v513 = vsel %vm462, -inf, %v407
        %v514 = vsel %vm462, -inf, %v411
        %v515 = vsel %vm462, -inf, %v415
        %v516 = vsel %vm462, -inf, %v419
        %v517 = vsel %vm462, -inf, %v423
        %v518 = vsel %vm462, -inf, %v427
        %v519 = vsel %vm462, -inf, %v431
        %v520 = vsel %vm462, -inf, %v435
        %v521 = vsel %vm462, -inf, %v439
        %v522 = vsel %vm462, -inf, %v443
        %v523 = vsel %vm462, -inf, %v447
        %v524 = vsel %vm462, -inf, %v451
        %v525 = vsel %vm462, -inf, %v455
        %v526 = vsel %vm462, -inf, %v459
        %v527 = vmax.f32 %v366, %v511
        %v528 = vmax.f32 %v367, %v463
        %v529 = vmax.f32 %v368, %v512
        %v530 = vmax.f32 %v369, %v464
        %v531 = vmax.f32 %v370, %v513
        %v532 = vmax.f32 %v371, %v465
        %v533 = vmax.f32 %v372, %v514
        %v534 = vmax.f32 %v373, %v466
        %v535 = vmax.f32 %v374, %v515
        %v536 = vmax.f32 %v375, %v467
        %v537 = vmax.f32 %v376, %v516
        %v538 = vmax.f32 %v377, %v468
        %v539 = vmax.f32 %v378, %v517
        %v540 = vmax.f32 %v379, %v469
        %v541 = vmax.f32 %v380, %v518
        %v542 = vmax.f32 %v381, %v470
        %v543 = vmax.f32 %v382, %v519
        %v544 = vmax.f32 %v383, %v471
        %v545 = vmax.f32 %v384, %v520
        %v546 = vmax.f32 %v385, %v472
        %v547 = vmax.f32 %v386, %v521
        %v548 = vmax.f32 %v387, %v473
        %v549 = vmax.f32 %v388, %v522
        %v550 = vmax.f32 %v389, %v474
        %v551 = vmax.f32 %v390, %v523
        %v552 = vmax.f32 %v391, %v475
        %v553 = vmax.f32 %v392, %v524
        %v554 = vmax.f32 %v393, %v476
        %v555 = vmax.f32 %v394, %v525
        %v556 = vmax.f32 %v395, %v477
        %v557 = vmax.f32 %v396, %v526
        %v558 = vmax.f32 %v397, %v478
        %559 = vrot.lane.b32.xlu0 %v172, 96
        %v560 = vpop.permute.xlu0 %559
        %561 = vrot.lane.b32.xlu0 %v173, 96
        %v562 = vpop.permute.xlu0 %561
        %563 = vrot.lane.b32.xlu0 %v174, 96
        %v564 = vpop.permute.xlu0 %563
        %565 = vrot.lane.b32.xlu0 %v175, 96
        %v566 = vpop.permute.xlu0 %565
        %567 = vrot.lane.b32.xlu0 %v176, 96
        %v568 = vpop.permute.xlu0 %567
        %569 = vrot.lane.b32.xlu0 %v177, 96
        %v570 = vpop.permute.xlu0 %569
        %571 = vrot.lane.b32.xlu0 %v178, 96
        %v572 = vpop.permute.xlu0 %571
        %573 = vrot.lane.b32.xlu0 %v179, 96
        %v574 = vpop.permute.xlu0 %573
        %575 = vrot.lane.b32.xlu0 %v180, 96
        %v576 = vpop.permute.xlu0 %575
        %577 = vrot.lane.b32.xlu0 %v181, 96
        %v578 = vpop.permute.xlu0 %577
        %579 = vrot.lane.b32.xlu0 %v182, 96
        %v580 = vpop.permute.xlu0 %579
        %581 = vrot.lane.b32.xlu0 %v183, 96
        %v582 = vpop.permute.xlu0 %581
        %583 = vrot.lane.b32.xlu0 %v184, 96
        %v584 = vpop.permute.xlu0 %583
        %585 = vrot.lane.b32.xlu0 %v185, 96
        %v586 = vpop.permute.xlu0 %585
        %587 = vrot.lane.b32.xlu0 %v186, 96
        %v588 = vpop.permute.xlu0 %587
        %589 = vrot.lane.b32.xlu0 %v187, 96
        %v590 = vpop.permute.xlu0 %589
        %591 = vrot.lane.b32.xlu0 %v188, 96
        %v592 = vpop.permute.xlu0 %591
        %593 = vrot.lane.b32.xlu0 %v189, 96
        %v594 = vpop.permute.xlu0 %593
        %595 = vrot.lane.b32.xlu0 %v190, 96
        %v596 = vpop.permute.xlu0 %595
        %597 = vrot.lane.b32.xlu0 %v191, 96
        %v598 = vpop.permute.xlu0 %597
        %599 = vrot.lane.b32.xlu0 %v192, 96
        %v600 = vpop.permute.xlu0 %599
        %601 = vrot.lane.b32.xlu0 %v193, 96
        %v602 = vpop.permute.xlu0 %601
        %603 = vrot.lane.b32.xlu0 %v194, 96
        %v604 = vpop.permute.xlu0 %603
        %605 = vrot.lane.b32.xlu0 %v195, 96
        %v606 = vpop.permute.xlu0 %605
        %607 = vrot.lane.b32.xlu0 %v196, 96
        %v608 = vpop.permute.xlu0 %607
        %609 = vrot.lane.b32.xlu0 %v197, 96
        %v610 = vpop.permute.xlu0 %609
        %611 = vrot.lane.b32.xlu0 %v198, 96
        %v612 = vpop.permute.xlu0 %611
        %613 = vrot.lane.b32.xlu0 %v199, 96
        %v614 = vpop.permute.xlu0 %613
        %615 = vrot.lane.b32.xlu0 %v200, 96
        %v616 = vpop.permute.xlu0 %615
        %617 = vrot.lane.b32.xlu0 %v201, 96
        %v618 = vpop.permute.xlu0 %617
        %619 = vrot.lane.b32.xlu0 %v202, 96
        %v620 = vpop.permute.xlu0 %619
        %621 = vrot.lane.b32.xlu0 %v203, 96
        %v622 = vpop.permute.xlu0 %621
        %vm623 = vcmask 785408
        %v624 = vsel %vm623, %v560, %v562
        %v625 = vsel %vm623, %v564, %v566
        %v626 = vsel %vm623, %v568, %v570
        %v627 = vsel %vm623, %v572, %v574
        %v628 = vsel %vm623, %v576, %v578
        %v629 = vsel %vm623, %v580, %v582
        %v630 = vsel %vm623, %v584, %v586
        %v631 = vsel %vm623, %v588, %v590
        %v632 = vsel %vm623, %v592, %v594
        %v633 = vsel %vm623, %v596, %v598
        %v634 = vsel %vm623, %v600, %v602
        %v635 = vsel %vm623, %v604, %v606
        %v636 = vsel %vm623, %v608, %v610
        %v637 = vsel %vm623, %v612, %v614
        %v638 = vsel %vm623, %v616, %v618
        %v639 = vsel %vm623, %v620, %v622
        %v672 = vsel %vm623, %v562, -inf
        %v673 = vsel %vm623, %v566, -inf
        %v674 = vsel %vm623, %v570, -inf
        %v675 = vsel %vm623, %v574, -inf
        %v676 = vsel %vm623, %v578, -inf
        %v677 = vsel %vm623, %v582, -inf
        %v678 = vsel %vm623, %v586, -inf
        %v679 = vsel %vm623, %v590, -inf
        %v680 = vsel %vm623, %v594, -inf
        %v681 = vsel %vm623, %v598, -inf
        %v682 = vsel %vm623, %v602, -inf
        %v683 = vsel %vm623, %v606, -inf
        %v684 = vsel %vm623, %v610, -inf
        %v685 = vsel %vm623, %v614, -inf
        %v686 = vsel %vm623, %v618, -inf
        %v687 = vsel %vm623, %v622, -inf
        %v688 = vmax.f32 %v527, %v624
        %v689 = vmax.f32 %v528, %v672
        %v690 = vmax.f32 %v529, %v625
        %v691 = vmax.f32 %v530, %v673
        %v692 = vmax.f32 %v531, %v626
        %v693 = vmax.f32 %v532, %v674
        %v694 = vmax.f32 %v533, %v627
        %v695 = vmax.f32 %v534, %v675
        %v696 = vmax.f32 %v535, %v628
        %v697 = vmax.f32 %v536, %v676
        %v698 = vmax.f32 %v537, %v629
        %v699 = vmax.f32 %v538, %v677
        %v700 = vmax.f32 %v539, %v630
        %v701 = vmax.f32 %v540, %v678
        %v702 = vmax.f32 %v541, %v631
        %v703 = vmax.f32 %v542, %v679
        %v704 = vmax.f32 %v543, %v632
        %v705 = vmax.f32 %v544, %v680
        %v706 = vmax.f32 %v545, %v633
        %v707 = vmax.f32 %v546, %v681
        %v708 = vmax.f32 %v547, %v634
        %v709 = vmax.f32 %v548, %v682
        %v710 = vmax.f32 %v549, %v635
        %v711 = vmax.f32 %v550, %v683
        %v712 = vmax.f32 %v551, %v636
        %v713 = vmax.f32 %v552, %v684
        %v714 = vmax.f32 %v553, %v637
        %v715 = vmax.f32 %v554, %v685
        %v716 = vmax.f32 %v555, %v638
        %v717 = vmax.f32 %v556, %v686
        %v718 = vmax.f32 %v557, %v639
        %v719 = vmax.f32 %v558, %v687
        %720 = vrot.lane.b32.xlu0 %v172, 32
        %v721 = vpop.permute.xlu0 %720
        %722 = vrot.lane.b32.xlu0 %v173, 32
        %v723 = vpop.permute.xlu0 %722
        %724 = vrot.lane.b32.xlu0 %v174, 32
        %v725 = vpop.permute.xlu0 %724
        %726 = vrot.lane.b32.xlu0 %v175, 32
        %v727 = vpop.permute.xlu0 %726
        %728 = vrot.lane.b32.xlu0 %v176, 32
        %v729 = vpop.permute.xlu0 %728
        %730 = vrot.lane.b32.xlu0 %v177, 32
        %v731 = vpop.permute.xlu0 %730
        %732 = vrot.lane.b32.xlu0 %v178, 32
        %v733 = vpop.permute.xlu0 %732
        %734 = vrot.lane.b32.xlu0 %v179, 32
        %v735 = vpop.permute.xlu0 %734
        %736 = vrot.lane.b32.xlu0 %v180, 32
        %v737 = vpop.permute.xlu0 %736
        %738 = vrot.lane.b32.xlu0 %v181, 32
        %v739 = vpop.permute.xlu0 %738
        %740 = vrot.lane.b32.xlu0 %v182, 32
        %v741 = vpop.permute.xlu0 %740
        %742 = vrot.lane.b32.xlu0 %v183, 32
        %v743 = vpop.permute.xlu0 %742
        %744 = vrot.lane.b32.xlu0 %v184, 32
        %v745 = vpop.permute.xlu0 %744
        %746 = vrot.lane.b32.xlu0 %v185, 32
        %v747 = vpop.permute.xlu0 %746
        %748 = vrot.lane.b32.xlu0 %v186, 32
        %v749 = vpop.permute.xlu0 %748
        %750 = vrot.lane.b32.xlu0 %v187, 32
        %v751 = vpop.permute.xlu0 %750
        %752 = vrot.lane.b32.xlu0 %v188, 32
        %v753 = vpop.permute.xlu0 %752
        %754 = vrot.lane.b32.xlu0 %v189, 32
        %v755 = vpop.permute.xlu0 %754
        %756 = vrot.lane.b32.xlu0 %v190, 32
        %v757 = vpop.permute.xlu0 %756
        %758 = vrot.lane.b32.xlu0 %v191, 32
        %v759 = vpop.permute.xlu0 %758
        %760 = vrot.lane.b32.xlu0 %v192, 32
        %v761 = vpop.permute.xlu0 %760
        %762 = vrot.lane.b32.xlu0 %v193, 32
        %v763 = vpop.permute.xlu0 %762
        %764 = vrot.lane.b32.xlu0 %v194, 32
        %v765 = vpop.permute.xlu0 %764
        %766 = vrot.lane.b32.xlu0 %v195, 32
        %v767 = vpop.permute.xlu0 %766
        %768 = vrot.lane.b32.xlu0 %v196, 32
        %v769 = vpop.permute.xlu0 %768
        %770 = vrot.lane.b32.xlu0 %v197, 32
        %v771 = vpop.permute.xlu0 %770
        %772 = vrot.lane.b32.xlu0 %v198, 32
        %v773 = vpop.permute.xlu0 %772
        %774 = vrot.lane.b32.xlu0 %v199, 32
        %v775 = vpop.permute.xlu0 %774
        %776 = vrot.lane.b32.xlu0 %v200, 32
        %v777 = vpop.permute.xlu0 %776
        %778 = vrot.lane.b32.xlu0 %v201, 32
        %v779 = vpop.permute.xlu0 %778
        %780 = vrot.lane.b32.xlu0 %v202, 32
        %v781 = vpop.permute.xlu0 %780
        %782 = vrot.lane.b32.xlu0 %v203, 32
        %v783 = vpop.permute.xlu0 %782
        %vm784 = vcmask 261120
        %v785 = vsel %vm784, %v721, %v723
        %v786 = vsel %vm784, %v725, %v727
        %v787 = vsel %vm784, %v729, %v731
        %v788 = vsel %vm784, %v733, %v735
        %v789 = vsel %vm784, %v737, %v739
        %v790 = vsel %vm784, %v741, %v743
        %v791 = vsel %vm784, %v745, %v747
        %v792 = vsel %vm784, %v749, %v751
        %v793 = vsel %vm784, %v753, %v755
        %v794 = vsel %vm784, %v757, %v759
        %v795 = vsel %vm784, %v761, %v763
        %v796 = vsel %vm784, %v765, %v767
        %v797 = vsel %vm784, %v769, %v771
        %v798 = vsel %vm784, %v773, %v775
        %v799 = vsel %vm784, %v777, %v779
        %v800 = vsel %vm784, %v781, %v783
        %v833 = vsel %vm784, -inf, %v721
        %v834 = vsel %vm784, -inf, %v725
        %v835 = vsel %vm784, -inf, %v729
        %v836 = vsel %vm784, -inf, %v733
        %v837 = vsel %vm784, -inf, %v737
        %v838 = vsel %vm784, -inf, %v741
        %v839 = vsel %vm784, -inf, %v745
        %v840 = vsel %vm784, -inf, %v749
        %v841 = vsel %vm784, -inf, %v753
        %v842 = vsel %vm784, -inf, %v757
        %v843 = vsel %vm784, -inf, %v761
        %v844 = vsel %vm784, -inf, %v765
        %v845 = vsel %vm784, -inf, %v769
        %v846 = vsel %vm784, -inf, %v773
        %v847 = vsel %vm784, -inf, %v777
        %v848 = vsel %vm784, -inf, %v781
        %v849 = vmax.f32 %v688, %v833
        %v850 = vmax.f32 %v689, %v785
        %v851 = vmax.f32 %v690, %v834
        %v852 = vmax.f32 %v691, %v786
        %v853 = vmax.f32 %v692, %v835
        %v854 = vmax.f32 %v693, %v787
        %v855 = vmax.f32 %v694, %v836
        %v856 = vmax.f32 %v695, %v788
        %v857 = vmax.f32 %v696, %v837
        %v858 = vmax.f32 %v697, %v789
        %v859 = vmax.f32 %v698, %v838
        %v860 = vmax.f32 %v699, %v790
        %v861 = vmax.f32 %v700, %v839
        %v862 = vmax.f32 %v701, %v791
        %v863 = vmax.f32 %v702, %v840
        %v864 = vmax.f32 %v703, %v792
        %v865 = vmax.f32 %v704, %v841
        %v866 = vmax.f32 %v705, %v793
        %v867 = vmax.f32 %v706, %v842
        %v868 = vmax.f32 %v707, %v794
        %v869 = vmax.f32 %v708, %v843
        %v870 = vmax.f32 %v709, %v795
        %v871 = vmax.f32 %v710, %v844
        %v872 = vmax.f32 %v711, %v796
        %v873 = vmax.f32 %v712, %v845
        %v874 = vmax.f32 %v713, %v797
        %v875 = vmax.f32 %v714, %v846
        %v876 = vmax.f32 %v715, %v798
        %v877 = vmax.f32 %v716, %v847
        %v878 = vmax.f32 %v717, %v799
        %v879 = vmax.f32 %v718, %v848
        %v880 = vmax.f32 %v719, %v800
        %vm881 = vcmp.le.s32.totalorder %v204, 14
        %vm882 = vcmp.ge.s32.totalorder %v204, 1
        %915 = vrot.lane.b32.xlu0 %v849, 127
        %v916 = vpop.permute.xlu0 %915
        %917 = vrot.lane.b32.xlu0 %v850, 127
        %v918 = vpop.permute.xlu0 %917
        %919 = vrot.lane.b32.xlu0 %v851, 127
        %v920 = vpop.permute.xlu0 %919
        %921 = vrot.lane.b32.xlu0 %v852, 127
        %v922 = vpop.permute.xlu0 %921
        %923 = vrot.lane.b32.xlu0 %v853, 127
        %v924 = vpop.permute.xlu0 %923
        %925 = vrot.lane.b32.xlu0 %v854, 127
        %v926 = vpop.permute.xlu0 %925
        %927 = vrot.lane.b32.xlu0 %v855, 127
        %v928 = vpop.permute.xlu0 %927
        %929 = vrot.lane.b32.xlu0 %v856, 127
        %v930 = vpop.permute.xlu0 %929
        %931 = vrot.lane.b32.xlu0 %v857, 127
        %v932 = vpop.permute.xlu0 %931
        %933 = vrot.lane.b32.xlu0 %v858, 127
        %v934 = vpop.permute.xlu0 %933
        %935 = vrot.lane.b32.xlu0 %v859, 127
        %v936 = vpop.permute.xlu0 %935
        %937 = vrot.lane.b32.xlu0 %v860, 127
        %v938 = vpop.permute.xlu0 %937
        %939 = vrot.lane.b32.xlu0 %v861, 127
        %v940 = vpop.permute.xlu0 %939
        %941 = vrot.lane.b32.xlu0 %v862, 127
        %v942 = vpop.permute.xlu0 %941
        %943 = vrot.lane.b32.xlu0 %v863, 127
        %v944 = vpop.permute.xlu0 %943
        %945 = vrot.lane.b32.xlu0 %v864, 127
        %v946 = vpop.permute.xlu0 %945
        %947 = vrot.lane.b32.xlu0 %v865, 127
        %v948 = vpop.permute.xlu0 %947
        %949 = vrot.lane.b32.xlu0 %v866, 127
        %v950 = vpop.permute.xlu0 %949
        %951 = vrot.lane.b32.xlu0 %v867, 127
        %v952 = vpop.permute.xlu0 %951
        %953 = vrot.lane.b32.xlu0 %v868, 127
        %v954 = vpop.permute.xlu0 %953
        %955 = vrot.lane.b32.xlu0 %v869, 127
        %v956 = vpop.permute.xlu0 %955
        %957 = vrot.lane.b32.xlu0 %v870, 127
        %v958 = vpop.permute.xlu0 %957
        %959 = vrot.lane.b32.xlu0 %v871, 127
        %v960 = vpop.permute.xlu0 %959
        %961 = vrot.lane.b32.xlu0 %v872, 127
        %v962 = vpop.permute.xlu0 %961
        %963 = vrot.lane.b32.xlu0 %v873, 127
        %v964 = vpop.permute.xlu0 %963
        %965 = vrot.lane.b32.xlu0 %v874, 127
        %v966 = vpop.permute.xlu0 %965
        %967 = vrot.lane.b32.xlu0 %v875, 127
        %v968 = vpop.permute.xlu0 %967
        %969 = vrot.lane.b32.xlu0 %v876, 127
        %v970 = vpop.permute.xlu0 %969
        %971 = vrot.lane.b32.xlu0 %v877, 127
        %v972 = vpop.permute.xlu0 %971
        %973 = vrot.lane.b32.xlu0 %v878, 127
        %v974 = vpop.permute.xlu0 %973
        %975 = vrot.lane.b32.xlu0 %v879, 127
        %v976 = vpop.permute.xlu0 %975
        %977 = vrot.lane.b32.xlu0 %v880, 127
        %v978 = vpop.permute.xlu0 %977
        %vm979 = vcmask 1039360
        %v980 = vsel %vm979, %v916, %v918
        %v981 = vsel %vm979, %v920, %v922
        %v982 = vsel %vm979, %v924, %v926
        %v983 = vsel %vm979, %v928, %v930
        %v984 = vsel %vm979, %v932, %v934
        %v985 = vsel %vm979, %v936, %v938
        %v986 = vsel %vm979, %v940, %v942
        %v987 = vsel %vm979, %v944, %v946
        %v988 = vsel %vm979, %v948, %v950
        %v989 = vsel %vm979, %v952, %v954
        %v990 = vsel %vm979, %v956, %v958
        %v991 = vsel %vm979, %v960, %v962
        %v992 = vsel %vm979, %v964, %v966
        %v993 = vsel %vm979, %v968, %v970
        %v994 = vsel %vm979, %v972, %v974
        %v995 = vsel %vm979, %v976, %v978
        %v1028 = vsel %vm979, %v918, -inf
        %v1029 = vsel %vm979, %v922, -inf
        %v1030 = vsel %vm979, %v926, -inf
        %v1031 = vsel %vm979, %v930, -inf
        %v1032 = vsel %vm979, %v934, -inf
        %v1033 = vsel %vm979, %v938, -inf
        %v1034 = vsel %vm979, %v942, -inf
        %v1035 = vsel %vm979, %v946, -inf
        %v1036 = vsel %vm979, %v950, -inf
        %v1037 = vsel %vm979, %v954, -inf
        %v1038 = vsel %vm979, %v958, -inf
        %v1039 = vsel %vm979, %v962, -inf
        %v1040 = vsel %vm979, %v966, -inf
        %v1041 = vsel %vm979, %v970, -inf
        %v1042 = vsel %vm979, %v974, -inf
        %v1043 = vsel %vm979, %v978, -inf
        %v1044 = vsel %vm881, 1, 0
        %v1045 = vlaneseq
        %v1046 = vshrl.u32 %v1045, 7
        %v1047 = vsub.s32 0, %v1046
        %v1048 = vrot.slane %v1044, %v1047
        %v1049 = vlaneseq
        %v1050 = vshrl.u32 %v1049, 7
        %v1051 = vsub.s32 1, %v1050
        %v1052 = vrot.slane %v1044, %v1051
        %vm1053 = vcmp.eq.s32.totalorder %v1048, 1
        %vm1054 = vcmp.eq.s32.totalorder %v1052, 1
        %v1055 = vsel %vm1053, %v980, -inf
        %v1056 = vsel %vm1054, %v1028, -inf
        %v1057 = vsel %vm1053, %v981, -inf
        %v1058 = vsel %vm1054, %v1029, -inf
        %v1059 = vsel %vm1053, %v982, -inf
        %v1060 = vsel %vm1054, %v1030, -inf
        %v1061 = vsel %vm1053, %v983, -inf
        %v1062 = vsel %vm1054, %v1031, -inf
        %v1063 = vsel %vm1053, %v984, -inf
        %v1064 = vsel %vm1054, %v1032, -inf
        %v1065 = vsel %vm1053, %v985, -inf
        %v1066 = vsel %vm1054, %v1033, -inf
        %v1067 = vsel %vm1053, %v986, -inf
        %v1068 = vsel %vm1054, %v1034, -inf
        %v1069 = vsel %vm1053, %v987, -inf
        %v1070 = vsel %vm1054, %v1035, -inf
        %v1071 = vsel %vm1053, %v988, -inf
        %v1072 = vsel %vm1054, %v1036, -inf
        %v1073 = vsel %vm1053, %v989, -inf
        %v1074 = vsel %vm1054, %v1037, -inf
        %v1075 = vsel %vm1053, %v990, -inf
        %v1076 = vsel %vm1054, %v1038, -inf
        %v1077 = vsel %vm1053, %v991, -inf
        %v1078 = vsel %vm1054, %v1039, -inf
        %v1079 = vsel %vm1053, %v992, -inf
        %v1080 = vsel %vm1054, %v1040, -inf
        %v1081 = vsel %vm1053, %v993, -inf
        %v1082 = vsel %vm1054, %v1041, -inf
        %v1083 = vsel %vm1053, %v994, -inf
        %v1084 = vsel %vm1054, %v1042, -inf
        %v1085 = vsel %vm1053, %v995, -inf
        %v1086 = vsel %vm1054, %v1043, -inf
        %v1087 = vmax.f32 %v849, %v1055
        %v1088 = vmax.f32 %v850, %v1056
        %v1089 = vmax.f32 %v851, %v1057
        %v1090 = vmax.f32 %v852, %v1058
        %v1091 = vmax.f32 %v853, %v1059
        %v1092 = vmax.f32 %v854, %v1060
        %v1093 = vmax.f32 %v855, %v1061
        %v1094 = vmax.f32 %v856, %v1062
        %v1095 = vmax.f32 %v857, %v1063
        %v1096 = vmax.f32 %v858, %v1064
        %v1097 = vmax.f32 %v859, %v1065
        %v1098 = vmax.f32 %v860, %v1066
        %v1099 = vmax.f32 %v861, %v1067
        %v1100 = vmax.f32 %v862, %v1068
        %v1101 = vmax.f32 %v863, %v1069
        %v1102 = vmax.f32 %v864, %v1070
        %v1103 = vmax.f32 %v865, %v1071
        %v1104 = vmax.f32 %v866, %v1072
        %v1105 = vmax.f32 %v867, %v1073
        %v1106 = vmax.f32 %v868, %v1074
        %v1107 = vmax.f32 %v869, %v1075
        %v1108 = vmax.f32 %v870, %v1076
        %v1109 = vmax.f32 %v871, %v1077
        %v1110 = vmax.f32 %v872, %v1078
        %v1111 = vmax.f32 %v873, %v1079
        %v1112 = vmax.f32 %v874, %v1080
        %v1113 = vmax.f32 %v875, %v1081
        %v1114 = vmax.f32 %v876, %v1082
        %v1115 = vmax.f32 %v877, %v1083
        %v1116 = vmax.f32 %v878, %v1084
        %v1117 = vmax.f32 %v879, %v1085
        %v1118 = vmax.f32 %v880, %v1086
        %1119 = vrot.lane.b32.xlu0 %v849, 1
        %v1120 = vpop.permute.xlu0 %1119
        %1121 = vrot.lane.b32.xlu0 %v850, 1
        %v1122 = vpop.permute.xlu0 %1121
        %1123 = vrot.lane.b32.xlu0 %v851, 1
        %v1124 = vpop.permute.xlu0 %1123
        %1125 = vrot.lane.b32.xlu0 %v852, 1
        %v1126 = vpop.permute.xlu0 %1125
        %1127 = vrot.lane.b32.xlu0 %v853, 1
        %v1128 = vpop.permute.xlu0 %1127
        %1129 = vrot.lane.b32.xlu0 %v854, 1
        %v1130 = vpop.permute.xlu0 %1129
        %1131 = vrot.lane.b32.xlu0 %v855, 1
        %v1132 = vpop.permute.xlu0 %1131
        %1133 = vrot.lane.b32.xlu0 %v856, 1
        %v1134 = vpop.permute.xlu0 %1133
        %1135 = vrot.lane.b32.xlu0 %v857, 1
        %v1136 = vpop.permute.xlu0 %1135
        %1137 = vrot.lane.b32.xlu0 %v858, 1
        %v1138 = vpop.permute.xlu0 %1137
        %1139 = vrot.lane.b32.xlu0 %v859, 1
        %v1140 = vpop.permute.xlu0 %1139
        %1141 = vrot.lane.b32.xlu0 %v860, 1
        %v1142 = vpop.permute.xlu0 %1141
        %1143 = vrot.lane.b32.xlu0 %v861, 1
        %v1144 = vpop.permute.xlu0 %1143
        %1145 = vrot.lane.b32.xlu0 %v862, 1
        %v1146 = vpop.permute.xlu0 %1145
        %1147 = vrot.lane.b32.xlu0 %v863, 1
        %v1148 = vpop.permute.xlu0 %1147
        %1149 = vrot.lane.b32.xlu0 %v864, 1
        %v1150 = vpop.permute.xlu0 %1149
        %1151 = vrot.lane.b32.xlu0 %v865, 1
        %v1152 = vpop.permute.xlu0 %1151
        %1153 = vrot.lane.b32.xlu0 %v866, 1
        %v1154 = vpop.permute.xlu0 %1153
        %1155 = vrot.lane.b32.xlu0 %v867, 1
        %v1156 = vpop.permute.xlu0 %1155
        %1157 = vrot.lane.b32.xlu0 %v868, 1
        %v1158 = vpop.permute.xlu0 %1157
        %1159 = vrot.lane.b32.xlu0 %v869, 1
        %v1160 = vpop.permute.xlu0 %1159
        %1161 = vrot.lane.b32.xlu0 %v870, 1
        %v1162 = vpop.permute.xlu0 %1161
        %1163 = vrot.lane.b32.xlu0 %v871, 1
        %v1164 = vpop.permute.xlu0 %1163
        %1165 = vrot.lane.b32.xlu0 %v872, 1
        %v1166 = vpop.permute.xlu0 %1165
        %1167 = vrot.lane.b32.xlu0 %v873, 1
        %v1168 = vpop.permute.xlu0 %1167
        %1169 = vrot.lane.b32.xlu0 %v874, 1
        %v1170 = vpop.permute.xlu0 %1169
        %1171 = vrot.lane.b32.xlu0 %v875, 1
        %v1172 = vpop.permute.xlu0 %1171
        %1173 = vrot.lane.b32.xlu0 %v876, 1
        %v1174 = vpop.permute.xlu0 %1173
        %1175 = vrot.lane.b32.xlu0 %v877, 1
        %v1176 = vpop.permute.xlu0 %1175
        %1177 = vrot.lane.b32.xlu0 %v878, 1
        %v1178 = vpop.permute.xlu0 %1177
        %1179 = vrot.lane.b32.xlu0 %v879, 1
        %v1180 = vpop.permute.xlu0 %1179
        %1181 = vrot.lane.b32.xlu0 %v880, 1
        %v1182 = vpop.permute.xlu0 %1181
        %vm1183 = vcmask 7168
        %v1184 = vsel %vm1183, %v1120, %v1122
        %v1185 = vsel %vm1183, %v1124, %v1126
        %v1186 = vsel %vm1183, %v1128, %v1130
        %v1187 = vsel %vm1183, %v1132, %v1134
        %v1188 = vsel %vm1183, %v1136, %v1138
        %v1189 = vsel %vm1183, %v1140, %v1142
        %v1190 = vsel %vm1183, %v1144, %v1146
        %v1191 = vsel %vm1183, %v1148, %v1150
        %v1192 = vsel %vm1183, %v1152, %v1154
        %v1193 = vsel %vm1183, %v1156, %v1158
        %v1194 = vsel %vm1183, %v1160, %v1162
        %v1195 = vsel %vm1183, %v1164, %v1166
        %v1196 = vsel %vm1183, %v1168, %v1170
        %v1197 = vsel %vm1183, %v1172, %v1174
        %v1198 = vsel %vm1183, %v1176, %v1178
        %v1199 = vsel %vm1183, %v1180, %v1182
        %v1232 = vsel %vm1183, -inf, %v1120
        %v1233 = vsel %vm1183, -inf, %v1124
        %v1234 = vsel %vm1183, -inf, %v1128
        %v1235 = vsel %vm1183, -inf, %v1132
        %v1236 = vsel %vm1183, -inf, %v1136
        %v1237 = vsel %vm1183, -inf, %v1140
        %v1238 = vsel %vm1183, -inf, %v1144
        %v1239 = vsel %vm1183, -inf, %v1148
        %v1240 = vsel %vm1183, -inf, %v1152
        %v1241 = vsel %vm1183, -inf, %v1156
        %v1242 = vsel %vm1183, -inf, %v1160
        %v1243 = vsel %vm1183, -inf, %v1164
        %v1244 = vsel %vm1183, -inf, %v1168
        %v1245 = vsel %vm1183, -inf, %v1172
        %v1246 = vsel %vm1183, -inf, %v1176
        %v1247 = vsel %vm1183, -inf, %v1180
        %v1248 = vsel %vm882, 1, 0
        %v1249 = vlaneseq
        %v1250 = vshrl.u32 %v1249, 7
        %v1251 = vsub.s32 0, %v1250
        %v1252 = vrot.slane %v1248, %v1251
        %v1253 = vlaneseq
        %v1254 = vshrl.u32 %v1253, 7
        %v1255 = vsub.s32 1, %v1254
        %v1256 = vrot.slane %v1248, %v1255
        %vm1257 = vcmp.eq.s32.totalorder %v1252, 1
        %vm1258 = vcmp.eq.s32.totalorder %v1256, 1
        %v1259 = vsel %vm1257, %v1232, -inf
        %v1260 = vsel %vm1258, %v1184, -inf
        %v1261 = vsel %vm1257, %v1233, -inf
        %v1262 = vsel %vm1258, %v1185, -inf
        %v1263 = vsel %vm1257, %v1234, -inf
        %v1264 = vsel %vm1258, %v1186, -inf
        %v1265 = vsel %vm1257, %v1235, -inf
        %v1266 = vsel %vm1258, %v1187, -inf
        %v1267 = vsel %vm1257, %v1236, -inf
        %v1268 = vsel %vm1258, %v1188, -inf
        %v1269 = vsel %vm1257, %v1237, -inf
        %v1270 = vsel %vm1258, %v1189, -inf
        %v1271 = vsel %vm1257, %v1238, -inf
        %v1272 = vsel %vm1258, %v1190, -inf
        %v1273 = vsel %vm1257, %v1239, -inf
        %v1274 = vsel %vm1258, %v1191, -inf
        %v1275 = vsel %vm1257, %v1240, -inf
        %v1276 = vsel %vm1258, %v1192, -inf
        %v1277 = vsel %vm1257, %v1241, -inf
        %v1278 = vsel %vm1258, %v1193, -inf
        %v1279 = vsel %vm1257, %v1242, -inf
        %v1280 = vsel %vm1258, %v1194, -inf
        %v1281 = vsel %vm1257, %v1243, -inf
        %v1282 = vsel %vm1258, %v1195, -inf
        %v1283 = vsel %vm1257, %v1244, -inf
        %v1284 = vsel %vm1258, %v1196, -inf
        %v1285 = vsel %vm1257, %v1245, -inf
        %v1286 = vsel %vm1258, %v1197, -inf
        %v1287 = vsel %vm1257, %v1246, -inf
        %v1288 = vsel %vm1258, %v1198, -inf
        %v1289 = vsel %vm1257, %v1247, -inf
        %v1290 = vsel %vm1258, %v1199, -inf
        %v1291 = vmax.f32 %v1087, %v1259
        %v1292 = vmax.f32 %v1088, %v1260
        %v1293 = vmax.f32 %v1089, %v1261
        %v1294 = vmax.f32 %v1090, %v1262
        %v1295 = vmax.f32 %v1091, %v1263
        %v1296 = vmax.f32 %v1092, %v1264
        %v1297 = vmax.f32 %v1093, %v1265
        %v1298 = vmax.f32 %v1094, %v1266
        %v1299 = vmax.f32 %v1095, %v1267
        %v1300 = vmax.f32 %v1096, %v1268
        %v1301 = vmax.f32 %v1097, %v1269
        %v1302 = vmax.f32 %v1098, %v1270
        %v1303 = vmax.f32 %v1099, %v1271
        %v1304 = vmax.f32 %v1100, %v1272
        %v1305 = vmax.f32 %v1101, %v1273
        %v1306 = vmax.f32 %v1102, %v1274
        %v1307 = vmax.f32 %v1103, %v1275
        %v1308 = vmax.f32 %v1104, %v1276
        %v1309 = vmax.f32 %v1105, %v1277
        %v1310 = vmax.f32 %v1106, %v1278
        %v1311 = vmax.f32 %v1107, %v1279
        %v1312 = vmax.f32 %v1108, %v1280
        %v1313 = vmax.f32 %v1109, %v1281
        %v1314 = vmax.f32 %v1110, %v1282
        %v1315 = vmax.f32 %v1111, %v1283
        %v1316 = vmax.f32 %v1112, %v1284
        %v1317 = vmax.f32 %v1113, %v1285
        %v1318 = vmax.f32 %v1114, %v1286
        %v1319 = vmax.f32 %v1115, %v1287
        %v1320 = vmax.f32 %v1116, %v1288
        %v1321 = vmax.f32 %v1117, %v1289
        %v1322 = vmax.f32 %v1118, %v1290
        %vm1323 = vcmp.le.s32.totalorder %v204, 13
        %vm1324 = vcmp.ge.s32.totalorder %v204, 2
        %1325 = vrot.lane.b32.xlu0 %v849, 126
        %v1326 = vpop.permute.xlu0 %1325
        %1327 = vrot.lane.b32.xlu0 %v850, 126
        %v1328 = vpop.permute.xlu0 %1327
        %1329 = vrot.lane.b32.xlu0 %v851, 126
        %v1330 = vpop.permute.xlu0 %1329
        %1331 = vrot.lane.b32.xlu0 %v852, 126
        %v1332 = vpop.permute.xlu0 %1331
        %1333 = vrot.lane.b32.xlu0 %v853, 126
        %v1334 = vpop.permute.xlu0 %1333
        %1335 = vrot.lane.b32.xlu0 %v854, 126
        %v1336 = vpop.permute.xlu0 %1335
        %1337 = vrot.lane.b32.xlu0 %v855, 126
        %v1338 = vpop.permute.xlu0 %1337
        %1339 = vrot.lane.b32.xlu0 %v856, 126
        %v1340 = vpop.permute.xlu0 %1339
        %1341 = vrot.lane.b32.xlu0 %v857, 126
        %v1342 = vpop.permute.xlu0 %1341
        %1343 = vrot.lane.b32.xlu0 %v858, 126
        %v1344 = vpop.permute.xlu0 %1343
        %1345 = vrot.lane.b32.xlu0 %v859, 126
        %v1346 = vpop.permute.xlu0 %1345
        %1347 = vrot.lane.b32.xlu0 %v860, 126
        %v1348 = vpop.permute.xlu0 %1347
        %1349 = vrot.lane.b32.xlu0 %v861, 126
        %v1350 = vpop.permute.xlu0 %1349
        %1351 = vrot.lane.b32.xlu0 %v862, 126
        %v1352 = vpop.permute.xlu0 %1351
        %1353 = vrot.lane.b32.xlu0 %v863, 126
        %v1354 = vpop.permute.xlu0 %1353
        %1355 = vrot.lane.b32.xlu0 %v864, 126
        %v1356 = vpop.permute.xlu0 %1355
        %1357 = vrot.lane.b32.xlu0 %v865, 126
        %v1358 = vpop.permute.xlu0 %1357
        %1359 = vrot.lane.b32.xlu0 %v866, 126
        %v1360 = vpop.permute.xlu0 %1359
        %1361 = vrot.lane.b32.xlu0 %v867, 126
        %v1362 = vpop.permute.xlu0 %1361
        %1363 = vrot.lane.b32.xlu0 %v868, 126
        %v1364 = vpop.permute.xlu0 %1363
        %1365 = vrot.lane.b32.xlu0 %v869, 126
        %v1366 = vpop.permute.xlu0 %1365
        %1367 = vrot.lane.b32.xlu0 %v870, 126
        %v1368 = vpop.permute.xlu0 %1367
        %1369 = vrot.lane.b32.xlu0 %v871, 126
        %v1370 = vpop.permute.xlu0 %1369
        %1371 = vrot.lane.b32.xlu0 %v872, 126
        %v1372 = vpop.permute.xlu0 %1371
        %1373 = vrot.lane.b32.xlu0 %v873, 126
        %v1374 = vpop.permute.xlu0 %1373
        %1375 = vrot.lane.b32.xlu0 %v874, 126
        %v1376 = vpop.permute.xlu0 %1375
        %1377 = vrot.lane.b32.xlu0 %v875, 126
        %v1378 = vpop.permute.xlu0 %1377
        %1379 = vrot.lane.b32.xlu0 %v876, 126
        %v1380 = vpop.permute.xlu0 %1379
        %1381 = vrot.lane.b32.xlu0 %v877, 126
        %v1382 = vpop.permute.xlu0 %1381
        %1383 = vrot.lane.b32.xlu0 %v878, 126
        %v1384 = vpop.permute.xlu0 %1383
        %1385 = vrot.lane.b32.xlu0 %v879, 126
        %v1386 = vpop.permute.xlu0 %1385
        %1387 = vrot.lane.b32.xlu0 %v880, 126
        %v1388 = vpop.permute.xlu0 %1387
        %vm1389 = vcmask 1031168
        %v1390 = vsel %vm1389, %v1326, %v1328
        %v1391 = vsel %vm1389, %v1330, %v1332
        %v1392 = vsel %vm1389, %v1334, %v1336
        %v1393 = vsel %vm1389, %v1338, %v1340
        %v1394 = vsel %vm1389, %v1342, %v1344
        %v1395 = vsel %vm1389, %v1346, %v1348
        %v1396 = vsel %vm1389, %v1350, %v1352
        %v1397 = vsel %vm1389, %v1354, %v1356
        %v1398 = vsel %vm1389, %v1358, %v1360
        %v1399 = vsel %vm1389, %v1362, %v1364
        %v1400 = vsel %vm1389, %v1366, %v1368
        %v1401 = vsel %vm1389, %v1370, %v1372
        %v1402 = vsel %vm1389, %v1374, %v1376
        %v1403 = vsel %vm1389, %v1378, %v1380
        %v1404 = vsel %vm1389, %v1382, %v1384
        %v1405 = vsel %vm1389, %v1386, %v1388
        %v1438 = vsel %vm1389, %v1328, -inf
        %v1439 = vsel %vm1389, %v1332, -inf
        %v1440 = vsel %vm1389, %v1336, -inf
        %v1441 = vsel %vm1389, %v1340, -inf
        %v1442 = vsel %vm1389, %v1344, -inf
        %v1443 = vsel %vm1389, %v1348, -inf
        %v1444 = vsel %vm1389, %v1352, -inf
        %v1445 = vsel %vm1389, %v1356, -inf
        %v1446 = vsel %vm1389, %v1360, -inf
        %v1447 = vsel %vm1389, %v1364, -inf
        %v1448 = vsel %vm1389, %v1368, -inf
        %v1449 = vsel %vm1389, %v1372, -inf
        %v1450 = vsel %vm1389, %v1376, -inf
        %v1451 = vsel %vm1389, %v1380, -inf
        %v1452 = vsel %vm1389, %v1384, -inf
        %v1453 = vsel %vm1389, %v1388, -inf
        %v1454 = vsel %vm1323, 1, 0
        %v1455 = vlaneseq
        %v1456 = vshrl.u32 %v1455, 7
        %v1457 = vsub.s32 0, %v1456
        %v1458 = vrot.slane %v1454, %v1457
        %v1459 = vlaneseq
        %v1460 = vshrl.u32 %v1459, 7
        %v1461 = vsub.s32 1, %v1460
        %v1462 = vrot.slane %v1454, %v1461
        %vm1463 = vcmp.eq.s32.totalorder %v1458, 1
        %vm1464 = vcmp.eq.s32.totalorder %v1462, 1
        %v1465 = vsel %vm1463, %v1390, -inf
        %v1466 = vsel %vm1464, %v1438, -inf
        %v1467 = vsel %vm1463, %v1391, -inf
        %v1468 = vsel %vm1464, %v1439, -inf
        %v1469 = vsel %vm1463, %v1392, -inf
        %v1470 = vsel %vm1464, %v1440, -inf
        %v1471 = vsel %vm1463, %v1393, -inf
        %v1472 = vsel %vm1464, %v1441, -inf
        %v1473 = vsel %vm1463, %v1394, -inf
        %v1474 = vsel %vm1464, %v1442, -inf
        %v1475 = vsel %vm1463, %v1395, -inf
        %v1476 = vsel %vm1464, %v1443, -inf
        %v1477 = vsel %vm1463, %v1396, -inf
        %v1478 = vsel %vm1464, %v1444, -inf
        %v1479 = vsel %vm1463, %v1397, -inf
        %v1480 = vsel %vm1464, %v1445, -inf
        %v1481 = vsel %vm1463, %v1398, -inf
        %v1482 = vsel %vm1464, %v1446, -inf
        %v1483 = vsel %vm1463, %v1399, -inf
        %v1484 = vsel %vm1464, %v1447, -inf
        %v1485 = vsel %vm1463, %v1400, -inf
        %v1486 = vsel %vm1464, %v1448, -inf
        %v1487 = vsel %vm1463, %v1401, -inf
        %v1488 = vsel %vm1464, %v1449, -inf
        %v1489 = vsel %vm1463, %v1402, -inf
        %v1490 = vsel %vm1464, %v1450, -inf
        %v1491 = vsel %vm1463, %v1403, -inf
        %v1492 = vsel %vm1464, %v1451, -inf
        %v1493 = vsel %vm1463, %v1404, -inf
        %v1494 = vsel %vm1464, %v1452, -inf
        %v1495 = vsel %vm1463, %v1405, -inf
        %v1496 = vsel %vm1464, %v1453, -inf
        %v1497 = vmax.f32 %v1291, %v1465
        %v1498 = vmax.f32 %v1292, %v1466
        %v1499 = vmax.f32 %v1293, %v1467
        %v1500 = vmax.f32 %v1294, %v1468
        %v1501 = vmax.f32 %v1295, %v1469
        %v1502 = vmax.f32 %v1296, %v1470
        %v1503 = vmax.f32 %v1297, %v1471
        %v1504 = vmax.f32 %v1298, %v1472
        %v1505 = vmax.f32 %v1299, %v1473
        %v1506 = vmax.f32 %v1300, %v1474
        %v1507 = vmax.f32 %v1301, %v1475
        %v1508 = vmax.f32 %v1302, %v1476
        %v1509 = vmax.f32 %v1303, %v1477
        %v1510 = vmax.f32 %v1304, %v1478
        %v1511 = vmax.f32 %v1305, %v1479
        %v1512 = vmax.f32 %v1306, %v1480
        %v1513 = vmax.f32 %v1307, %v1481
        %v1514 = vmax.f32 %v1308, %v1482
        %v1515 = vmax.f32 %v1309, %v1483
        %v1516 = vmax.f32 %v1310, %v1484
        %v1517 = vmax.f32 %v1311, %v1485
        %v1518 = vmax.f32 %v1312, %v1486
        %v1519 = vmax.f32 %v1313, %v1487
        %v1520 = vmax.f32 %v1314, %v1488
        %v1521 = vmax.f32 %v1315, %v1489
        %v1522 = vmax.f32 %v1316, %v1490
        %v1523 = vmax.f32 %v1317, %v1491
        %v1524 = vmax.f32 %v1318, %v1492
        %v1525 = vmax.f32 %v1319, %v1493
        %v1526 = vmax.f32 %v1320, %v1494
        %v1527 = vmax.f32 %v1321, %v1495
        %v1528 = vmax.f32 %v1322, %v1496
        %1529 = vrot.lane.b32.xlu0 %v849, 2
        %v1530 = vpop.permute.xlu0 %1529
        %1531 = vrot.lane.b32.xlu0 %v850, 2
        %v1532 = vpop.permute.xlu0 %1531
        %1533 = vrot.lane.b32.xlu0 %v851, 2
        %v1534 = vpop.permute.xlu0 %1533
        %1535 = vrot.lane.b32.xlu0 %v852, 2
        %v1536 = vpop.permute.xlu0 %1535
        %1537 = vrot.lane.b32.xlu0 %v853, 2
        %v1538 = vpop.permute.xlu0 %1537
        %1539 = vrot.lane.b32.xlu0 %v854, 2
        %v1540 = vpop.permute.xlu0 %1539
        %1541 = vrot.lane.b32.xlu0 %v855, 2
        %v1542 = vpop.permute.xlu0 %1541
        %1543 = vrot.lane.b32.xlu0 %v856, 2
        %v1544 = vpop.permute.xlu0 %1543
        %1545 = vrot.lane.b32.xlu0 %v857, 2
        %v1546 = vpop.permute.xlu0 %1545
        %1547 = vrot.lane.b32.xlu0 %v858, 2
        %v1548 = vpop.permute.xlu0 %1547
        %1549 = vrot.lane.b32.xlu0 %v859, 2
        %v1550 = vpop.permute.xlu0 %1549
        %1551 = vrot.lane.b32.xlu0 %v860, 2
        %v1552 = vpop.permute.xlu0 %1551
        %1553 = vrot.lane.b32.xlu0 %v861, 2
        %v1554 = vpop.permute.xlu0 %1553
        %1555 = vrot.lane.b32.xlu0 %v862, 2
        %v1556 = vpop.permute.xlu0 %1555
        %1557 = vrot.lane.b32.xlu0 %v863, 2
        %v1558 = vpop.permute.xlu0 %1557
        %1559 = vrot.lane.b32.xlu0 %v864, 2
        %v1560 = vpop.permute.xlu0 %1559
        %1561 = vrot.lane.b32.xlu0 %v865, 2
        %v1562 = vpop.permute.xlu0 %1561
        %1563 = vrot.lane.b32.xlu0 %v866, 2
        %v1564 = vpop.permute.xlu0 %1563
        %1565 = vrot.lane.b32.xlu0 %v867, 2
        %v1566 = vpop.permute.xlu0 %1565
        %1567 = vrot.lane.b32.xlu0 %v868, 2
        %v1568 = vpop.permute.xlu0 %1567
        %1569 = vrot.lane.b32.xlu0 %v869, 2
        %v1570 = vpop.permute.xlu0 %1569
        %1571 = vrot.lane.b32.xlu0 %v870, 2
        %v1572 = vpop.permute.xlu0 %1571
        %1573 = vrot.lane.b32.xlu0 %v871, 2
        %v1574 = vpop.permute.xlu0 %1573
        %1575 = vrot.lane.b32.xlu0 %v872, 2
        %v1576 = vpop.permute.xlu0 %1575
        %1577 = vrot.lane.b32.xlu0 %v873, 2
        %v1578 = vpop.permute.xlu0 %1577
        %1579 = vrot.lane.b32.xlu0 %v874, 2
        %v1580 = vpop.permute.xlu0 %1579
        %1581 = vrot.lane.b32.xlu0 %v875, 2
        %v1582 = vpop.permute.xlu0 %1581
        %1583 = vrot.lane.b32.xlu0 %v876, 2
        %v1584 = vpop.permute.xlu0 %1583
        %1585 = vrot.lane.b32.xlu0 %v877, 2
        %v1586 = vpop.permute.xlu0 %1585
        %1587 = vrot.lane.b32.xlu0 %v878, 2
        %v1588 = vpop.permute.xlu0 %1587
        %1589 = vrot.lane.b32.xlu0 %v879, 2
        %v1590 = vpop.permute.xlu0 %1589
        %1591 = vrot.lane.b32.xlu0 %v880, 2
        %v1592 = vpop.permute.xlu0 %1591
        %vm1593 = vcmask 15360
        %v1594 = vsel %vm1593, %v1530, %v1532
        %v1595 = vsel %vm1593, %v1534, %v1536
        %v1596 = vsel %vm1593, %v1538, %v1540
        %v1597 = vsel %vm1593, %v1542, %v1544
        %v1598 = vsel %vm1593, %v1546, %v1548
        %v1599 = vsel %vm1593, %v1550, %v1552
        %v1600 = vsel %vm1593, %v1554, %v1556
        %v1601 = vsel %vm1593, %v1558, %v1560
        %v1602 = vsel %vm1593, %v1562, %v1564
        %v1603 = vsel %vm1593, %v1566, %v1568
        %v1604 = vsel %vm1593, %v1570, %v1572
        %v1605 = vsel %vm1593, %v1574, %v1576
        %v1606 = vsel %vm1593, %v1578, %v1580
        %v1607 = vsel %vm1593, %v1582, %v1584
        %v1608 = vsel %vm1593, %v1586, %v1588
        %v1609 = vsel %vm1593, %v1590, %v1592
        %v1642 = vsel %vm1593, -inf, %v1530
        %v1643 = vsel %vm1593, -inf, %v1534
        %v1644 = vsel %vm1593, -inf, %v1538
        %v1645 = vsel %vm1593, -inf, %v1542
        %v1646 = vsel %vm1593, -inf, %v1546
        %v1647 = vsel %vm1593, -inf, %v1550
        %v1648 = vsel %vm1593, -inf, %v1554
        %v1649 = vsel %vm1593, -inf, %v1558
        %v1650 = vsel %vm1593, -inf, %v1562
        %v1651 = vsel %vm1593, -inf, %v1566
        %v1652 = vsel %vm1593, -inf, %v1570
        %v1653 = vsel %vm1593, -inf, %v1574
        %v1654 = vsel %vm1593, -inf, %v1578
        %v1655 = vsel %vm1593, -inf, %v1582
        %v1656 = vsel %vm1593, -inf, %v1586
        %v1657 = vsel %vm1593, -inf, %v1590
        %v1658 = vsel %vm1324, 1, 0
        %v1659 = vlaneseq
        %v1660 = vshrl.u32 %v1659, 7
        %v1661 = vsub.s32 0, %v1660
        %v1662 = vrot.slane %v1658, %v1661
        %v1663 = vlaneseq
        %v1664 = vshrl.u32 %v1663, 7
        %v1665 = vsub.s32 1, %v1664
        %v1666 = vrot.slane %v1658, %v1665
        %vm1667 = vcmp.eq.s32.totalorder %v1662, 1
        %vm1668 = vcmp.eq.s32.totalorder %v1666, 1
        %v1669 = vsel %vm1667, %v1642, -inf
        %v1670 = vsel %vm1668, %v1594, -inf
        %v1671 = vsel %vm1667, %v1643, -inf
        %v1672 = vsel %vm1668, %v1595, -inf
        %v1673 = vsel %vm1667, %v1644, -inf
        %v1674 = vsel %vm1668, %v1596, -inf
        %v1675 = vsel %vm1667, %v1645, -inf
        %v1676 = vsel %vm1668, %v1597, -inf
        %v1677 = vsel %vm1667, %v1646, -inf
        %v1678 = vsel %vm1668, %v1598, -inf
        %v1679 = vsel %vm1667, %v1647, -inf
        %v1680 = vsel %vm1668, %v1599, -inf
        %v1681 = vsel %vm1667, %v1648, -inf
        %v1682 = vsel %vm1668, %v1600, -inf
        %v1683 = vsel %vm1667, %v1649, -inf
        %v1684 = vsel %vm1668, %v1601, -inf
        %v1685 = vsel %vm1667, %v1650, -inf
        %v1686 = vsel %vm1668, %v1602, -inf
        %v1687 = vsel %vm1667, %v1651, -inf
        %v1688 = vsel %vm1668, %v1603, -inf
        %v1689 = vsel %vm1667, %v1652, -inf
        %v1690 = vsel %vm1668, %v1604, -inf
        %v1691 = vsel %vm1667, %v1653, -inf
        %v1692 = vsel %vm1668, %v1605, -inf
        %v1693 = vsel %vm1667, %v1654, -inf
        %v1694 = vsel %vm1668, %v1606, -inf
        %v1695 = vsel %vm1667, %v1655, -inf
        %v1696 = vsel %vm1668, %v1607, -inf
        %v1697 = vsel %vm1667, %v1656, -inf
        %v1698 = vsel %vm1668, %v1608, -inf
        %v1699 = vsel %vm1667, %v1657, -inf
        %v1700 = vsel %vm1668, %v1609, -inf
        %v1701 = vmax.f32 %v1497, %v1669
        %v1702 = vmax.f32 %v1498, %v1670
        %v1703 = vmax.f32 %v1499, %v1671
        %v1704 = vmax.f32 %v1500, %v1672
        %v1705 = vmax.f32 %v1501, %v1673
        %v1706 = vmax.f32 %v1502, %v1674
        %v1707 = vmax.f32 %v1503, %v1675
        %v1708 = vmax.f32 %v1504, %v1676
        %v1709 = vmax.f32 %v1505, %v1677
        %v1710 = vmax.f32 %v1506, %v1678
        %v1711 = vmax.f32 %v1507, %v1679
        %v1712 = vmax.f32 %v1508, %v1680
        %v1713 = vmax.f32 %v1509, %v1681
        %v1714 = vmax.f32 %v1510, %v1682
        %v1715 = vmax.f32 %v1511, %v1683
        %v1716 = vmax.f32 %v1512, %v1684
        %v1717 = vmax.f32 %v1513, %v1685
        %v1718 = vmax.f32 %v1514, %v1686
        %v1719 = vmax.f32 %v1515, %v1687
        %v1720 = vmax.f32 %v1516, %v1688
        %v1721 = vmax.f32 %v1517, %v1689
        %v1722 = vmax.f32 %v1518, %v1690
        %v1723 = vmax.f32 %v1519, %v1691
        %v1724 = vmax.f32 %v1520, %v1692
        %v1725 = vmax.f32 %v1521, %v1693
        %v1726 = vmax.f32 %v1522, %v1694
        %v1727 = vmax.f32 %v1523, %v1695
        %v1728 = vmax.f32 %v1524, %v1696
        %v1729 = vmax.f32 %v1525, %v1697
        %v1730 = vmax.f32 %v1526, %v1698
        %v1731 = vmax.f32 %v1527, %v1699
        %v1732 = vmax.f32 %v1528, %v1700
        %1765 = vrot.lane.b32.xlu0 %v1701, 96
        %v1766 = vpop.permute.xlu0 %1765
        %1767 = vrot.lane.b32.xlu0 %v1702, 96
        %v1768 = vpop.permute.xlu0 %1767
        %1769 = vrot.lane.b32.xlu0 %v1703, 96
        %v1770 = vpop.permute.xlu0 %1769
        %1771 = vrot.lane.b32.xlu0 %v1704, 96
        %v1772 = vpop.permute.xlu0 %1771
        %1773 = vrot.lane.b32.xlu0 %v1705, 96
        %v1774 = vpop.permute.xlu0 %1773
        %1775 = vrot.lane.b32.xlu0 %v1706, 96
        %v1776 = vpop.permute.xlu0 %1775
        %1777 = vrot.lane.b32.xlu0 %v1707, 96
        %v1778 = vpop.permute.xlu0 %1777
        %1779 = vrot.lane.b32.xlu0 %v1708, 96
        %v1780 = vpop.permute.xlu0 %1779
        %1781 = vrot.lane.b32.xlu0 %v1709, 96
        %v1782 = vpop.permute.xlu0 %1781
        %1783 = vrot.lane.b32.xlu0 %v1710, 96
        %v1784 = vpop.permute.xlu0 %1783
        %1785 = vrot.lane.b32.xlu0 %v1711, 96
        %v1786 = vpop.permute.xlu0 %1785
        %1787 = vrot.lane.b32.xlu0 %v1712, 96
        %v1788 = vpop.permute.xlu0 %1787
        %1789 = vrot.lane.b32.xlu0 %v1713, 96
        %v1790 = vpop.permute.xlu0 %1789
        %1791 = vrot.lane.b32.xlu0 %v1714, 96
        %v1792 = vpop.permute.xlu0 %1791
        %1793 = vrot.lane.b32.xlu0 %v1715, 96
        %v1794 = vpop.permute.xlu0 %1793
        %1795 = vrot.lane.b32.xlu0 %v1716, 96
        %v1796 = vpop.permute.xlu0 %1795
        %1797 = vrot.lane.b32.xlu0 %v1717, 96
        %v1798 = vpop.permute.xlu0 %1797
        %1799 = vrot.lane.b32.xlu0 %v1718, 96
        %v1800 = vpop.permute.xlu0 %1799
        %1801 = vrot.lane.b32.xlu0 %v1719, 96
        %v1802 = vpop.permute.xlu0 %1801
        %1803 = vrot.lane.b32.xlu0 %v1720, 96
        %v1804 = vpop.permute.xlu0 %1803
        %1805 = vrot.lane.b32.xlu0 %v1721, 96
        %v1806 = vpop.permute.xlu0 %1805
        %1807 = vrot.lane.b32.xlu0 %v1722, 96
        %v1808 = vpop.permute.xlu0 %1807
        %1809 = vrot.lane.b32.xlu0 %v1723, 96
        %v1810 = vpop.permute.xlu0 %1809
        %1811 = vrot.lane.b32.xlu0 %v1724, 96
        %v1812 = vpop.permute.xlu0 %1811
        %1813 = vrot.lane.b32.xlu0 %v1725, 96
        %v1814 = vpop.permute.xlu0 %1813
        %1815 = vrot.lane.b32.xlu0 %v1726, 96
        %v1816 = vpop.permute.xlu0 %1815
        %1817 = vrot.lane.b32.xlu0 %v1727, 96
        %v1818 = vpop.permute.xlu0 %1817
        %1819 = vrot.lane.b32.xlu0 %v1728, 96
        %v1820 = vpop.permute.xlu0 %1819
        %1821 = vrot.lane.b32.xlu0 %v1729, 96
        %v1822 = vpop.permute.xlu0 %1821
        %1823 = vrot.lane.b32.xlu0 %v1730, 96
        %v1824 = vpop.permute.xlu0 %1823
        %1825 = vrot.lane.b32.xlu0 %v1731, 96
        %v1826 = vpop.permute.xlu0 %1825
        %1827 = vrot.lane.b32.xlu0 %v1732, 96
        %v1828 = vpop.permute.xlu0 %1827
        %v1829 = vsel %vm623, %v1766, %v1768
        %v1830 = vsel %vm623, %v1770, %v1772
        %v1831 = vsel %vm623, %v1774, %v1776
        %v1832 = vsel %vm623, %v1778, %v1780
        %v1833 = vsel %vm623, %v1782, %v1784
        %v1834 = vsel %vm623, %v1786, %v1788
        %v1835 = vsel %vm623, %v1790, %v1792
        %v1836 = vsel %vm623, %v1794, %v1796
        %v1837 = vsel %vm623, %v1798, %v1800
        %v1838 = vsel %vm623, %v1802, %v1804
        %v1839 = vsel %vm623, %v1806, %v1808
        %v1840 = vsel %vm623, %v1810, %v1812
        %v1841 = vsel %vm623, %v1814, %v1816
        %v1842 = vsel %vm623, %v1818, %v1820
        %v1843 = vsel %vm623, %v1822, %v1824
        %v1844 = vsel %vm623, %v1826, %v1828
        %v1877 = vsel %vm623, %v1768, -inf
        %v1878 = vsel %vm623, %v1772, -inf
        %v1879 = vsel %vm623, %v1776, -inf
        %v1880 = vsel %vm623, %v1780, -inf
        %v1881 = vsel %vm623, %v1784, -inf
        %v1882 = vsel %vm623, %v1788, -inf
        %v1883 = vsel %vm623, %v1792, -inf
        %v1884 = vsel %vm623, %v1796, -inf
        %v1885 = vsel %vm623, %v1800, -inf
        %v1886 = vsel %vm623, %v1804, -inf
        %v1887 = vsel %vm623, %v1808, -inf
        %v1888 = vsel %vm623, %v1812, -inf
        %v1889 = vsel %vm623, %v1816, -inf
        %v1890 = vsel %vm623, %v1820, -inf
        %v1891 = vsel %vm623, %v1824, -inf
        %v1892 = vsel %vm623, %v1828, -inf
        %v1893 = vmax.f32 %v1701, %v1829
        %v1894 = vmax.f32 %v1702, %v1877
        %v1895 = vmax.f32 %v1703, %v1830
        %v1896 = vmax.f32 %v1704, %v1878
        %v1897 = vmax.f32 %v1705, %v1831
        %v1898 = vmax.f32 %v1706, %v1879
        %v1899 = vmax.f32 %v1707, %v1832
        %v1900 = vmax.f32 %v1708, %v1880
        %v1901 = vmax.f32 %v1709, %v1833
        %v1902 = vmax.f32 %v1710, %v1881
        %v1903 = vmax.f32 %v1711, %v1834
        %v1904 = vmax.f32 %v1712, %v1882
        %v1905 = vmax.f32 %v1713, %v1835
        %v1906 = vmax.f32 %v1714, %v1883
        %v1907 = vmax.f32 %v1715, %v1836
        %v1908 = vmax.f32 %v1716, %v1884
        %v1909 = vmax.f32 %v1717, %v1837
        %v1910 = vmax.f32 %v1718, %v1885
        %v1911 = vmax.f32 %v1719, %v1838
        %v1912 = vmax.f32 %v1720, %v1886
        %v1913 = vmax.f32 %v1721, %v1839
        %v1914 = vmax.f32 %v1722, %v1887
        %v1915 = vmax.f32 %v1723, %v1840
        %v1916 = vmax.f32 %v1724, %v1888
        %v1917 = vmax.f32 %v1725, %v1841
        %v1918 = vmax.f32 %v1726, %v1889
        %v1919 = vmax.f32 %v1727, %v1842
        %v1920 = vmax.f32 %v1728, %v1890
        %v1921 = vmax.f32 %v1729, %v1843
        %v1922 = vmax.f32 %v1730, %v1891
        %v1923 = vmax.f32 %v1731, %v1844
        %v1924 = vmax.f32 %v1732, %v1892
        %1925 = vrot.lane.b32.xlu0 %v1701, 32
        %v1926 = vpop.permute.xlu0 %1925
        %1927 = vrot.lane.b32.xlu0 %v1702, 32
        %v1928 = vpop.permute.xlu0 %1927
        %1929 = vrot.lane.b32.xlu0 %v1703, 32
        %v1930 = vpop.permute.xlu0 %1929
        %1931 = vrot.lane.b32.xlu0 %v1704, 32
        %v1932 = vpop.permute.xlu0 %1931
        %1933 = vrot.lane.b32.xlu0 %v1705, 32
        %v1934 = vpop.permute.xlu0 %1933
        %1935 = vrot.lane.b32.xlu0 %v1706, 32
        %v1936 = vpop.permute.xlu0 %1935
        %1937 = vrot.lane.b32.xlu0 %v1707, 32
        %v1938 = vpop.permute.xlu0 %1937
        %1939 = vrot.lane.b32.xlu0 %v1708, 32
        %v1940 = vpop.permute.xlu0 %1939
        %1941 = vrot.lane.b32.xlu0 %v1709, 32
        %v1942 = vpop.permute.xlu0 %1941
        %1943 = vrot.lane.b32.xlu0 %v1710, 32
        %v1944 = vpop.permute.xlu0 %1943
        %1945 = vrot.lane.b32.xlu0 %v1711, 32
        %v1946 = vpop.permute.xlu0 %1945
        %1947 = vrot.lane.b32.xlu0 %v1712, 32
        %v1948 = vpop.permute.xlu0 %1947
        %1949 = vrot.lane.b32.xlu0 %v1713, 32
        %v1950 = vpop.permute.xlu0 %1949
        %1951 = vrot.lane.b32.xlu0 %v1714, 32
        %v1952 = vpop.permute.xlu0 %1951
        %1953 = vrot.lane.b32.xlu0 %v1715, 32
        %v1954 = vpop.permute.xlu0 %1953
        %1955 = vrot.lane.b32.xlu0 %v1716, 32
        %v1956 = vpop.permute.xlu0 %1955
        %1957 = vrot.lane.b32.xlu0 %v1717, 32
        %v1958 = vpop.permute.xlu0 %1957
        %1959 = vrot.lane.b32.xlu0 %v1718, 32
        %v1960 = vpop.permute.xlu0 %1959
        %1961 = vrot.lane.b32.xlu0 %v1719, 32
        %v1962 = vpop.permute.xlu0 %1961
        %1963 = vrot.lane.b32.xlu0 %v1720, 32
        %v1964 = vpop.permute.xlu0 %1963
        %1965 = vrot.lane.b32.xlu0 %v1721, 32
        %v1966 = vpop.permute.xlu0 %1965
        %1967 = vrot.lane.b32.xlu0 %v1722, 32
        %v1968 = vpop.permute.xlu0 %1967
        %1969 = vrot.lane.b32.xlu0 %v1723, 32
        %v1970 = vpop.permute.xlu0 %1969
        %1971 = vrot.lane.b32.xlu0 %v1724, 32
        %v1972 = vpop.permute.xlu0 %1971
        %1973 = vrot.lane.b32.xlu0 %v1725, 32
        %v1974 = vpop.permute.xlu0 %1973
        %1975 = vrot.lane.b32.xlu0 %v1726, 32
        %v1976 = vpop.permute.xlu0 %1975
        %1977 = vrot.lane.b32.xlu0 %v1727, 32
        %v1978 = vpop.permute.xlu0 %1977
        %1979 = vrot.lane.b32.xlu0 %v1728, 32
        %v1980 = vpop.permute.xlu0 %1979
        %1981 = vrot.lane.b32.xlu0 %v1729, 32
        %v1982 = vpop.permute.xlu0 %1981
        %1983 = vrot.lane.b32.xlu0 %v1730, 32
        %v1984 = vpop.permute.xlu0 %1983
        %1985 = vrot.lane.b32.xlu0 %v1731, 32
        %v1986 = vpop.permute.xlu0 %1985
        %1987 = vrot.lane.b32.xlu0 %v1732, 32
        %v1988 = vpop.permute.xlu0 %1987
        %v1989 = vsel %vm784, %v1926, %v1928
        %v1990 = vsel %vm784, %v1930, %v1932
        %v1991 = vsel %vm784, %v1934, %v1936
        %v1992 = vsel %vm784, %v1938, %v1940
        %v1993 = vsel %vm784, %v1942, %v1944
        %v1994 = vsel %vm784, %v1946, %v1948
        %v1995 = vsel %vm784, %v1950, %v1952
        %v1996 = vsel %vm784, %v1954, %v1956
        %v1997 = vsel %vm784, %v1958, %v1960
        %v1998 = vsel %vm784, %v1962, %v1964
        %v1999 = vsel %vm784, %v1966, %v1968
        %v2000 = vsel %vm784, %v1970, %v1972
        %v2001 = vsel %vm784, %v1974, %v1976
        %v2002 = vsel %vm784, %v1978, %v1980
        %v2003 = vsel %vm784, %v1982, %v1984
        %v2004 = vsel %vm784, %v1986, %v1988
        %v2037 = vsel %vm784, -inf, %v1926
        %v2038 = vsel %vm784, -inf, %v1930
        %v2039 = vsel %vm784, -inf, %v1934
        %v2040 = vsel %vm784, -inf, %v1938
        %v2041 = vsel %vm784, -inf, %v1942
        %v2042 = vsel %vm784, -inf, %v1946
        %v2043 = vsel %vm784, -inf, %v1950
        %v2044 = vsel %vm784, -inf, %v1954
        %v2045 = vsel %vm784, -inf, %v1958
        %v2046 = vsel %vm784, -inf, %v1962
        %v2047 = vsel %vm784, -inf, %v1966
        %v2048 = vsel %vm784, -inf, %v1970
        %v2049 = vsel %vm784, -inf, %v1974
        %v2050 = vsel %vm784, -inf, %v1978
        %v2051 = vsel %vm784, -inf, %v1982
        %v2052 = vsel %vm784, -inf, %v1986
        %v2053 = vmax.f32 %v1893, %v2037
        %v2054 = vmax.f32 %v1894, %v1989
        %v2055 = vmax.f32 %v1895, %v2038
        %v2056 = vmax.f32 %v1896, %v1990
        %v2057 = vmax.f32 %v1897, %v2039
        %v2058 = vmax.f32 %v1898, %v1991
        %v2059 = vmax.f32 %v1899, %v2040
        %v2060 = vmax.f32 %v1900, %v1992
        %v2061 = vmax.f32 %v1901, %v2041
        %v2062 = vmax.f32 %v1902, %v1993
        %v2063 = vmax.f32 %v1903, %v2042
        %v2064 = vmax.f32 %v1904, %v1994
        %v2065 = vmax.f32 %v1905, %v2043
        %v2066 = vmax.f32 %v1906, %v1995
        %v2067 = vmax.f32 %v1907, %v2044
        %v2068 = vmax.f32 %v1908, %v1996
        %v2069 = vmax.f32 %v1909, %v2045
        %v2070 = vmax.f32 %v1910, %v1997
        %v2071 = vmax.f32 %v1911, %v2046
        %v2072 = vmax.f32 %v1912, %v1998
        %v2073 = vmax.f32 %v1913, %v2047
        %v2074 = vmax.f32 %v1914, %v1999
        %v2075 = vmax.f32 %v1915, %v2048
        %v2076 = vmax.f32 %v1916, %v2000
        %v2077 = vmax.f32 %v1917, %v2049
        %v2078 = vmax.f32 %v1918, %v2001
        %v2079 = vmax.f32 %v1919, %v2050
        %v2080 = vmax.f32 %v1920, %v2002
        %v2081 = vmax.f32 %v1921, %v2051
        %v2082 = vmax.f32 %v1922, %v2003
        %v2083 = vmax.f32 %v1923, %v2052
        %v2084 = vmax.f32 %v1924, %v2004
        %2117 = vrot.lane.b32.xlu0 %v2053, 126
        %v2118 = vpop.permute.xlu0 %2117
        %2119 = vrot.lane.b32.xlu0 %v2054, 126
        %v2120 = vpop.permute.xlu0 %2119
        %2121 = vrot.lane.b32.xlu0 %v2055, 126
        %v2122 = vpop.permute.xlu0 %2121
        %2123 = vrot.lane.b32.xlu0 %v2056, 126
        %v2124 = vpop.permute.xlu0 %2123
        %2125 = vrot.lane.b32.xlu0 %v2057, 126
        %v2126 = vpop.permute.xlu0 %2125
        %2127 = vrot.lane.b32.xlu0 %v2058, 126
        %v2128 = vpop.permute.xlu0 %2127
        %2129 = vrot.lane.b32.xlu0 %v2059, 126
        %v2130 = vpop.permute.xlu0 %2129
        %2131 = vrot.lane.b32.xlu0 %v2060, 126
        %v2132 = vpop.permute.xlu0 %2131
        %2133 = vrot.lane.b32.xlu0 %v2061, 126
        %v2134 = vpop.permute.xlu0 %2133
        %2135 = vrot.lane.b32.xlu0 %v2062, 126
        %v2136 = vpop.permute.xlu0 %2135
        %2137 = vrot.lane.b32.xlu0 %v2063, 126
        %v2138 = vpop.permute.xlu0 %2137
        %2139 = vrot.lane.b32.xlu0 %v2064, 126
        %v2140 = vpop.permute.xlu0 %2139
        %2141 = vrot.lane.b32.xlu0 %v2065, 126
        %v2142 = vpop.permute.xlu0 %2141
        %2143 = vrot.lane.b32.xlu0 %v2066, 126
        %v2144 = vpop.permute.xlu0 %2143
        %2145 = vrot.lane.b32.xlu0 %v2067, 126
        %v2146 = vpop.permute.xlu0 %2145
        %2147 = vrot.lane.b32.xlu0 %v2068, 126
        %v2148 = vpop.permute.xlu0 %2147
        %2149 = vrot.lane.b32.xlu0 %v2069, 126
        %v2150 = vpop.permute.xlu0 %2149
        %2151 = vrot.lane.b32.xlu0 %v2070, 126
        %v2152 = vpop.permute.xlu0 %2151
        %2153 = vrot.lane.b32.xlu0 %v2071, 126
        %v2154 = vpop.permute.xlu0 %2153
        %2155 = vrot.lane.b32.xlu0 %v2072, 126
        %v2156 = vpop.permute.xlu0 %2155
        %2157 = vrot.lane.b32.xlu0 %v2073, 126
        %v2158 = vpop.permute.xlu0 %2157
        %2159 = vrot.lane.b32.xlu0 %v2074, 126
        %v2160 = vpop.permute.xlu0 %2159
        %2161 = vrot.lane.b32.xlu0 %v2075, 126
        %v2162 = vpop.permute.xlu0 %2161
        %2163 = vrot.lane.b32.xlu0 %v2076, 126
        %v2164 = vpop.permute.xlu0 %2163
        %2165 = vrot.lane.b32.xlu0 %v2077, 126
        %v2166 = vpop.permute.xlu0 %2165
        %2167 = vrot.lane.b32.xlu0 %v2078, 126
        %v2168 = vpop.permute.xlu0 %2167
        %2169 = vrot.lane.b32.xlu0 %v2079, 126
        %v2170 = vpop.permute.xlu0 %2169
        %2171 = vrot.lane.b32.xlu0 %v2080, 126
        %v2172 = vpop.permute.xlu0 %2171
        %2173 = vrot.lane.b32.xlu0 %v2081, 126
        %v2174 = vpop.permute.xlu0 %2173
        %2175 = vrot.lane.b32.xlu0 %v2082, 126
        %v2176 = vpop.permute.xlu0 %2175
        %2177 = vrot.lane.b32.xlu0 %v2083, 126
        %v2178 = vpop.permute.xlu0 %2177
        %2179 = vrot.lane.b32.xlu0 %v2084, 126
        %v2180 = vpop.permute.xlu0 %2179
        %v2181 = vsel %vm1389, %v2118, %v2120
        %v2182 = vsel %vm1389, %v2122, %v2124
        %v2183 = vsel %vm1389, %v2126, %v2128
        %v2184 = vsel %vm1389, %v2130, %v2132
        %v2185 = vsel %vm1389, %v2134, %v2136
        %v2186 = vsel %vm1389, %v2138, %v2140
        %v2187 = vsel %vm1389, %v2142, %v2144
        %v2188 = vsel %vm1389, %v2146, %v2148
        %v2189 = vsel %vm1389, %v2150, %v2152
        %v2190 = vsel %vm1389, %v2154, %v2156
        %v2191 = vsel %vm1389, %v2158, %v2160
        %v2192 = vsel %vm1389, %v2162, %v2164
        %v2193 = vsel %vm1389, %v2166, %v2168
        %v2194 = vsel %vm1389, %v2170, %v2172
        %v2195 = vsel %vm1389, %v2174, %v2176
        %v2196 = vsel %vm1389, %v2178, %v2180
        %v2229 = vsel %vm1389, %v2120, -inf
        %v2230 = vsel %vm1389, %v2124, -inf
        %v2231 = vsel %vm1389, %v2128, -inf
        %v2232 = vsel %vm1389, %v2132, -inf
        %v2233 = vsel %vm1389, %v2136, -inf
        %v2234 = vsel %vm1389, %v2140, -inf
        %v2235 = vsel %vm1389, %v2144, -inf
        %v2236 = vsel %vm1389, %v2148, -inf
        %v2237 = vsel %vm1389, %v2152, -inf
        %v2238 = vsel %vm1389, %v2156, -inf
        %v2239 = vsel %vm1389, %v2160, -inf
        %v2240 = vsel %vm1389, %v2164, -inf
        %v2241 = vsel %vm1389, %v2168, -inf
        %v2242 = vsel %vm1389, %v2172, -inf
        %v2243 = vsel %vm1389, %v2176, -inf
        %v2244 = vsel %vm1389, %v2180, -inf
        %v2245 = vsel %vm1463, %v2181, -inf
        %v2246 = vsel %vm1464, %v2229, -inf
        %v2247 = vsel %vm1463, %v2182, -inf
        %v2248 = vsel %vm1464, %v2230, -inf
        %v2249 = vsel %vm1463, %v2183, -inf
        %v2250 = vsel %vm1464, %v2231, -inf
        %v2251 = vsel %vm1463, %v2184, -inf
        %v2252 = vsel %vm1464, %v2232, -inf
        %v2253 = vsel %vm1463, %v2185, -inf
        %v2254 = vsel %vm1464, %v2233, -inf
        %v2255 = vsel %vm1463, %v2186, -inf
        %v2256 = vsel %vm1464, %v2234, -inf
        %v2257 = vsel %vm1463, %v2187, -inf
        %v2258 = vsel %vm1464, %v2235, -inf
        %v2259 = vsel %vm1463, %v2188, -inf
        %v2260 = vsel %vm1464, %v2236, -inf
        %v2261 = vsel %vm1463, %v2189, -inf
        %v2262 = vsel %vm1464, %v2237, -inf
        %v2263 = vsel %vm1463, %v2190, -inf
        %v2264 = vsel %vm1464, %v2238, -inf
        %v2265 = vsel %vm1463, %v2191, -inf
        %v2266 = vsel %vm1464, %v2239, -inf
        %v2267 = vsel %vm1463, %v2192, -inf
        %v2268 = vsel %vm1464, %v2240, -inf
        %v2269 = vsel %vm1463, %v2193, -inf
        %v2270 = vsel %vm1464, %v2241, -inf
        %v2271 = vsel %vm1463, %v2194, -inf
        %v2272 = vsel %vm1464, %v2242, -inf
        %v2273 = vsel %vm1463, %v2195, -inf
        %v2274 = vsel %vm1464, %v2243, -inf
        %v2275 = vsel %vm1463, %v2196, -inf
        %v2276 = vsel %vm1464, %v2244, -inf
        %v2277 = vmax.f32 %v2053, %v2245
        %v2278 = vmax.f32 %v2054, %v2246
        %v2279 = vmax.f32 %v2055, %v2247
        %v2280 = vmax.f32 %v2056, %v2248
        %v2281 = vmax.f32 %v2057, %v2249
        %v2282 = vmax.f32 %v2058, %v2250
        %v2283 = vmax.f32 %v2059, %v2251
        %v2284 = vmax.f32 %v2060, %v2252
        %v2285 = vmax.f32 %v2061, %v2253
        %v2286 = vmax.f32 %v2062, %v2254
        %v2287 = vmax.f32 %v2063, %v2255
        %v2288 = vmax.f32 %v2064, %v2256
        %v2289 = vmax.f32 %v2065, %v2257
        %v2290 = vmax.f32 %v2066, %v2258
        %v2291 = vmax.f32 %v2067, %v2259
        %v2292 = vmax.f32 %v2068, %v2260
        %v2293 = vmax.f32 %v2069, %v2261
        %v2294 = vmax.f32 %v2070, %v2262
        %v2295 = vmax.f32 %v2071, %v2263
        %v2296 = vmax.f32 %v2072, %v2264
        %v2297 = vmax.f32 %v2073, %v2265
        %v2298 = vmax.f32 %v2074, %v2266
        %v2299 = vmax.f32 %v2075, %v2267
        %v2300 = vmax.f32 %v2076, %v2268
        %v2301 = vmax.f32 %v2077, %v2269
        %v2302 = vmax.f32 %v2078, %v2270
        %v2303 = vmax.f32 %v2079, %v2271
        %v2304 = vmax.f32 %v2080, %v2272
        %v2305 = vmax.f32 %v2081, %v2273
        %v2306 = vmax.f32 %v2082, %v2274
        %v2307 = vmax.f32 %v2083, %v2275
        %v2308 = vmax.f32 %v2084, %v2276
        %2309 = vrot.lane.b32.xlu0 %v2053, 2
        %v2310 = vpop.permute.xlu0 %2309
        %2311 = vrot.lane.b32.xlu0 %v2054, 2
        %v2312 = vpop.permute.xlu0 %2311
        %2313 = vrot.lane.b32.xlu0 %v2055, 2
        %v2314 = vpop.permute.xlu0 %2313
        %2315 = vrot.lane.b32.xlu0 %v2056, 2
        %v2316 = vpop.permute.xlu0 %2315
        %2317 = vrot.lane.b32.xlu0 %v2057, 2
        %v2318 = vpop.permute.xlu0 %2317
        %2319 = vrot.lane.b32.xlu0 %v2058, 2
        %v2320 = vpop.permute.xlu0 %2319
        %2321 = vrot.lane.b32.xlu0 %v2059, 2
        %v2322 = vpop.permute.xlu0 %2321
        %2323 = vrot.lane.b32.xlu0 %v2060, 2
        %v2324 = vpop.permute.xlu0 %2323
        %2325 = vrot.lane.b32.xlu0 %v2061, 2
        %v2326 = vpop.permute.xlu0 %2325
        %2327 = vrot.lane.b32.xlu0 %v2062, 2
        %v2328 = vpop.permute.xlu0 %2327
        %2329 = vrot.lane.b32.xlu0 %v2063, 2
        %v2330 = vpop.permute.xlu0 %2329
        %2331 = vrot.lane.b32.xlu0 %v2064, 2
        %v2332 = vpop.permute.xlu0 %2331
        %2333 = vrot.lane.b32.xlu0 %v2065, 2
        %v2334 = vpop.permute.xlu0 %2333
        %2335 = vrot.lane.b32.xlu0 %v2066, 2
        %v2336 = vpop.permute.xlu0 %2335
        %2337 = vrot.lane.b32.xlu0 %v2067, 2
        %v2338 = vpop.permute.xlu0 %2337
        %2339 = vrot.lane.b32.xlu0 %v2068, 2
        %v2340 = vpop.permute.xlu0 %2339
        %2341 = vrot.lane.b32.xlu0 %v2069, 2
        %v2342 = vpop.permute.xlu0 %2341
        %2343 = vrot.lane.b32.xlu0 %v2070, 2
        %v2344 = vpop.permute.xlu0 %2343
        %2345 = vrot.lane.b32.xlu0 %v2071, 2
        %v2346 = vpop.permute.xlu0 %2345
        %2347 = vrot.lane.b32.xlu0 %v2072, 2
        %v2348 = vpop.permute.xlu0 %2347
        %2349 = vrot.lane.b32.xlu0 %v2073, 2
        %v2350 = vpop.permute.xlu0 %2349
        %2351 = vrot.lane.b32.xlu0 %v2074, 2
        %v2352 = vpop.permute.xlu0 %2351
        %2353 = vrot.lane.b32.xlu0 %v2075, 2
        %v2354 = vpop.permute.xlu0 %2353
        %2355 = vrot.lane.b32.xlu0 %v2076, 2
        %v2356 = vpop.permute.xlu0 %2355
        %2357 = vrot.lane.b32.xlu0 %v2077, 2
        %v2358 = vpop.permute.xlu0 %2357
        %2359 = vrot.lane.b32.xlu0 %v2078, 2
        %v2360 = vpop.permute.xlu0 %2359
        %2361 = vrot.lane.b32.xlu0 %v2079, 2
        %v2362 = vpop.permute.xlu0 %2361
        %2363 = vrot.lane.b32.xlu0 %v2080, 2
        %v2364 = vpop.permute.xlu0 %2363
        %2365 = vrot.lane.b32.xlu0 %v2081, 2
        %v2366 = vpop.permute.xlu0 %2365
        %2367 = vrot.lane.b32.xlu0 %v2082, 2
        %v2368 = vpop.permute.xlu0 %2367
        %2369 = vrot.lane.b32.xlu0 %v2083, 2
        %v2370 = vpop.permute.xlu0 %2369
        %2371 = vrot.lane.b32.xlu0 %v2084, 2
        %v2372 = vpop.permute.xlu0 %2371
        %v2373 = vsel %vm1593, %v2310, %v2312
        %v2374 = vsel %vm1593, %v2314, %v2316
        %v2375 = vsel %vm1593, %v2318, %v2320
        %v2376 = vsel %vm1593, %v2322, %v2324
        %v2377 = vsel %vm1593, %v2326, %v2328
        %v2378 = vsel %vm1593, %v2330, %v2332
        %v2379 = vsel %vm1593, %v2334, %v2336
        %v2380 = vsel %vm1593, %v2338, %v2340
        %v2381 = vsel %vm1593, %v2342, %v2344
        %v2382 = vsel %vm1593, %v2346, %v2348
        %v2383 = vsel %vm1593, %v2350, %v2352
        %v2384 = vsel %vm1593, %v2354, %v2356
        %v2385 = vsel %vm1593, %v2358, %v2360
        %v2386 = vsel %vm1593, %v2362, %v2364
        %v2387 = vsel %vm1593, %v2366, %v2368
        %v2388 = vsel %vm1593, %v2370, %v2372
        %v2421 = vsel %vm1593, -inf, %v2310
        %v2422 = vsel %vm1593, -inf, %v2314
        %v2423 = vsel %vm1593, -inf, %v2318
        %v2424 = vsel %vm1593, -inf, %v2322
        %v2425 = vsel %vm1593, -inf, %v2326
        %v2426 = vsel %vm1593, -inf, %v2330
        %v2427 = vsel %vm1593, -inf, %v2334
        %v2428 = vsel %vm1593, -inf, %v2338
        %v2429 = vsel %vm1593, -inf, %v2342
        %v2430 = vsel %vm1593, -inf, %v2346
        %v2431 = vsel %vm1593, -inf, %v2350
        %v2432 = vsel %vm1593, -inf, %v2354
        %v2433 = vsel %vm1593, -inf, %v2358
        %v2434 = vsel %vm1593, -inf, %v2362
        %v2435 = vsel %vm1593, -inf, %v2366
        %v2436 = vsel %vm1593, -inf, %v2370
        %v2437 = vsel %vm1667, %v2421, -inf
        %v2438 = vsel %vm1668, %v2373, -inf
        %v2439 = vsel %vm1667, %v2422, -inf
        %v2440 = vsel %vm1668, %v2374, -inf
        %v2441 = vsel %vm1667, %v2423, -inf
        %v2442 = vsel %vm1668, %v2375, -inf
        %v2443 = vsel %vm1667, %v2424, -inf
        %v2444 = vsel %vm1668, %v2376, -inf
        %v2445 = vsel %vm1667, %v2425, -inf
        %v2446 = vsel %vm1668, %v2377, -inf
        %v2447 = vsel %vm1667, %v2426, -inf
        %v2448 = vsel %vm1668, %v2378, -inf
        %v2449 = vsel %vm1667, %v2427, -inf
        %v2450 = vsel %vm1668, %v2379, -inf
        %v2451 = vsel %vm1667, %v2428, -inf
        %v2452 = vsel %vm1668, %v2380, -inf
        %v2453 = vsel %vm1667, %v2429, -inf
        %v2454 = vsel %vm1668, %v2381, -inf
        %v2455 = vsel %vm1667, %v2430, -inf
        %v2456 = vsel %vm1668, %v2382, -inf
        %v2457 = vsel %vm1667, %v2431, -inf
        %v2458 = vsel %vm1668, %v2383, -inf
        %v2459 = vsel %vm1667, %v2432, -inf
        %v2460 = vsel %vm1668, %v2384, -inf
        %v2461 = vsel %vm1667, %v2433, -inf
        %v2462 = vsel %vm1668, %v2385, -inf
        %v2463 = vsel %vm1667, %v2434, -inf
        %v2464 = vsel %vm1668, %v2386, -inf
        %v2465 = vsel %vm1667, %v2435, -inf
        %v2466 = vsel %vm1668, %v2387, -inf
        %v2467 = vsel %vm1667, %v2436, -inf
        %v2468 = vsel %vm1668, %v2388, -inf
        %v2469 = vmax.f32 %v2277, %v2437
        %v2470 = vmax.f32 %v2278, %v2438
        %v2471 = vmax.f32 %v2279, %v2439
        %v2472 = vmax.f32 %v2280, %v2440
        %v2473 = vmax.f32 %v2281, %v2441
        %v2474 = vmax.f32 %v2282, %v2442
        %v2475 = vmax.f32 %v2283, %v2443
        %v2476 = vmax.f32 %v2284, %v2444
        %v2477 = vmax.f32 %v2285, %v2445
        %v2478 = vmax.f32 %v2286, %v2446
        %v2479 = vmax.f32 %v2287, %v2447
        %v2480 = vmax.f32 %v2288, %v2448
        %v2481 = vmax.f32 %v2289, %v2449
        %v2482 = vmax.f32 %v2290, %v2450
        %v2483 = vmax.f32 %v2291, %v2451
        %v2484 = vmax.f32 %v2292, %v2452
        %v2485 = vmax.f32 %v2293, %v2453
        %v2486 = vmax.f32 %v2294, %v2454
        %v2487 = vmax.f32 %v2295, %v2455
        %v2488 = vmax.f32 %v2296, %v2456
        %v2489 = vmax.f32 %v2297, %v2457
        %v2490 = vmax.f32 %v2298, %v2458
        %v2491 = vmax.f32 %v2299, %v2459
        %v2492 = vmax.f32 %v2300, %v2460
        %v2493 = vmax.f32 %v2301, %v2461
        %v2494 = vmax.f32 %v2302, %v2462
        %v2495 = vmax.f32 %v2303, %v2463
        %v2496 = vmax.f32 %v2304, %v2464
        %v2497 = vmax.f32 %v2305, %v2465
        %v2498 = vmax.f32 %v2306, %v2466
        %v2499 = vmax.f32 %v2307, %v2467
        %v2500 = vmax.f32 %v2308, %v2468
        %2533 = vrot.lane.b32.xlu0 %v2469, 96
        %v2534 = vpop.permute.xlu0 %2533
        %2535 = vrot.lane.b32.xlu0 %v2470, 96
        %v2536 = vpop.permute.xlu0 %2535
        %2537 = vrot.lane.b32.xlu0 %v2471, 96
        %v2538 = vpop.permute.xlu0 %2537
        %2539 = vrot.lane.b32.xlu0 %v2472, 96
        %v2540 = vpop.permute.xlu0 %2539
        %2541 = vrot.lane.b32.xlu0 %v2473, 96
        %v2542 = vpop.permute.xlu0 %2541
        %2543 = vrot.lane.b32.xlu0 %v2474, 96
        %v2544 = vpop.permute.xlu0 %2543
        %2545 = vrot.lane.b32.xlu0 %v2475, 96
        %v2546 = vpop.permute.xlu0 %2545
        %2547 = vrot.lane.b32.xlu0 %v2476, 96
        %v2548 = vpop.permute.xlu0 %2547
        %2549 = vrot.lane.b32.xlu0 %v2477, 96
        %v2550 = vpop.permute.xlu0 %2549
        %2551 = vrot.lane.b32.xlu0 %v2478, 96
        %v2552 = vpop.permute.xlu0 %2551
        %2553 = vrot.lane.b32.xlu0 %v2479, 96
        %v2554 = vpop.permute.xlu0 %2553
        %2555 = vrot.lane.b32.xlu0 %v2480, 96
        %v2556 = vpop.permute.xlu0 %2555
        %2557 = vrot.lane.b32.xlu0 %v2481, 96
        %v2558 = vpop.permute.xlu0 %2557
        %2559 = vrot.lane.b32.xlu0 %v2482, 96
        %v2560 = vpop.permute.xlu0 %2559
        %2561 = vrot.lane.b32.xlu0 %v2483, 96
        %v2562 = vpop.permute.xlu0 %2561
        %2563 = vrot.lane.b32.xlu0 %v2484, 96
        %v2564 = vpop.permute.xlu0 %2563
        %2565 = vrot.lane.b32.xlu0 %v2485, 96
        %v2566 = vpop.permute.xlu0 %2565
        %2567 = vrot.lane.b32.xlu0 %v2486, 96
        %v2568 = vpop.permute.xlu0 %2567
        %2569 = vrot.lane.b32.xlu0 %v2487, 96
        %v2570 = vpop.permute.xlu0 %2569
        %2571 = vrot.lane.b32.xlu0 %v2488, 96
        %v2572 = vpop.permute.xlu0 %2571
        %2573 = vrot.lane.b32.xlu0 %v2489, 96
        %v2574 = vpop.permute.xlu0 %2573
        %2575 = vrot.lane.b32.xlu0 %v2490, 96
        %v2576 = vpop.permute.xlu0 %2575
        %2577 = vrot.lane.b32.xlu0 %v2491, 96
        %v2578 = vpop.permute.xlu0 %2577
        %2579 = vrot.lane.b32.xlu0 %v2492, 96
        %v2580 = vpop.permute.xlu0 %2579
        %2581 = vrot.lane.b32.xlu0 %v2493, 96
        %v2582 = vpop.permute.xlu0 %2581
        %2583 = vrot.lane.b32.xlu0 %v2494, 96
        %v2584 = vpop.permute.xlu0 %2583
        %2585 = vrot.lane.b32.xlu0 %v2495, 96
        %v2586 = vpop.permute.xlu0 %2585
        %2587 = vrot.lane.b32.xlu0 %v2496, 96
        %v2588 = vpop.permute.xlu0 %2587
        %2589 = vrot.lane.b32.xlu0 %v2497, 96
        %v2590 = vpop.permute.xlu0 %2589
        %2591 = vrot.lane.b32.xlu0 %v2498, 96
        %v2592 = vpop.permute.xlu0 %2591
        %2593 = vrot.lane.b32.xlu0 %v2499, 96
        %v2594 = vpop.permute.xlu0 %2593
        %2595 = vrot.lane.b32.xlu0 %v2500, 96
        %v2596 = vpop.permute.xlu0 %2595
        %v2597 = vsel %vm623, %v2534, %v2536
        %v2598 = vsel %vm623, %v2538, %v2540
        %v2599 = vsel %vm623, %v2542, %v2544
        %v2600 = vsel %vm623, %v2546, %v2548
        %v2601 = vsel %vm623, %v2550, %v2552
        %v2602 = vsel %vm623, %v2554, %v2556
        %v2603 = vsel %vm623, %v2558, %v2560
        %v2604 = vsel %vm623, %v2562, %v2564
        %v2605 = vsel %vm623, %v2566, %v2568
        %v2606 = vsel %vm623, %v2570, %v2572
        %v2607 = vsel %vm623, %v2574, %v2576
        %v2608 = vsel %vm623, %v2578, %v2580
        %v2609 = vsel %vm623, %v2582, %v2584
        %v2610 = vsel %vm623, %v2586, %v2588
        %v2611 = vsel %vm623, %v2590, %v2592
        %v2612 = vsel %vm623, %v2594, %v2596
        %v2645 = vsel %vm623, %v2536, -inf
        %v2646 = vsel %vm623, %v2540, -inf
        %v2647 = vsel %vm623, %v2544, -inf
        %v2648 = vsel %vm623, %v2548, -inf
        %v2649 = vsel %vm623, %v2552, -inf
        %v2650 = vsel %vm623, %v2556, -inf
        %v2651 = vsel %vm623, %v2560, -inf
        %v2652 = vsel %vm623, %v2564, -inf
        %v2653 = vsel %vm623, %v2568, -inf
        %v2654 = vsel %vm623, %v2572, -inf
        %v2655 = vsel %vm623, %v2576, -inf
        %v2656 = vsel %vm623, %v2580, -inf
        %v2657 = vsel %vm623, %v2584, -inf
        %v2658 = vsel %vm623, %v2588, -inf
        %v2659 = vsel %vm623, %v2592, -inf
        %v2660 = vsel %vm623, %v2596, -inf
        %v2661 = vmax.f32 %v2469, %v2597
        %v2662 = vmax.f32 %v2470, %v2645
        %v2663 = vmax.f32 %v2471, %v2598
        %v2664 = vmax.f32 %v2472, %v2646
        %v2665 = vmax.f32 %v2473, %v2599
        %v2666 = vmax.f32 %v2474, %v2647
        %v2667 = vmax.f32 %v2475, %v2600
        %v2668 = vmax.f32 %v2476, %v2648
        %v2669 = vmax.f32 %v2477, %v2601
        %v2670 = vmax.f32 %v2478, %v2649
        %v2671 = vmax.f32 %v2479, %v2602
        %v2672 = vmax.f32 %v2480, %v2650
        %v2673 = vmax.f32 %v2481, %v2603
        %v2674 = vmax.f32 %v2482, %v2651
        %v2675 = vmax.f32 %v2483, %v2604
        %v2676 = vmax.f32 %v2484, %v2652
        %v2677 = vmax.f32 %v2485, %v2605
        %v2678 = vmax.f32 %v2486, %v2653
        %v2679 = vmax.f32 %v2487, %v2606
        %v2680 = vmax.f32 %v2488, %v2654
        %v2681 = vmax.f32 %v2489, %v2607
        %v2682 = vmax.f32 %v2490, %v2655
        %v2683 = vmax.f32 %v2491, %v2608
        %v2684 = vmax.f32 %v2492, %v2656
        %v2685 = vmax.f32 %v2493, %v2609
        %v2686 = vmax.f32 %v2494, %v2657
        %v2687 = vmax.f32 %v2495, %v2610
        %v2688 = vmax.f32 %v2496, %v2658
        %v2689 = vmax.f32 %v2497, %v2611
        %v2690 = vmax.f32 %v2498, %v2659
        %v2691 = vmax.f32 %v2499, %v2612
        %v2692 = vmax.f32 %v2500, %v2660
        %2693 = vrot.lane.b32.xlu0 %v2469, 32
        %v2694 = vpop.permute.xlu0 %2693
        %2695 = vrot.lane.b32.xlu0 %v2470, 32
        %v2696 = vpop.permute.xlu0 %2695
        %2697 = vrot.lane.b32.xlu0 %v2471, 32
        %v2698 = vpop.permute.xlu0 %2697
        %2699 = vrot.lane.b32.xlu0 %v2472, 32
        %v2700 = vpop.permute.xlu0 %2699
        %2701 = vrot.lane.b32.xlu0 %v2473, 32
        %v2702 = vpop.permute.xlu0 %2701
        %2703 = vrot.lane.b32.xlu0 %v2474, 32
        %v2704 = vpop.permute.xlu0 %2703
        %2705 = vrot.lane.b32.xlu0 %v2475, 32
        %v2706 = vpop.permute.xlu0 %2705
        %2707 = vrot.lane.b32.xlu0 %v2476, 32
        %v2708 = vpop.permute.xlu0 %2707
        %2709 = vrot.lane.b32.xlu0 %v2477, 32
        %v2710 = vpop.permute.xlu0 %2709
        %2711 = vrot.lane.b32.xlu0 %v2478, 32
        %v2712 = vpop.permute.xlu0 %2711
        %2713 = vrot.lane.b32.xlu0 %v2479, 32
        %v2714 = vpop.permute.xlu0 %2713
        %2715 = vrot.lane.b32.xlu0 %v2480, 32
        %v2716 = vpop.permute.xlu0 %2715
        %2717 = vrot.lane.b32.xlu0 %v2481, 32
        %v2718 = vpop.permute.xlu0 %2717
        %2719 = vrot.lane.b32.xlu0 %v2482, 32
        %v2720 = vpop.permute.xlu0 %2719
        %2721 = vrot.lane.b32.xlu0 %v2483, 32
        %v2722 = vpop.permute.xlu0 %2721
        %2723 = vrot.lane.b32.xlu0 %v2484, 32
        %v2724 = vpop.permute.xlu0 %2723
        %2725 = vrot.lane.b32.xlu0 %v2485, 32
        %v2726 = vpop.permute.xlu0 %2725
        %2727 = vrot.lane.b32.xlu0 %v2486, 32
        %v2728 = vpop.permute.xlu0 %2727
        %2729 = vrot.lane.b32.xlu0 %v2487, 32
        %v2730 = vpop.permute.xlu0 %2729
        %2731 = vrot.lane.b32.xlu0 %v2488, 32
        %v2732 = vpop.permute.xlu0 %2731
        %2733 = vrot.lane.b32.xlu0 %v2489, 32
        %v2734 = vpop.permute.xlu0 %2733
        %2735 = vrot.lane.b32.xlu0 %v2490, 32
        %v2736 = vpop.permute.xlu0 %2735
        %2737 = vrot.lane.b32.xlu0 %v2491, 32
        %v2738 = vpop.permute.xlu0 %2737
        %2739 = vrot.lane.b32.xlu0 %v2492, 32
        %v2740 = vpop.permute.xlu0 %2739
        %2741 = vrot.lane.b32.xlu0 %v2493, 32
        %v2742 = vpop.permute.xlu0 %2741
        %2743 = vrot.lane.b32.xlu0 %v2494, 32
        %v2744 = vpop.permute.xlu0 %2743
        %2745 = vrot.lane.b32.xlu0 %v2495, 32
        %v2746 = vpop.permute.xlu0 %2745
        %2747 = vrot.lane.b32.xlu0 %v2496, 32
        %v2748 = vpop.permute.xlu0 %2747
        %2749 = vrot.lane.b32.xlu0 %v2497, 32
        %v2750 = vpop.permute.xlu0 %2749
        %2751 = vrot.lane.b32.xlu0 %v2498, 32
        %v2752 = vpop.permute.xlu0 %2751
        %2753 = vrot.lane.b32.xlu0 %v2499, 32
        %v2754 = vpop.permute.xlu0 %2753
        %2755 = vrot.lane.b32.xlu0 %v2500, 32
        %v2756 = vpop.permute.xlu0 %2755
        %v2757 = vsel %vm784, %v2694, %v2696
        %v2758 = vsel %vm784, %v2698, %v2700
        %v2759 = vsel %vm784, %v2702, %v2704
        %v2760 = vsel %vm784, %v2706, %v2708
        %v2761 = vsel %vm784, %v2710, %v2712
        %v2762 = vsel %vm784, %v2714, %v2716
        %v2763 = vsel %vm784, %v2718, %v2720
        %v2764 = vsel %vm784, %v2722, %v2724
        %v2765 = vsel %vm784, %v2726, %v2728
        %v2766 = vsel %vm784, %v2730, %v2732
        %v2767 = vsel %vm784, %v2734, %v2736
        %v2768 = vsel %vm784, %v2738, %v2740
        %v2769 = vsel %vm784, %v2742, %v2744
        %v2770 = vsel %vm784, %v2746, %v2748
        %v2771 = vsel %vm784, %v2750, %v2752
        %v2772 = vsel %vm784, %v2754, %v2756
        %v2805 = vsel %vm784, -inf, %v2694
        %v2806 = vsel %vm784, -inf, %v2698
        %v2807 = vsel %vm784, -inf, %v2702
        %v2808 = vsel %vm784, -inf, %v2706
        %v2809 = vsel %vm784, -inf, %v2710
        %v2810 = vsel %vm784, -inf, %v2714
        %v2811 = vsel %vm784, -inf, %v2718
        %v2812 = vsel %vm784, -inf, %v2722
        %v2813 = vsel %vm784, -inf, %v2726
        %v2814 = vsel %vm784, -inf, %v2730
        %v2815 = vsel %vm784, -inf, %v2734
        %v2816 = vsel %vm784, -inf, %v2738
        %v2817 = vsel %vm784, -inf, %v2742
        %v2818 = vsel %vm784, -inf, %v2746
        %v2819 = vsel %vm784, -inf, %v2750
        %v2820 = vsel %vm784, -inf, %v2754
        %v2821 = vmax.f32 %v2661, %v2805
        %v2822 = vmax.f32 %v2662, %v2757
        %v2823 = vmax.f32 %v2663, %v2806
        %v2824 = vmax.f32 %v2664, %v2758
        %v2825 = vmax.f32 %v2665, %v2807
        %v2826 = vmax.f32 %v2666, %v2759
        %v2827 = vmax.f32 %v2667, %v2808
        %v2828 = vmax.f32 %v2668, %v2760
        %v2829 = vmax.f32 %v2669, %v2809
        %v2830 = vmax.f32 %v2670, %v2761
        %v2831 = vmax.f32 %v2671, %v2810
        %v2832 = vmax.f32 %v2672, %v2762
        %v2833 = vmax.f32 %v2673, %v2811
        %v2834 = vmax.f32 %v2674, %v2763
        %v2835 = vmax.f32 %v2675, %v2812
        %v2836 = vmax.f32 %v2676, %v2764
        %v2837 = vmax.f32 %v2677, %v2813
        %v2838 = vmax.f32 %v2678, %v2765
        %v2839 = vmax.f32 %v2679, %v2814
        %v2840 = vmax.f32 %v2680, %v2766
        %v2841 = vmax.f32 %v2681, %v2815
        %v2842 = vmax.f32 %v2682, %v2767
        %v2843 = vmax.f32 %v2683, %v2816
        %v2844 = vmax.f32 %v2684, %v2768
        %v2845 = vmax.f32 %v2685, %v2817
        %v2846 = vmax.f32 %v2686, %v2769
        %v2847 = vmax.f32 %v2687, %v2818
        %v2848 = vmax.f32 %v2688, %v2770
        %v2849 = vmax.f32 %v2689, %v2819
        %v2850 = vmax.f32 %v2690, %v2771
        %v2851 = vmax.f32 %v2691, %v2820
        %v2852 = vmax.f32 %v2692, %v2772
        %2885 = vrot.lane.b32.xlu0 %v2821, 126
        %v2886 = vpop.permute.xlu0 %2885
        %2887 = vrot.lane.b32.xlu0 %v2822, 126
        %v2888 = vpop.permute.xlu0 %2887
        %2889 = vrot.lane.b32.xlu0 %v2823, 126
        %v2890 = vpop.permute.xlu0 %2889
        %2891 = vrot.lane.b32.xlu0 %v2824, 126
        %v2892 = vpop.permute.xlu0 %2891
        %2893 = vrot.lane.b32.xlu0 %v2825, 126
        %v2894 = vpop.permute.xlu0 %2893
        %2895 = vrot.lane.b32.xlu0 %v2826, 126
        %v2896 = vpop.permute.xlu0 %2895
        %2897 = vrot.lane.b32.xlu0 %v2827, 126
        %v2898 = vpop.permute.xlu0 %2897
        %2899 = vrot.lane.b32.xlu0 %v2828, 126
        %v2900 = vpop.permute.xlu0 %2899
        %2901 = vrot.lane.b32.xlu0 %v2829, 126
        %v2902 = vpop.permute.xlu0 %2901
        %2903 = vrot.lane.b32.xlu0 %v2830, 126
        %v2904 = vpop.permute.xlu0 %2903
        %2905 = vrot.lane.b32.xlu0 %v2831, 126
        %v2906 = vpop.permute.xlu0 %2905
        %2907 = vrot.lane.b32.xlu0 %v2832, 126
        %v2908 = vpop.permute.xlu0 %2907
        %2909 = vrot.lane.b32.xlu0 %v2833, 126
        %v2910 = vpop.permute.xlu0 %2909
        %2911 = vrot.lane.b32.xlu0 %v2834, 126
        %v2912 = vpop.permute.xlu0 %2911
        %2913 = vrot.lane.b32.xlu0 %v2835, 126
        %v2914 = vpop.permute.xlu0 %2913
        %2915 = vrot.lane.b32.xlu0 %v2836, 126
        %v2916 = vpop.permute.xlu0 %2915
        %2917 = vrot.lane.b32.xlu0 %v2837, 126
        %v2918 = vpop.permute.xlu0 %2917
        %2919 = vrot.lane.b32.xlu0 %v2838, 126
        %v2920 = vpop.permute.xlu0 %2919
        %2921 = vrot.lane.b32.xlu0 %v2839, 126
        %v2922 = vpop.permute.xlu0 %2921
        %2923 = vrot.lane.b32.xlu0 %v2840, 126
        %v2924 = vpop.permute.xlu0 %2923
        %2925 = vrot.lane.b32.xlu0 %v2841, 126
        %v2926 = vpop.permute.xlu0 %2925
        %2927 = vrot.lane.b32.xlu0 %v2842, 126
        %v2928 = vpop.permute.xlu0 %2927
        %2929 = vrot.lane.b32.xlu0 %v2843, 126
        %v2930 = vpop.permute.xlu0 %2929
        %2931 = vrot.lane.b32.xlu0 %v2844, 126
        %v2932 = vpop.permute.xlu0 %2931
        %2933 = vrot.lane.b32.xlu0 %v2845, 126
        %v2934 = vpop.permute.xlu0 %2933
        %2935 = vrot.lane.b32.xlu0 %v2846, 126
        %v2936 = vpop.permute.xlu0 %2935
        %2937 = vrot.lane.b32.xlu0 %v2847, 126
        %v2938 = vpop.permute.xlu0 %2937
        %2939 = vrot.lane.b32.xlu0 %v2848, 126
        %v2940 = vpop.permute.xlu0 %2939
        %2941 = vrot.lane.b32.xlu0 %v2849, 126
        %v2942 = vpop.permute.xlu0 %2941
        %2943 = vrot.lane.b32.xlu0 %v2850, 126
        %v2944 = vpop.permute.xlu0 %2943
        %2945 = vrot.lane.b32.xlu0 %v2851, 126
        %v2946 = vpop.permute.xlu0 %2945
        %2947 = vrot.lane.b32.xlu0 %v2852, 126
        %v2948 = vpop.permute.xlu0 %2947
        %v2949 = vsel %vm1389, %v2886, %v2888
        %v2950 = vsel %vm1389, %v2890, %v2892
        %v2951 = vsel %vm1389, %v2894, %v2896
        %v2952 = vsel %vm1389, %v2898, %v2900
        %v2953 = vsel %vm1389, %v2902, %v2904
        %v2954 = vsel %vm1389, %v2906, %v2908
        %v2955 = vsel %vm1389, %v2910, %v2912
        %v2956 = vsel %vm1389, %v2914, %v2916
        %v2957 = vsel %vm1389, %v2918, %v2920
        %v2958 = vsel %vm1389, %v2922, %v2924
        %v2959 = vsel %vm1389, %v2926, %v2928
        %v2960 = vsel %vm1389, %v2930, %v2932
        %v2961 = vsel %vm1389, %v2934, %v2936
        %v2962 = vsel %vm1389, %v2938, %v2940
        %v2963 = vsel %vm1389, %v2942, %v2944
        %v2964 = vsel %vm1389, %v2946, %v2948
        %v2997 = vsel %vm1389, %v2888, -inf
        %v2998 = vsel %vm1389, %v2892, -inf
        %v2999 = vsel %vm1389, %v2896, -inf
        %v3000 = vsel %vm1389, %v2900, -inf
        %v3001 = vsel %vm1389, %v2904, -inf
        %v3002 = vsel %vm1389, %v2908, -inf
        %v3003 = vsel %vm1389, %v2912, -inf
        %v3004 = vsel %vm1389, %v2916, -inf
        %v3005 = vsel %vm1389, %v2920, -inf
        %v3006 = vsel %vm1389, %v2924, -inf
        %v3007 = vsel %vm1389, %v2928, -inf
        %v3008 = vsel %vm1389, %v2932, -inf
        %v3009 = vsel %vm1389, %v2936, -inf
        %v3010 = vsel %vm1389, %v2940, -inf
        %v3011 = vsel %vm1389, %v2944, -inf
        %v3012 = vsel %vm1389, %v2948, -inf
        %v3013 = vsel %vm1463, %v2949, -inf
        %v3014 = vsel %vm1464, %v2997, -inf
        %v3015 = vsel %vm1463, %v2950, -inf
        %v3016 = vsel %vm1464, %v2998, -inf
        %v3017 = vsel %vm1463, %v2951, -inf
        %v3018 = vsel %vm1464, %v2999, -inf
        %v3019 = vsel %vm1463, %v2952, -inf
        %v3020 = vsel %vm1464, %v3000, -inf
        %v3021 = vsel %vm1463, %v2953, -inf
        %v3022 = vsel %vm1464, %v3001, -inf
        %v3023 = vsel %vm1463, %v2954, -inf
        %v3024 = vsel %vm1464, %v3002, -inf
        %v3025 = vsel %vm1463, %v2955, -inf
        %v3026 = vsel %vm1464, %v3003, -inf
        %v3027 = vsel %vm1463, %v2956, -inf
        %v3028 = vsel %vm1464, %v3004, -inf
        %v3029 = vsel %vm1463, %v2957, -inf
        %v3030 = vsel %vm1464, %v3005, -inf
        %v3031 = vsel %vm1463, %v2958, -inf
        %v3032 = vsel %vm1464, %v3006, -inf
        %v3033 = vsel %vm1463, %v2959, -inf
        %v3034 = vsel %vm1464, %v3007, -inf
        %v3035 = vsel %vm1463, %v2960, -inf
        %v3036 = vsel %vm1464, %v3008, -inf
        %v3037 = vsel %vm1463, %v2961, -inf
        %v3038 = vsel %vm1464, %v3009, -inf
        %v3039 = vsel %vm1463, %v2962, -inf
        %v3040 = vsel %vm1464, %v3010, -inf
        %v3041 = vsel %vm1463, %v2963, -inf
        %v3042 = vsel %vm1464, %v3011, -inf
        %v3043 = vsel %vm1463, %v2964, -inf
        %v3044 = vsel %vm1464, %v3012, -inf
        %v3045 = vmax.f32 %v2821, %v3013
        %v3046 = vmax.f32 %v2822, %v3014
        %v3047 = vmax.f32 %v2823, %v3015
        %v3048 = vmax.f32 %v2824, %v3016
        %v3049 = vmax.f32 %v2825, %v3017
        %v3050 = vmax.f32 %v2826, %v3018
        %v3051 = vmax.f32 %v2827, %v3019
        %v3052 = vmax.f32 %v2828, %v3020
        %v3053 = vmax.f32 %v2829, %v3021
        %v3054 = vmax.f32 %v2830, %v3022
        %v3055 = vmax.f32 %v2831, %v3023
        %v3056 = vmax.f32 %v2832, %v3024
        %v3057 = vmax.f32 %v2833, %v3025
        %v3058 = vmax.f32 %v2834, %v3026
        %v3059 = vmax.f32 %v2835, %v3027
        %v3060 = vmax.f32 %v2836, %v3028
        %v3061 = vmax.f32 %v2837, %v3029
        %v3062 = vmax.f32 %v2838, %v3030
        %v3063 = vmax.f32 %v2839, %v3031
        %v3064 = vmax.f32 %v2840, %v3032
        %v3065 = vmax.f32 %v2841, %v3033
        %v3066 = vmax.f32 %v2842, %v3034
        %v3067 = vmax.f32 %v2843, %v3035
        %v3068 = vmax.f32 %v2844, %v3036
        %v3069 = vmax.f32 %v2845, %v3037
        %v3070 = vmax.f32 %v2846, %v3038
        %v3071 = vmax.f32 %v2847, %v3039
        %v3072 = vmax.f32 %v2848, %v3040
        %v3073 = vmax.f32 %v2849, %v3041
        %v3074 = vmax.f32 %v2850, %v3042
        %v3075 = vmax.f32 %v2851, %v3043
        %v3076 = vmax.f32 %v2852, %v3044
        %3077 = vrot.lane.b32.xlu0 %v2821, 2
        %v3078 = vpop.permute.xlu0 %3077
        %3079 = vrot.lane.b32.xlu0 %v2822, 2
        %v3080 = vpop.permute.xlu0 %3079
        %3081 = vrot.lane.b32.xlu0 %v2823, 2
        %v3082 = vpop.permute.xlu0 %3081
        %3083 = vrot.lane.b32.xlu0 %v2824, 2
        %v3084 = vpop.permute.xlu0 %3083
        %3085 = vrot.lane.b32.xlu0 %v2825, 2
        %v3086 = vpop.permute.xlu0 %3085
        %3087 = vrot.lane.b32.xlu0 %v2826, 2
        %v3088 = vpop.permute.xlu0 %3087
        %3089 = vrot.lane.b32.xlu0 %v2827, 2
        %v3090 = vpop.permute.xlu0 %3089
        %3091 = vrot.lane.b32.xlu0 %v2828, 2
        %v3092 = vpop.permute.xlu0 %3091
        %3093 = vrot.lane.b32.xlu0 %v2829, 2
        %v3094 = vpop.permute.xlu0 %3093
        %3095 = vrot.lane.b32.xlu0 %v2830, 2
        %v3096 = vpop.permute.xlu0 %3095
        %3097 = vrot.lane.b32.xlu0 %v2831, 2
        %v3098 = vpop.permute.xlu0 %3097
        %3099 = vrot.lane.b32.xlu0 %v2832, 2
        %v3100 = vpop.permute.xlu0 %3099
        %3101 = vrot.lane.b32.xlu0 %v2833, 2
        %v3102 = vpop.permute.xlu0 %3101
        %3103 = vrot.lane.b32.xlu0 %v2834, 2
        %v3104 = vpop.permute.xlu0 %3103
        %3105 = vrot.lane.b32.xlu0 %v2835, 2
        %v3106 = vpop.permute.xlu0 %3105
        %3107 = vrot.lane.b32.xlu0 %v2836, 2
        %v3108 = vpop.permute.xlu0 %3107
        %3109 = vrot.lane.b32.xlu0 %v2837, 2
        %v3110 = vpop.permute.xlu0 %3109
        %3111 = vrot.lane.b32.xlu0 %v2838, 2
        %v3112 = vpop.permute.xlu0 %3111
        %3113 = vrot.lane.b32.xlu0 %v2839, 2
        %v3114 = vpop.permute.xlu0 %3113
        %3115 = vrot.lane.b32.xlu0 %v2840, 2
        %v3116 = vpop.permute.xlu0 %3115
        %3117 = vrot.lane.b32.xlu0 %v2841, 2
        %v3118 = vpop.permute.xlu0 %3117
        %3119 = vrot.lane.b32.xlu0 %v2842, 2
        %v3120 = vpop.permute.xlu0 %3119
        %3121 = vrot.lane.b32.xlu0 %v2843, 2
        %v3122 = vpop.permute.xlu0 %3121
        %3123 = vrot.lane.b32.xlu0 %v2844, 2
        %v3124 = vpop.permute.xlu0 %3123
        %3125 = vrot.lane.b32.xlu0 %v2845, 2
        %v3126 = vpop.permute.xlu0 %3125
        %3127 = vrot.lane.b32.xlu0 %v2846, 2
        %v3128 = vpop.permute.xlu0 %3127
        %3129 = vrot.lane.b32.xlu0 %v2847, 2
        %v3130 = vpop.permute.xlu0 %3129
        %3131 = vrot.lane.b32.xlu0 %v2848, 2
        %v3132 = vpop.permute.xlu0 %3131
        %3133 = vrot.lane.b32.xlu0 %v2849, 2
        %v3134 = vpop.permute.xlu0 %3133
        %3135 = vrot.lane.b32.xlu0 %v2850, 2
        %v3136 = vpop.permute.xlu0 %3135
        %3137 = vrot.lane.b32.xlu0 %v2851, 2
        %v3138 = vpop.permute.xlu0 %3137
        %3139 = vrot.lane.b32.xlu0 %v2852, 2
        %v3140 = vpop.permute.xlu0 %3139
        %v3141 = vsel %vm1593, %v3078, %v3080
        %v3142 = vsel %vm1593, %v3082, %v3084
        %v3143 = vsel %vm1593, %v3086, %v3088
        %v3144 = vsel %vm1593, %v3090, %v3092
        %v3145 = vsel %vm1593, %v3094, %v3096
        %v3146 = vsel %vm1593, %v3098, %v3100
        %v3147 = vsel %vm1593, %v3102, %v3104
        %v3148 = vsel %vm1593, %v3106, %v3108
        %v3149 = vsel %vm1593, %v3110, %v3112
        %v3150 = vsel %vm1593, %v3114, %v3116
        %v3151 = vsel %vm1593, %v3118, %v3120
        %v3152 = vsel %vm1593, %v3122, %v3124
        %v3153 = vsel %vm1593, %v3126, %v3128
        %v3154 = vsel %vm1593, %v3130, %v3132
        %v3155 = vsel %vm1593, %v3134, %v3136
        %v3156 = vsel %vm1593, %v3138, %v3140
        %v3189 = vsel %vm1593, -inf, %v3078
        %v3190 = vsel %vm1593, -inf, %v3082
        %v3191 = vsel %vm1593, -inf, %v3086
        %v3192 = vsel %vm1593, -inf, %v3090
        %v3193 = vsel %vm1593, -inf, %v3094
        %v3194 = vsel %vm1593, -inf, %v3098
        %v3195 = vsel %vm1593, -inf, %v3102
        %v3196 = vsel %vm1593, -inf, %v3106
        %v3197 = vsel %vm1593, -inf, %v3110
        %v3198 = vsel %vm1593, -inf, %v3114
        %v3199 = vsel %vm1593, -inf, %v3118
        %v3200 = vsel %vm1593, -inf, %v3122
        %v3201 = vsel %vm1593, -inf, %v3126
        %v3202 = vsel %vm1593, -inf, %v3130
        %v3203 = vsel %vm1593, -inf, %v3134
        %v3204 = vsel %vm1593, -inf, %v3138
        %v3205 = vsel %vm1667, %v3189, -inf
        %v3206 = vsel %vm1668, %v3141, -inf
        %v3207 = vsel %vm1667, %v3190, -inf
        %v3208 = vsel %vm1668, %v3142, -inf
        %v3209 = vsel %vm1667, %v3191, -inf
        %v3210 = vsel %vm1668, %v3143, -inf
        %v3211 = vsel %vm1667, %v3192, -inf
        %v3212 = vsel %vm1668, %v3144, -inf
        %v3213 = vsel %vm1667, %v3193, -inf
        %v3214 = vsel %vm1668, %v3145, -inf
        %v3215 = vsel %vm1667, %v3194, -inf
        %v3216 = vsel %vm1668, %v3146, -inf
        %v3217 = vsel %vm1667, %v3195, -inf
        %v3218 = vsel %vm1668, %v3147, -inf
        %v3219 = vsel %vm1667, %v3196, -inf
        %v3220 = vsel %vm1668, %v3148, -inf
        %v3221 = vsel %vm1667, %v3197, -inf
        %v3222 = vsel %vm1668, %v3149, -inf
        %v3223 = vsel %vm1667, %v3198, -inf
        %v3224 = vsel %vm1668, %v3150, -inf
        %v3225 = vsel %vm1667, %v3199, -inf
        %v3226 = vsel %vm1668, %v3151, -inf
        %v3227 = vsel %vm1667, %v3200, -inf
        %v3228 = vsel %vm1668, %v3152, -inf
        %v3229 = vsel %vm1667, %v3201, -inf
        %v3230 = vsel %vm1668, %v3153, -inf
        %v3231 = vsel %vm1667, %v3202, -inf
        %v3232 = vsel %vm1668, %v3154, -inf
        %v3233 = vsel %vm1667, %v3203, -inf
        %v3234 = vsel %vm1668, %v3155, -inf
        %v3235 = vsel %vm1667, %v3204, -inf
        %v3236 = vsel %vm1668, %v3156, -inf
        %v3237 = vmax.f32 %v3045, %v3205
        %v3238 = vmax.f32 %v3046, %v3206
        %v3239 = vmax.f32 %v3047, %v3207
        %v3240 = vmax.f32 %v3048, %v3208
        %v3241 = vmax.f32 %v3049, %v3209
        %v3242 = vmax.f32 %v3050, %v3210
        %v3243 = vmax.f32 %v3051, %v3211
        %v3244 = vmax.f32 %v3052, %v3212
        %v3245 = vmax.f32 %v3053, %v3213
        %v3246 = vmax.f32 %v3054, %v3214
        %v3247 = vmax.f32 %v3055, %v3215
        %v3248 = vmax.f32 %v3056, %v3216
        %v3249 = vmax.f32 %v3057, %v3217
        %v3250 = vmax.f32 %v3058, %v3218
        %v3251 = vmax.f32 %v3059, %v3219
        %v3252 = vmax.f32 %v3060, %v3220
        %v3253 = vmax.f32 %v3061, %v3221
        %v3254 = vmax.f32 %v3062, %v3222
        %v3255 = vmax.f32 %v3063, %v3223
        %v3256 = vmax.f32 %v3064, %v3224
        %v3257 = vmax.f32 %v3065, %v3225
        %v3258 = vmax.f32 %v3066, %v3226
        %v3259 = vmax.f32 %v3067, %v3227
        %v3260 = vmax.f32 %v3068, %v3228
        %v3261 = vmax.f32 %v3069, %v3229
        %v3262 = vmax.f32 %v3070, %v3230
        %v3263 = vmax.f32 %v3071, %v3231
        %v3264 = vmax.f32 %v3072, %v3232
        %v3265 = vmax.f32 %v3073, %v3233
        %v3266 = vmax.f32 %v3074, %v3234
        %v3267 = vmax.f32 %v3075, %v3235
        %v3268 = vmax.f32 %v3076, %v3236
        %3269 = vst [vmem:[%s159] sm:$0xff] %v3237
        %3270 = vst [vmem:[%s159 + $0x8] sm:$0xff] %v3238
        %3271 = vst [vmem:[%s159 + $0x10] sm:$0xff] %v3239
        %3272 = vst [vmem:[%s159 + $0x18] sm:$0xff] %v3240
        %3273 = vst [vmem:[%s159 + $0x20] sm:$0xff] %v3241
        %3274 = vst [vmem:[%s159 + $0x28] sm:$0xff] %v3242
        %3275 = vst [vmem:[%s159 + $0x30] sm:$0xff] %v3243
        %3276 = vst [vmem:[%s159 + $0x38] sm:$0xff] %v3244
        %3277 = vst [vmem:[%s159 + $0x40] sm:$0xff] %v3245
        %3278 = vst [vmem:[%s159 + $0x48] sm:$0xff] %v3246
        %3279 = vst [vmem:[%s159 + $0x50] sm:$0xff] %v3247
        %3280 = vst [vmem:[%s159 + $0x58] sm:$0xff] %v3248
        %3281 = vst [vmem:[%s159 + $0x60] sm:$0xff] %v3249
        %3282 = vst [vmem:[%s159 + $0x68] sm:$0xff] %v3250
        %3283 = vst [vmem:[%s159 + $0x70] sm:$0xff] %v3251
        %3284 = vst [vmem:[%s159 + $0x78] sm:$0xff] %v3252
        %3285 = vst [vmem:[%s159 + $0x80] sm:$0xff] %v3253
        %3286 = vst [vmem:[%s159 + $0x88] sm:$0xff] %v3254
        %3287 = vst [vmem:[%s159 + $0x90] sm:$0xff] %v3255
        %3288 = vst [vmem:[%s159 + $0x98] sm:$0xff] %v3256
        %3289 = vst [vmem:[%s159 + $0xa0] sm:$0xff] %v3257
        %3290 = vst [vmem:[%s159 + $0xa8] sm:$0xff] %v3258
        %3291 = vst [vmem:[%s159 + $0xb0] sm:$0xff] %v3259
        %3292 = vst [vmem:[%s159 + $0xb8] sm:$0xff] %v3260
        %3293 = vst [vmem:[%s159 + $0xc0] sm:$0xff] %v3261
        %3294 = vst [vmem:[%s159 + $0xc8] sm:$0xff] %v3262
        %3295 = vst [vmem:[%s159 + $0xd0] sm:$0xff] %v3263
        %3296 = vst [vmem:[%s159 + $0xd8] sm:$0xff] %v3264
        %3297 = vst [vmem:[%s159 + $0xe0] sm:$0xff] %v3265
        %3298 = vst [vmem:[%s159 + $0xe8] sm:$0xff] %v3266
        %3299 = vst [vmem:[%s159 + $0xf0] sm:$0xff] %v3267
        %3300 = vst [vmem:[%s159 + $0xf8] sm:$0xff] %v3268
        %s3301 = scalar_lea.vmem %s159, 256 [#allocation2]
        %3302 = vst [vmem:[%s3301] sm:$0xff] %v2469
        %3303 = vst [vmem:[%s3301 + $0x8] sm:$0xff] %v2470
        %3304 = vst [vmem:[%s3301 + $0x10] sm:$0xff] %v2471
        %3305 = vst [vmem:[%s3301 + $0x18] sm:$0xff] %v2472
        %3306 = vst [vmem:[%s3301 + $0x20] sm:$0xff] %v2473
        %3307 = vst [vmem:[%s3301 + $0x28] sm:$0xff] %v2474
        %3308 = vst [vmem:[%s3301 + $0x30] sm:$0xff] %v2475
        %3309 = vst [vmem:[%s3301 + $0x38] sm:$0xff] %v2476
        %3310 = vst [vmem:[%s3301 + $0x40] sm:$0xff] %v2477
        %3311 = vst [vmem:[%s3301 + $0x48] sm:$0xff] %v2478
        %3312 = vst [vmem:[%s3301 + $0x50] sm:$0xff] %v2479
        %3313 = vst [vmem:[%s3301 + $0x58] sm:$0xff] %v2480
        %3314 = vst [vmem:[%s3301 + $0x60] sm:$0xff] %v2481
        %3315 = vst [vmem:[%s3301 + $0x68] sm:$0xff] %v2482
        %3316 = vst [vmem:[%s3301 + $0x70] sm:$0xff] %v2483
        %3317 = vst [vmem:[%s3301 + $0x78] sm:$0xff] %v2484
        %3318 = vst [vmem:[%s3301 + $0x80] sm:$0xff] %v2485
        %3319 = vst [vmem:[%s3301 + $0x88] sm:$0xff] %v2486
        %3320 = vst [vmem:[%s3301 + $0x90] sm:$0xff] %v2487
        %3321 = vst [vmem:[%s3301 + $0x98] sm:$0xff] %v2488
        %3322 = vst [vmem:[%s3301 + $0xa0] sm:$0xff] %v2489
        %3323 = vst [vmem:[%s3301 + $0xa8] sm:$0xff] %v2490
        %3324 = vst [vmem:[%s3301 + $0xb0] sm:$0xff] %v2491
        %3325 = vst [vmem:[%s3301 + $0xb8] sm:$0xff] %v2492
        %3326 = vst [vmem:[%s3301 + $0xc0] sm:$0xff] %v2493
        %3327 = vst [vmem:[%s3301 + $0xc8] sm:$0xff] %v2494
        %3328 = vst [vmem:[%s3301 + $0xd0] sm:$0xff] %v2495
        %3329 = vst [vmem:[%s3301 + $0xd8] sm:$0xff] %v2496
        %3330 = vst [vmem:[%s3301 + $0xe0] sm:$0xff] %v2497
        %3331 = vst [vmem:[%s3301 + $0xe8] sm:$0xff] %v2498
        %3332 = vst [vmem:[%s3301 + $0xf0] sm:$0xff] %v2499
        %3333 = vst [vmem:[%s3301 + $0xf8] sm:$0xff] %v2500
        %s3334 = scalar_lea.vmem %s159, 512 [#allocation2]
        %3335 = vst [vmem:[%s3334] sm:$0xff] %v1701
        %3336 = vst [vmem:[%s3334 + $0x8] sm:$0xff] %v1702
        %3337 = vst [vmem:[%s3334 + $0x10] sm:$0xff] %v1703
        %3338 = vst [vmem:[%s3334 + $0x18] sm:$0xff] %v1704
        %3339 = vst [vmem:[%s3334 + $0x20] sm:$0xff] %v1705
        %3340 = vst [vmem:[%s3334 + $0x28] sm:$0xff] %v1706
        %3341 = vst [vmem:[%s3334 + $0x30] sm:$0xff] %v1707
        %3342 = vst [vmem:[%s3334 + $0x38] sm:$0xff] %v1708
        %3343 = vst [vmem:[%s3334 + $0x40] sm:$0xff] %v1709
        %3344 = vst [vmem:[%s3334 + $0x48] sm:$0xff] %v1710
        %3345 = vst [vmem:[%s3334 + $0x50] sm:$0xff] %v1711
        %3346 = vst [vmem:[%s3334 + $0x58] sm:$0xff] %v1712
        %3347 = vst [vmem:[%s3334 + $0x60] sm:$0xff] %v1713
        %3348 = vst [vmem:[%s3334 + $0x68] sm:$0xff] %v1714
        %3349 = vst [vmem:[%s3334 + $0x70] sm:$0xff] %v1715
        %3350 = vst [vmem:[%s3334 + $0x78] sm:$0xff] %v1716
        %3351 = vst [vmem:[%s3334 + $0x80] sm:$0xff] %v1717
        %3352 = vst [vmem:[%s3334 + $0x88] sm:$0xff] %v1718
        %3353 = vst [vmem:[%s3334 + $0x90] sm:$0xff] %v1719
        %3354 = vst [vmem:[%s3334 + $0x98] sm:$0xff] %v1720
        %3355 = vst [vmem:[%s3334 + $0xa0] sm:$0xff] %v1721
        %3356 = vst [vmem:[%s3334 + $0xa8] sm:$0xff] %v1722
        %3357 = vst [vmem:[%s3334 + $0xb0] sm:$0xff] %v1723
        %3358 = vst [vmem:[%s3334 + $0xb8] sm:$0xff] %v1724
        %3359 = vst [vmem:[%s3334 + $0xc0] sm:$0xff] %v1725
        %3360 = vst [vmem:[%s3334 + $0xc8] sm:$0xff] %v1726
        %3361 = vst [vmem:[%s3334 + $0xd0] sm:$0xff] %v1727
        %3362 = vst [vmem:[%s3334 + $0xd8] sm:$0xff] %v1728
        %3363 = vst [vmem:[%s3334 + $0xe0] sm:$0xff] %v1729
        %3364 = vst [vmem:[%s3334 + $0xe8] sm:$0xff] %v1730
        %3365 = vst [vmem:[%s3334 + $0xf0] sm:$0xff] %v1731
        %3366 = vst [vmem:[%s3334 + $0xf8] sm:$0xff] %v1732
        %s3367 = scalar_lea.vmem %s159, 768 [#allocation2]
        %3368 = vst [vmem:[%s3367] sm:$0xff] %v172
        %3369 = vst [vmem:[%s3367 + $0x8] sm:$0xff] %v173
        %3370 = vst [vmem:[%s3367 + $0x10] sm:$0xff] %v174
        %3371 = vst [vmem:[%s3367 + $0x18] sm:$0xff] %v175
        %3372 = vst [vmem:[%s3367 + $0x20] sm:$0xff] %v176
        %3373 = vst [vmem:[%s3367 + $0x28] sm:$0xff] %v177
        %3374 = vst [vmem:[%s3367 + $0x30] sm:$0xff] %v178
        %3375 = vst [vmem:[%s3367 + $0x38] sm:$0xff] %v179
        %3376 = vst [vmem:[%s3367 + $0x40] sm:$0xff] %v180
        %3377 = vst [vmem:[%s3367 + $0x48] sm:$0xff] %v181
        %3378 = vst [vmem:[%s3367 + $0x50] sm:$0xff] %v182
        %3379 = vst [vmem:[%s3367 + $0x58] sm:$0xff] %v183
        %3380 = vst [vmem:[%s3367 + $0x60] sm:$0xff] %v184
        %3381 = vst [vmem:[%s3367 + $0x68] sm:$0xff] %v185
        %3382 = vst [vmem:[%s3367 + $0x70] sm:$0xff] %v186
        %3383 = vst [vmem:[%s3367 + $0x78] sm:$0xff] %v187
        %3384 = vst [vmem:[%s3367 + $0x80] sm:$0xff] %v188
        %3385 = vst [vmem:[%s3367 + $0x88] sm:$0xff] %v189
        %3386 = vst [vmem:[%s3367 + $0x90] sm:$0xff] %v190
        %3387 = vst [vmem:[%s3367 + $0x98] sm:$0xff] %v191
        %3388 = vst [vmem:[%s3367 + $0xa0] sm:$0xff] %v192
        %3389 = vst [vmem:[%s3367 + $0xa8] sm:$0xff] %v193
        %3390 = vst [vmem:[%s3367 + $0xb0] sm:$0xff] %v194
        %3391 = vst [vmem:[%s3367 + $0xb8] sm:$0xff] %v195
        %3392 = vst [vmem:[%s3367 + $0xc0] sm:$0xff] %v196
        %3393 = vst [vmem:[%s3367 + $0xc8] sm:$0xff] %v197
        %3394 = vst [vmem:[%s3367 + $0xd0] sm:$0xff] %v198
        %3395 = vst [vmem:[%s3367 + $0xd8] sm:$0xff] %v199
        %3396 = vst [vmem:[%s3367 + $0xe0] sm:$0xff] %v200
        %3397 = vst [vmem:[%s3367 + $0xe8] sm:$0xff] %v201
        %3398 = vst [vmem:[%s3367 + $0xf0] sm:$0xff] %v202
        %3399 = vst [vmem:[%s3367 + $0xf8] sm:$0xff] %v203
        %s3400 = sand.u32 %s84, 1
        %s3401 = sand.u32 %s84, 1
        %s3402 = smul.addr %s3401, 1024
        %s3403 = scalar_lea.vmem [#allocation2], %s3402
        // Predicated region
        $region29: #{spp_nchw.1} parent=27 // pred_check
          %p3404 = pneg %p94
        $region30: #{spp_nchw.1} parent=27 // pred_check_branch
          %3406 = sbr.rel (%p3404) target = $region32
        $region31: #{spp_nchw.1} parent=27 // pred_region
          %s3407 = smul.u32 16, %s18
          %s3408 = smul.addr %s3407, 2
          %s3409 = smul.addr %s17, 256
          %s3410 = sadd.s32 %s3408, %s3409
          %s3411 = smul.addr %s3410, 8
          %s3412 = scalar_lea.vmem %s2, %s3411
          // Predicated region
          $region33: #{spp_nchw.1} parent=31 // pred_check
            _
          $region34: #{spp_nchw.1} parent=31 // pred_check_branch
            %3414 = sbr.rel (0) target = $region36
          $region35: #{spp_nchw.1} parent=31 // pred_region
            // Predicated region
            $region37: #{spp_nchw.1} parent=35 // pred_check
              _
            $region38: #{spp_nchw.1} parent=35 // pred_check_branch
              %3416 = sbr.rel (0) target = $region40
            $region39: #{spp_nchw.1} parent=35 // pred_region
              loop: start=0, step=1, limit=1
              $region41: #{spp_nchw.1} parent=39 // loop_pre_header
                _
              $region42: #{spp_nchw.1} parent=39 // loop_header
                %s3418 = sphi 0, %s3422
                %p3419 = scmp.ge.s32.totalorder %s3418, 1
                %s3423 = sphi %s3403, %s3403
                %s3424 = sphi %s3412, %s3412
              $region43: #{spp_nchw.1} parent=39 // loop_header_branch
                %3421 = sbr.rel (%p3419) target = $region47
              $region44: #{spp_nchw.1} parent=39 // loop_body
                %v3425 = vld [vmem:[%s3423] sm:$0xff]
                %3426 = vst [vmem:[%s3424] sm:$0xff] %v3425
                %v3427 = vld [vmem:[%s3423 + $0x8] sm:$0xff]
                %3428 = vst [vmem:[%s3424 + $0x8] sm:$0xff] %v3427
                %v3429 = vld [vmem:[%s3423 + $0x10] sm:$0xff]
                %3430 = vst [vmem:[%s3424 + $0x10] sm:$0xff] %v3429
                %v3431 = vld [vmem:[%s3423 + $0x18] sm:$0xff]
                %3432 = vst [vmem:[%s3424 + $0x18] sm:$0xff] %v3431
                %v3433 = vld [vmem:[%s3423 + $0x20] sm:$0xff]
                %3434 = vst [vmem:[%s3424 + $0x20] sm:$0xff] %v3433
                %v3435 = vld [vmem:[%s3423 + $0x28] sm:$0xff]
                %3436 = vst [vmem:[%s3424 + $0x28] sm:$0xff] %v3435
                %v3437 = vld [vmem:[%s3423 + $0x30] sm:$0xff]
                %3438 = vst [vmem:[%s3424 + $0x30] sm:$0xff] %v3437
                %v3439 = vld [vmem:[%s3423 + $0x38] sm:$0xff]
                %3440 = vst [vmem:[%s3424 + $0x38] sm:$0xff] %v3439
                %v3441 = vld [vmem:[%s3423 + $0x40] sm:$0xff]
                %3442 = vst [vmem:[%s3424 + $0x40] sm:$0xff] %v3441
                %v3443 = vld [vmem:[%s3423 + $0x48] sm:$0xff]
                %3444 = vst [vmem:[%s3424 + $0x48] sm:$0xff] %v3443
                %v3445 = vld [vmem:[%s3423 + $0x50] sm:$0xff]
                %3446 = vst [vmem:[%s3424 + $0x50] sm:$0xff] %v3445
                %v3447 = vld [vmem:[%s3423 + $0x58] sm:$0xff]
                %3448 = vst [vmem:[%s3424 + $0x58] sm:$0xff] %v3447
                %v3449 = vld [vmem:[%s3423 + $0x60] sm:$0xff]
                %3450 = vst [vmem:[%s3424 + $0x60] sm:$0xff] %v3449
                %v3451 = vld [vmem:[%s3423 + $0x68] sm:$0xff]
                %3452 = vst [vmem:[%s3424 + $0x68] sm:$0xff] %v3451
                %v3453 = vld [vmem:[%s3423 + $0x70] sm:$0xff]
                %3454 = vst [vmem:[%s3424 + $0x70] sm:$0xff] %v3453
                %v3455 = vld [vmem:[%s3423 + $0x78] sm:$0xff]
                %3456 = vst [vmem:[%s3424 + $0x78] sm:$0xff] %v3455
                %v3457 = vld [vmem:[%s3423 + $0x80] sm:$0xff]
                %3458 = vst [vmem:[%s3424 + $0x80] sm:$0xff] %v3457
                %v3459 = vld [vmem:[%s3423 + $0x88] sm:$0xff]
                %3460 = vst [vmem:[%s3424 + $0x88] sm:$0xff] %v3459
                %v3461 = vld [vmem:[%s3423 + $0x90] sm:$0xff]
                %3462 = vst [vmem:[%s3424 + $0x90] sm:$0xff] %v3461
                %v3463 = vld [vmem:[%s3423 + $0x98] sm:$0xff]
                %3464 = vst [vmem:[%s3424 + $0x98] sm:$0xff] %v3463
                %v3465 = vld [vmem:[%s3423 + $0xa0] sm:$0xff]
                %3466 = vst [vmem:[%s3424 + $0xa0] sm:$0xff] %v3465
                %v3467 = vld [vmem:[%s3423 + $0xa8] sm:$0xff]
                %3468 = vst [vmem:[%s3424 + $0xa8] sm:$0xff] %v3467
                %v3469 = vld [vmem:[%s3423 + $0xb0] sm:$0xff]
                %3470 = vst [vmem:[%s3424 + $0xb0] sm:$0xff] %v3469
                %v3471 = vld [vmem:[%s3423 + $0xb8] sm:$0xff]
                %3472 = vst [vmem:[%s3424 + $0xb8] sm:$0xff] %v3471
                %v3473 = vld [vmem:[%s3423 + $0xc0] sm:$0xff]
                %3474 = vst [vmem:[%s3424 + $0xc0] sm:$0xff] %v3473
                %v3475 = vld [vmem:[%s3423 + $0xc8] sm:$0xff]
                %3476 = vst [vmem:[%s3424 + $0xc8] sm:$0xff] %v3475
                %v3477 = vld [vmem:[%s3423 + $0xd0] sm:$0xff]
                %3478 = vst [vmem:[%s3424 + $0xd0] sm:$0xff] %v3477
                %v3479 = vld [vmem:[%s3423 + $0xd8] sm:$0xff]
                %3480 = vst [vmem:[%s3424 + $0xd8] sm:$0xff] %v3479
                %v3481 = vld [vmem:[%s3423 + $0xe0] sm:$0xff]
                %3482 = vst [vmem:[%s3424 + $0xe0] sm:$0xff] %v3481
                %v3483 = vld [vmem:[%s3423 + $0xe8] sm:$0xff]
                %3484 = vst [vmem:[%s3424 + $0xe8] sm:$0xff] %v3483
                %v3485 = vld [vmem:[%s3423 + $0xf0] sm:$0xff]
                %3486 = vst [vmem:[%s3424 + $0xf0] sm:$0xff] %v3485
                %v3487 = vld [vmem:[%s3423 + $0xf8] sm:$0xff]
                %3488 = vst [vmem:[%s3424 + $0xf8] sm:$0xff] %v3487
                %v3489 = vld [vmem:[%s3423 + $0x100] sm:$0xff]
                %3490 = vst [vmem:[%s3424 + $0x200] sm:$0xff] %v3489
                %v3491 = vld [vmem:[%s3423 + $0x108] sm:$0xff]
                %3492 = vst [vmem:[%s3424 + $0x208] sm:$0xff] %v3491
                %v3493 = vld [vmem:[%s3423 + $0x110] sm:$0xff]
                %3494 = vst [vmem:[%s3424 + $0x210] sm:$0xff] %v3493
                %v3495 = vld [vmem:[%s3423 + $0x118] sm:$0xff]
                %3496 = vst [vmem:[%s3424 + $0x218] sm:$0xff] %v3495
                %v3497 = vld [vmem:[%s3423 + $0x120] sm:$0xff]
                %3498 = vst [vmem:[%s3424 + $0x220] sm:$0xff] %v3497
                %v3499 = vld [vmem:[%s3423 + $0x128] sm:$0xff]
                %3500 = vst [vmem:[%s3424 + $0x228] sm:$0xff] %v3499
                %v3501 = vld [vmem:[%s3423 + $0x130] sm:$0xff]
                %3502 = vst [vmem:[%s3424 + $0x230] sm:$0xff] %v3501
                %v3503 = vld [vmem:[%s3423 + $0x138] sm:$0xff]
                %3504 = vst [vmem:[%s3424 + $0x238] sm:$0xff] %v3503
                %v3505 = vld [vmem:[%s3423 + $0x140] sm:$0xff]
                %3506 = vst [vmem:[%s3424 + $0x240] sm:$0xff] %v3505
                %v3507 = vld [vmem:[%s3423 + $0x148] sm:$0xff]
                %3508 = vst [vmem:[%s3424 + $0x248] sm:$0xff] %v3507
                %v3509 = vld [vmem:[%s3423 + $0x150] sm:$0xff]
                %3510 = vst [vmem:[%s3424 + $0x250] sm:$0xff] %v3509
                %v3511 = vld [vmem:[%s3423 + $0x158] sm:$0xff]
                %3512 = vst [vmem:[%s3424 + $0x258] sm:$0xff] %v3511
                %v3513 = vld [vmem:[%s3423 + $0x160] sm:$0xff]
                %3514 = vst [vmem:[%s3424 + $0x260] sm:$0xff] %v3513
                %v3515 = vld [vmem:[%s3423 + $0x168] sm:$0xff]
                %3516 = vst [vmem:[%s3424 + $0x268] sm:$0xff] %v3515
                %v3517 = vld [vmem:[%s3423 + $0x170] sm:$0xff]
                %3518 = vst [vmem:[%s3424 + $0x270] sm:$0xff] %v3517
                %v3519 = vld [vmem:[%s3423 + $0x178] sm:$0xff]
                %3520 = vst [vmem:[%s3424 + $0x278] sm:$0xff] %v3519
                %v3521 = vld [vmem:[%s3423 + $0x180] sm:$0xff]
                %3522 = vst [vmem:[%s3424 + $0x280] sm:$0xff] %v3521
                %v3523 = vld [vmem:[%s3423 + $0x188] sm:$0xff]
                %3524 = vst [vmem:[%s3424 + $0x288] sm:$0xff] %v3523
                %v3525 = vld [vmem:[%s3423 + $0x190] sm:$0xff]
                %3526 = vst [vmem:[%s3424 + $0x290] sm:$0xff] %v3525
                %v3527 = vld [vmem:[%s3423 + $0x198] sm:$0xff]
                %3528 = vst [vmem:[%s3424 + $0x298] sm:$0xff] %v3527
                %v3529 = vld [vmem:[%s3423 + $0x1a0] sm:$0xff]
                %3530 = vst [vmem:[%s3424 + $0x2a0] sm:$0xff] %v3529
                %v3531 = vld [vmem:[%s3423 + $0x1a8] sm:$0xff]
                %3532 = vst [vmem:[%s3424 + $0x2a8] sm:$0xff] %v3531
                %v3533 = vld [vmem:[%s3423 + $0x1b0] sm:$0xff]
                %3534 = vst [vmem:[%s3424 + $0x2b0] sm:$0xff] %v3533
                %v3535 = vld [vmem:[%s3423 + $0x1b8] sm:$0xff]
                %3536 = vst [vmem:[%s3424 + $0x2b8] sm:$0xff] %v3535
                %v3537 = vld [vmem:[%s3423 + $0x1c0] sm:$0xff]
                %3538 = vst [vmem:[%s3424 + $0x2c0] sm:$0xff] %v3537
                %v3539 = vld [vmem:[%s3423 + $0x1c8] sm:$0xff]
                %3540 = vst [vmem:[%s3424 + $0x2c8] sm:$0xff] %v3539
                %v3541 = vld [vmem:[%s3423 + $0x1d0] sm:$0xff]
                %3542 = vst [vmem:[%s3424 + $0x2d0] sm:$0xff] %v3541
                %v3543 = vld [vmem:[%s3423 + $0x1d8] sm:$0xff]
                %3544 = vst [vmem:[%s3424 + $0x2d8] sm:$0xff] %v3543
                %v3545 = vld [vmem:[%s3423 + $0x1e0] sm:$0xff]
                %3546 = vst [vmem:[%s3424 + $0x2e0] sm:$0xff] %v3545
                %v3547 = vld [vmem:[%s3423 + $0x1e8] sm:$0xff]
                %3548 = vst [vmem:[%s3424 + $0x2e8] sm:$0xff] %v3547
                %v3549 = vld [vmem:[%s3423 + $0x1f0] sm:$0xff]
                %3550 = vst [vmem:[%s3424 + $0x2f0] sm:$0xff] %v3549
                %v3551 = vld [vmem:[%s3423 + $0x1f8] sm:$0xff]
                %3552 = vst [vmem:[%s3424 + $0x2f8] sm:$0xff] %v3551
                %v3553 = vld [vmem:[%s3423 + $0x200] sm:$0xff]
                %3554 = vst [vmem:[%s3424 + $0x400] sm:$0xff] %v3553
                %v3555 = vld [vmem:[%s3423 + $0x208] sm:$0xff]
                %3556 = vst [vmem:[%s3424 + $0x408] sm:$0xff] %v3555
                %v3557 = vld [vmem:[%s3423 + $0x210] sm:$0xff]
                %3558 = vst [vmem:[%s3424 + $0x410] sm:$0xff] %v3557
                %v3559 = vld [vmem:[%s3423 + $0x218] sm:$0xff]
                %3560 = vst [vmem:[%s3424 + $0x418] sm:$0xff] %v3559
                %v3561 = vld [vmem:[%s3423 + $0x220] sm:$0xff]
                %3562 = vst [vmem:[%s3424 + $0x420] sm:$0xff] %v3561
                %v3563 = vld [vmem:[%s3423 + $0x228] sm:$0xff]
                %3564 = vst [vmem:[%s3424 + $0x428] sm:$0xff] %v3563
                %v3565 = vld [vmem:[%s3423 + $0x230] sm:$0xff]
                %3566 = vst [vmem:[%s3424 + $0x430] sm:$0xff] %v3565
                %v3567 = vld [vmem:[%s3423 + $0x238] sm:$0xff]
                %3568 = vst [vmem:[%s3424 + $0x438] sm:$0xff] %v3567
                %v3569 = vld [vmem:[%s3423 + $0x240] sm:$0xff]
                %3570 = vst [vmem:[%s3424 + $0x440] sm:$0xff] %v3569
                %v3571 = vld [vmem:[%s3423 + $0x248] sm:$0xff]
                %3572 = vst [vmem:[%s3424 + $0x448] sm:$0xff] %v3571
                %v3573 = vld [vmem:[%s3423 + $0x250] sm:$0xff]
                %3574 = vst [vmem:[%s3424 + $0x450] sm:$0xff] %v3573
                %v3575 = vld [vmem:[%s3423 + $0x258] sm:$0xff]
                %3576 = vst [vmem:[%s3424 + $0x458] sm:$0xff] %v3575
                %v3577 = vld [vmem:[%s3423 + $0x260] sm:$0xff]
                %3578 = vst [vmem:[%s3424 + $0x460] sm:$0xff] %v3577
                %v3579 = vld [vmem:[%s3423 + $0x268] sm:$0xff]
                %3580 = vst [vmem:[%s3424 + $0x468] sm:$0xff] %v3579
                %v3581 = vld [vmem:[%s3423 + $0x270] sm:$0xff]
                %3582 = vst [vmem:[%s3424 + $0x470] sm:$0xff] %v3581
                %v3583 = vld [vmem:[%s3423 + $0x278] sm:$0xff]
                %3584 = vst [vmem:[%s3424 + $0x478] sm:$0xff] %v3583
                %v3585 = vld [vmem:[%s3423 + $0x280] sm:$0xff]
                %3586 = vst [vmem:[%s3424 + $0x480] sm:$0xff] %v3585
                %v3587 = vld [vmem:[%s3423 + $0x288] sm:$0xff]
                %3588 = vst [vmem:[%s3424 + $0x488] sm:$0xff] %v3587
                %v3589 = vld [vmem:[%s3423 + $0x290] sm:$0xff]
                %3590 = vst [vmem:[%s3424 + $0x490] sm:$0xff] %v3589
                %v3591 = vld [vmem:[%s3423 + $0x298] sm:$0xff]
                %3592 = vst [vmem:[%s3424 + $0x498] sm:$0xff] %v3591
                %v3593 = vld [vmem:[%s3423 + $0x2a0] sm:$0xff]
                %3594 = vst [vmem:[%s3424 + $0x4a0] sm:$0xff] %v3593
                %v3595 = vld [vmem:[%s3423 + $0x2a8] sm:$0xff]
                %3596 = vst [vmem:[%s3424 + $0x4a8] sm:$0xff] %v3595
                %v3597 = vld [vmem:[%s3423 + $0x2b0] sm:$0xff]
                %3598 = vst [vmem:[%s3424 + $0x4b0] sm:$0xff] %v3597
                %v3599 = vld [vmem:[%s3423 + $0x2b8] sm:$0xff]
                %3600 = vst [vmem:[%s3424 + $0x4b8] sm:$0xff] %v3599
                %v3601 = vld [vmem:[%s3423 + $0x2c0] sm:$0xff]
                %3602 = vst [vmem:[%s3424 + $0x4c0] sm:$0xff] %v3601
                %v3603 = vld [vmem:[%s3423 + $0x2c8] sm:$0xff]
                %3604 = vst [vmem:[%s3424 + $0x4c8] sm:$0xff] %v3603
                %v3605 = vld [vmem:[%s3423 + $0x2d0] sm:$0xff]
                %3606 = vst [vmem:[%s3424 + $0x4d0] sm:$0xff] %v3605
                %v3607 = vld [vmem:[%s3423 + $0x2d8] sm:$0xff]
                %3608 = vst [vmem:[%s3424 + $0x4d8] sm:$0xff] %v3607
                %v3609 = vld [vmem:[%s3423 + $0x2e0] sm:$0xff]
                %3610 = vst [vmem:[%s3424 + $0x4e0] sm:$0xff] %v3609
                %v3611 = vld [vmem:[%s3423 + $0x2e8] sm:$0xff]
                %3612 = vst [vmem:[%s3424 + $0x4e8] sm:$0xff] %v3611
                %v3613 = vld [vmem:[%s3423 + $0x2f0] sm:$0xff]
                %3614 = vst [vmem:[%s3424 + $0x4f0] sm:$0xff] %v3613
                %v3615 = vld [vmem:[%s3423 + $0x2f8] sm:$0xff]
                %3616 = vst [vmem:[%s3424 + $0x4f8] sm:$0xff] %v3615
                %v3617 = vld [vmem:[%s3423 + $0x300] sm:$0xff]
                %3618 = vst [vmem:[%s3424 + $0x600] sm:$0xff] %v3617
                %v3619 = vld [vmem:[%s3423 + $0x308] sm:$0xff]
                %3620 = vst [vmem:[%s3424 + $0x608] sm:$0xff] %v3619
                %v3621 = vld [vmem:[%s3423 + $0x310] sm:$0xff]
                %3622 = vst [vmem:[%s3424 + $0x610] sm:$0xff] %v3621
                %v3623 = vld [vmem:[%s3423 + $0x318] sm:$0xff]
                %3624 = vst [vmem:[%s3424 + $0x618] sm:$0xff] %v3623
                %v3625 = vld [vmem:[%s3423 + $0x320] sm:$0xff]
                %3626 = vst [vmem:[%s3424 + $0x620] sm:$0xff] %v3625
                %v3627 = vld [vmem:[%s3423 + $0x328] sm:$0xff]
                %3628 = vst [vmem:[%s3424 + $0x628] sm:$0xff] %v3627
                %v3629 = vld [vmem:[%s3423 + $0x330] sm:$0xff]
                %3630 = vst [vmem:[%s3424 + $0x630] sm:$0xff] %v3629
                %v3631 = vld [vmem:[%s3423 + $0x338] sm:$0xff]
                %3632 = vst [vmem:[%s3424 + $0x638] sm:$0xff] %v3631
                %v3633 = vld [vmem:[%s3423 + $0x340] sm:$0xff]
                %3634 = vst [vmem:[%s3424 + $0x640] sm:$0xff] %v3633
                %v3635 = vld [vmem:[%s3423 + $0x348] sm:$0xff]
                %3636 = vst [vmem:[%s3424 + $0x648] sm:$0xff] %v3635
                %v3637 = vld [vmem:[%s3423 + $0x350] sm:$0xff]
                %3638 = vst [vmem:[%s3424 + $0x650] sm:$0xff] %v3637
                %v3639 = vld [vmem:[%s3423 + $0x358] sm:$0xff]
                %3640 = vst [vmem:[%s3424 + $0x658] sm:$0xff] %v3639
                %v3641 = vld [vmem:[%s3423 + $0x360] sm:$0xff]
                %3642 = vst [vmem:[%s3424 + $0x660] sm:$0xff] %v3641
                %v3643 = vld [vmem:[%s3423 + $0x368] sm:$0xff]
                %3644 = vst [vmem:[%s3424 + $0x668] sm:$0xff] %v3643
                %v3645 = vld [vmem:[%s3423 + $0x370] sm:$0xff]
                %3646 = vst [vmem:[%s3424 + $0x670] sm:$0xff] %v3645
                %v3647 = vld [vmem:[%s3423 + $0x378] sm:$0xff]
                %3648 = vst [vmem:[%s3424 + $0x678] sm:$0xff] %v3647
                %v3649 = vld [vmem:[%s3423 + $0x380] sm:$0xff]
                %3650 = vst [vmem:[%s3424 + $0x680] sm:$0xff] %v3649
                %v3651 = vld [vmem:[%s3423 + $0x388] sm:$0xff]
                %3652 = vst [vmem:[%s3424 + $0x688] sm:$0xff] %v3651
                %v3653 = vld [vmem:[%s3423 + $0x390] sm:$0xff]
                %3654 = vst [vmem:[%s3424 + $0x690] sm:$0xff] %v3653
                %v3655 = vld [vmem:[%s3423 + $0x398] sm:$0xff]
                %3656 = vst [vmem:[%s3424 + $0x698] sm:$0xff] %v3655
                %v3657 = vld [vmem:[%s3423 + $0x3a0] sm:$0xff]
                %3658 = vst [vmem:[%s3424 + $0x6a0] sm:$0xff] %v3657
                %v3659 = vld [vmem:[%s3423 + $0x3a8] sm:$0xff]
                %3660 = vst [vmem:[%s3424 + $0x6a8] sm:$0xff] %v3659
                %v3661 = vld [vmem:[%s3423 + $0x3b0] sm:$0xff]
                %3662 = vst [vmem:[%s3424 + $0x6b0] sm:$0xff] %v3661
                %v3663 = vld [vmem:[%s3423 + $0x3b8] sm:$0xff]
                %3664 = vst [vmem:[%s3424 + $0x6b8] sm:$0xff] %v3663
                %v3665 = vld [vmem:[%s3423 + $0x3c0] sm:$0xff]
                %3666 = vst [vmem:[%s3424 + $0x6c0] sm:$0xff] %v3665
                %v3667 = vld [vmem:[%s3423 + $0x3c8] sm:$0xff]
                %3668 = vst [vmem:[%s3424 + $0x6c8] sm:$0xff] %v3667
                %v3669 = vld [vmem:[%s3423 + $0x3d0] sm:$0xff]
                %3670 = vst [vmem:[%s3424 + $0x6d0] sm:$0xff] %v3669
                %v3671 = vld [vmem:[%s3423 + $0x3d8] sm:$0xff]
                %3672 = vst [vmem:[%s3424 + $0x6d8] sm:$0xff] %v3671
                %v3673 = vld [vmem:[%s3423 + $0x3e0] sm:$0xff]
                %3674 = vst [vmem:[%s3424 + $0x6e0] sm:$0xff] %v3673
                %v3675 = vld [vmem:[%s3423 + $0x3e8] sm:$0xff]
                %3676 = vst [vmem:[%s3424 + $0x6e8] sm:$0xff] %v3675
                %v3677 = vld [vmem:[%s3423 + $0x3f0] sm:$0xff]
                %3678 = vst [vmem:[%s3424 + $0x6f0] sm:$0xff] %v3677
                %v3679 = vld [vmem:[%s3423 + $0x3f8] sm:$0xff]
                %3680 = vst [vmem:[%s3424 + $0x6f8] sm:$0xff] %v3679
              $region45: #{spp_nchw.1} parent=39 // loop_footer
                %s3422 = sadd.s32 1, %s3418
              $region46: #{spp_nchw.1} parent=39 // loop_footer_branch
                %3417 = sbr.rel target = $region42
              $region47: #{spp_nchw.1} parent=39 // loop_exit
                _
            $region40: #{spp_nchw.1} parent=35 // pred_fallthru
              _
            // Predicated region
            $region48: #{spp_nchw.1} parent=35 // pred_check
              _
            $region49: #{spp_nchw.1} parent=35 // pred_check_branch
              %3682 = sbr.rel target = $region51
            $region50: #{spp_nchw.1} parent=35 // pred_region
              _
            $region51: #{spp_nchw.1} parent=35 // pred_fallthru
              _
          $region36: #{spp_nchw.1} parent=31 // pred_fallthru
            _
          %3683 = vnop
        $region32: #{spp_nchw.1} parent=27 // pred_fallthru
          _
      $region28: #{spp_nchw.1} parent=5 // pred_fallthru
        _
      %p3684 = scmp.le.s32.totalorder 2, %s8
      // Predicated region
      $region52: #{spp_nchw.1} parent=5 // pred_check
        %p3685 = pneg %p3684
      $region53: #{spp_nchw.1} parent=5 // pred_check_branch
        %3687 = sbr.rel (%p3685) target = $region55
      $region54: #{spp_nchw.1} parent=5 // pred_region
        %s3688 = ssub.s32 %s8, 2
        // Predicated region
        $region56: #{spp_nchw.1} parent=54 // pred_check
          %p3689 = pneg %p100
        $region57: #{spp_nchw.1} parent=54 // pred_check_branch
          %3691 = sbr.rel (%p3689) target = $region59
        $region58: #{spp_nchw.1} parent=54 // pred_region
          %s3692 = sand.u32 %s85, 1
          %s3693 = sand.u32 %s85, 1
          %s3694 = smul.addr %s3693, 1024
          %s3695 = scalar_lea.vmem [#allocation2], %s3694
        $region59: #{spp_nchw.1} parent=54 // pred_fallthru
          _
      $region55: #{spp_nchw.1} parent=5 // pred_fallthru
        _
    $region6: #{spp_nchw.1} parent=1 // loop_footer
      %s12 = sadd.s32 1, %s8
    $region7: #{spp_nchw.1} parent=1 // loop_footer_branch
      %7 = sbr.rel target = $region3
    $region8: #{spp_nchw.1} parent=1 // loop_exit
      _

</llo_original>
